<compile_context>
chip_gen: v7x
topology: tpu7x:2x2x1
jax: 0.10.0
libtpu: 0.0.40
codegen_flags: <defaults>
</compile_context>

<pallas_src>
import math
import functools

import jax
import jax.numpy as jnp
from jax import lax
from jax.experimental import pallas as pl
from jax.experimental.pallas import tpu as pltpu


def _gelu_exact(x):
    # erf-based GELU, matches torch F.gelu(x, approximate='none')
    return 0.5 * x * (1.0 + lax.erf(x * (1.0 / math.sqrt(2.0))))


def _gelu_tanh(x):
    # tanh approximation, matches torch F.gelu(x, approximate='tanh')
    c = math.sqrt(2.0 / math.pi)
    return 0.5 * x * (1.0 + jnp.tanh(c * (x + 0.044715 * (x * x * x))))


def _round_up(a, b):
    return ((a + b - 1) // b) * b


# ---------------------------------------------------------------------------
# Kernel
# ---------------------------------------------------------------------------
def phi_mlp_kernel(x_ref, w1_ref, b1_ref, w2_ref, b2_ref, o_ref, acc_ref, *, use_tanh):
    # x_ref:  (bm, H)        row tile of hidden_states
    # w1_ref: (H, bi)        column slab of fc1 weight (pre-transposed [in, out])
    # b1_ref: (1, bi)
    # w2_ref: (bi, H)        row slab of fc2 weight (pre-transposed [in, out])
    # b2_ref: (1, H)         tiny, resident
    # o_ref:  (bm, H)        output tile (resident across the I axis)
    # acc_ref:(bm, H) f32    VMEM scratch accumulator
    k = pl.program_id(1)

    @pl.when(k == 0)
    def _init():
        # Fold b2 into the accumulator init (saves a full-tile VPU pass later).
        acc_ref[...] = jnp.broadcast_to(
            b2_ref[...].astype(jnp.float32), acc_ref.shape)

    # fc1 chunk: (bm, bi). Native-dtype operands on the MXU, f32 accumulation.
    h = jnp.dot(x_ref[...], w1_ref[...], preferred_element_type=jnp.float32)
    h = h + b1_ref[...].astype(jnp.float32)

    # Activation in f32 (matches the PyTorch module's act mapping exactly).
    g = _gelu_tanh(h) if use_tanh else _gelu_exact(h)

    # fc2 partial sum for this I chunk, accumulated in f32.
    acc_ref[...] += jnp.dot(g.astype(w2_ref.dtype), w2_ref[...],
                            preferred_element_type=jnp.float32)

    @pl.when(k == pl.num_programs(1) - 1)
    def _finalize():
        o_ref[...] = acc_ref[...].astype(o_ref.dtype)


# ---------------------------------------------------------------------------
# Tile selection / VMEM budgeting (per TPU generation)
# ---------------------------------------------------------------------------
def _vmem_capacity_bytes():
    cap = 64 << 20  # conservative fallback = v7x per-TensorCore VMEM
    try:
        info = pltpu.get_tpu_info()
        cap = int(getattr(info, "vmem_capacity_bytes", cap))
    except Exception:
        pass
    return cap


def _footprint_bytes(bm, bi, H, x_bytes, w_bytes, o_bytes):
    # Double-buffered x/out tiles and weight slabs + f32 accumulator scratch.
    x_buf = 2 * bm * H * x_bytes
    o_buf = 2 * bm * H * o_bytes
    w1_buf = 2 * H * bi * w_bytes
    w2_buf = 2 * bi * H * w_bytes
    bias = 2 * (8 * bi + 8 * H) * w_bytes   # (1, n) tiles pad to 8 sublanes
    acc = bm * H * 4
    return x_buf + o_buf + w1_buf + w2_buf + bias + acc


def _auto_tiles(S, H, I, x_bytes, w_bytes, o_bytes, block_m, block_i, budget):
    # --- token-dim tile: big (amortizes weight streaming), MXU-aligned ------
    if block_m is None:
        block_m = 512
    if S <= 128:
        block_m = min(block_m, _round_up(max(S, 1), 8))   # decode-sized S
    else:
        block_m = min(block_m, _round_up(S, 128))
    block_m = max(block_m, 8)

    # --- intermediate-dim tile: largest divisor of I that fits --------------
    if block_i is not None:
        assert I % block_i == 0, "block_i must divide intermediate_size"
        bi_cands = [block_i]
    else:
        bi_cands = sorted({c for c in (I, 4096, 2048, 1024, 512, 256, 128)
                           if c <= I and I % c == 0}, reverse=True)
        if not bi_cands:
            bi_cands = [I]
    bi_idx = 0

    # Shrink to the VMEM budget: prefer shrinking block_i first (keeps block_m
    # large so weight slabs are amortized over more tokens), then block_m.
    while _footprint_bytes(block_m, bi_cands[bi_idx], H,
                           x_bytes, w_bytes, o_bytes) > budget:
        if bi_idx < len(bi_cands) - 1 and bi_cands[bi_idx] > 256:
            bi_idx += 1
        elif block_m > 256:
            block_m = max(256, block_m // 2)
        elif bi_idx < len(bi_cands) - 1:
            bi_idx += 1
        elif block_m > 8:
            block_m = max(8, block_m // 2)
        else:
            break
    return block_m, bi_cands[bi_idx]


# ---------------------------------------------------------------------------
# Host wrappers
# ---------------------------------------------------------------------------
def prepare_phi_mlp_params(w1, b1, w2, b2, *, param_dtype=None):
    """One-time parameter preprocessing (NOT per forward step).

    w1: [I, H], b1: [I], w2: [H, I], b2: [H]  (PyTorch nn.Linear layout).
    Returns (w1_t [H, I], b1 [1, I], w2_t [I, H], b2 [1, H]).
    Use param_dtype=jnp.bfloat16 in production (half the HBM weight traffic).
    """
    if param_dtype is not None:
        w1 = w1.astype(param_dtype)
        b1 = b1.astype(param_dtype)
        w2 = w2.astype(param_dtype)
        b2 = b2.astype(param_dtype)
    I, H = w1.shape
    assert w2.shape == (H, I) and b1.shape == (I,) and b2.shape == (H,)
    return (jnp.transpose(w1), b1.reshape(1, I),
            jnp.transpose(w2), b2.reshape(1, H))


def phi_mlp(hidden_states, w1_t, b1_2d, w2_t, b2_2d, *,
            hidden_act="gelu_new", block_m=None, block_i=None):
    """hidden_states: [S, H]; params as returned by prepare_phi_mlp_params."""
    S, H = hidden_states.shape
    Hw, I = w1_t.shape
    assert Hw == H and w2_t.shape == (I, H)
    assert b1_2d.shape == (1, I) and b2_2d.shape == (1, H)

    # Activation selection mirrors the PyTorch module.
    use_tanh = hidden_act in ("gelu_fast", "gelu_pytorch_tanh")

    x_bytes = jnp.dtype(hidden_states.dtype).itemsize
    w_bytes = jnp.dtype(w1_t.dtype).itemsize
    o_bytes = x_bytes

    cap = _vmem_capacity_bytes()
    budget = int(cap * 0.8)            # leave headroom for compiler scratch
    block_m, block_i = _auto_tiles(S, H, I, x_bytes, w_bytes, o_bytes,
                                   block_m, block_i, budget)
    assert I % block_i == 0
    assert block_i == I or block_i % 128 == 0, "block_i must be lane-aligned"

    vmem_limit = int(min(cap,
                         _footprint_bytes(block_m, block_i, H,
                                          x_bytes, w_bytes, o_bytes)
                         + (16 << 20)))

    kernel = functools.partial(phi_mlp_kernel, use_tanh=use_tanh)
    # Ragged S handled by Pallas block masking — no host-side pad / slice.
    grid = (pl.cdiv(S, block_m), I // block_i)

    return pl.pallas_call(
        kernel,
        out_shape=jax.ShapeDtypeStruct((S, H), hidden_states.dtype),
        grid_spec=pltpu.PrefetchScalarGridSpec(
            num_scalar_prefetch=0,
            grid=grid,
            in_specs=[
                pl.BlockSpec((block_m, H), lambda i, k: (i, 0)),    # x row tile
                pl.BlockSpec((H, block_i), lambda i, k: (0, k)),    # W1^T I-slab
                pl.BlockSpec((1, block_i), lambda i, k: (0, k)),    # b1 I-slab
                pl.BlockSpec((block_i, H), lambda i, k: (k, 0)),    # W2^T I-slab
                pl.BlockSpec((1, H),       lambda i, k: (0, 0)),    # b2 (resident)
            ],
            out_specs=pl.BlockSpec((block_m, H), lambda i, k: (i, 0)),
            scratch_shapes=[pltpu.VMEM((block_m, H), jnp.float32)],
        ),
        compiler_params=pltpu.CompilerParams(
            dimension_semantics=("parallel", "arbitrary"),
            vmem_limit_bytes=vmem_limit,
        ),
    )(hidden_states, w1_t, b1_2d, w2_t, b2_2d)


def phi_mlp_ref(hidden_states, w1, b1, w2, b2, *, hidden_act="gelu_new"):
    x = hidden_states.astype(jnp.float32)
    h = jnp.dot(x, w1.astype(jnp.float32).T, precision=lax.Precision.HIGHEST)
    h = h + b1.astype(jnp.float32)
    if hidden_act in ("gelu_fast", "gelu_pytorch_tanh"):
        g = _gelu_tanh(h)
    else:
        g = _gelu_exact(h)
    y = jnp.dot(g, w2.astype(jnp.float32).T, precision=lax.Precision.HIGHEST)
    y = y + b2.astype(jnp.float32)
    return y.astype(hidden_states.dtype)


if __name__ == "__main__":
    # Small, TPU-friendly shapes consistent with a Phi MLP block (I = 4*H).
    seq = 200          # ragged on purpose (exercises the masked tail tile)
    hidden = 256       # config.hidden_size
    inter = 1024       # config.intermediate_size
    hidden_act = "gelu_new"   # maps to exact (erf) GELU in this module

    key = jax.random.PRNGKey(0)
    k_x, k_w1, k_b1, k_w2, k_b2 = jax.random.split(key, 5)

    x = jax.random.normal(k_x, (seq, hidden), dtype=jnp.float32)
    # PyTorch nn.Linear weight layout: [out_features, in_features]
    w1 = jax.random.normal(k_w1, (inter, hidden), dtype=jnp.float32) * 0.02
    b1 = jax.random.normal(k_b1, (inter,), dtype=jnp.float32) * 0.02
    w2 = jax.random.normal(k_w2, (hidden, inter), dtype=jnp.float32) * 0.02
    b2 = jax.random.normal(k_b2, (hidden,), dtype=jnp.float32) * 0.02

    ref = phi_mlp_ref(x, w1, b1, w2, b2, hidden_act=hidden_act)

    # ---- f32 debug path (auto tiles: single M tile + single I slab) ----
    params_f32 = prepare_phi_mlp_params(w1, b1, w2, b2)
    out = jax.block_until_ready(phi_mlp(x, *params_f32, hidden_act=hidden_act))
    assert out.shape == (seq, hidden)
    assert jnp.allclose(out, ref, atol=2e-3, rtol=2e-3), "f32 mismatch vs reference"

    # ---- f32 path with small explicit tiles (exercises multi M tiles and the
    #      multi-step I reduction / accumulator init+finalize logic) ----
    out_small = jax.block_until_ready(
        phi_mlp(x, *params_f32, hidden_act=hidden_act, block_m=128, block_i=256))
    assert jnp.allclose(out_small, ref, atol=2e-3, rtol=2e-3), "tiled f32 mismatch"

    # ---- bf16 production path (bf16 MXU operands, f32 accumulation) ----
    params_bf16 = prepare_phi_mlp_params(w1, b1, w2, b2, param_dtype=jnp.bfloat16)
    x_bf16 = x.astype(jnp.bfloat16)
    out_bf16 = jax.block_until_ready(
        phi_mlp(x_bf16, *params_bf16, hidden_act=hidden_act))
    ref_bf16 = phi_mlp_ref(x_bf16,
                           w1.astype(jnp.bfloat16), b1.astype(jnp.bfloat16),
                           w2.astype(jnp.bfloat16), b2.astype(jnp.bfloat16),
                           hidden_act=hidden_act)
    assert out_bf16.shape == (seq, hidden)
    assert jnp.allclose(out_bf16.astype(jnp.float32), ref_bf16.astype(jnp.float32),
                        atol=3e-2, rtol=3e-2), "bf16 mismatch vs reference"

    print("KERNEL_OK")
</pallas_src>

<mosaic_0001>
module attributes {stable_mosaic.version = 11 : i64} {
  func.func @phi_mlp_kernel(%arg0: i32, %arg1: i32, %arg2: memref<256x256xf32, #tpu.memory_space<vmem>>, %arg3: memref<256x1024xf32, #tpu.memory_space<vmem>>, %arg4: memref<1x1024xf32, #tpu.memory_space<vmem>>, %arg5: memref<1024x256xf32, #tpu.memory_space<vmem>>, %arg6: memref<1x256xf32, #tpu.memory_space<vmem>>, %arg7: memref<256x256xf32, #tpu.memory_space<vmem>>, %arg8: memref<256x256xf32, #tpu.memory_space<vmem>>) attributes {dimension_semantics = [#tpu.dimension_semantics<parallel>, #tpu.dimension_semantics<arbitrary>], iteration_bounds = array<i64: 1, 1>, scalar_prefetch = 0 : i64, scratch_operands = 1 : i64, tpu.core_type = #tpu.core_type<tc>, window_params = [{transform_indices = @transform_0, window_bounds = array<i64: 256, 256>}, {transform_indices = @transform_1, window_bounds = array<i64: 256, 1024>}, {transform_indices = @transform_2, window_bounds = array<i64: 1, 1024>}, {transform_indices = @transform_3, window_bounds = array<i64: 1024, 256>}, {pipeline_mode = #tpu.pipeline_mode<synchronous>, transform_indices = @transform_4, window_bounds = array<i64: 1, 256>}, {transform_indices = @transform_5, window_bounds = array<i64: 256, 256>}]} {
    %c0_i32 = arith.constant 0 : i32
    %0 = arith.cmpi eq, %arg1, %c0_i32 : i32
    %1 = arith.extui %0 : i1 to i32
    %c0_i32_0 = arith.constant 0 : i32
    %2 = arith.cmpi ne, %1, %c0_i32_0 : i32
    scf.if %2 {
      %c0_18 = arith.constant 0 : index
      %c0_19 = arith.constant 0 : index
      %25 = vector.load %arg6[%c0_18, %c0_19] : memref<1x256xf32, #tpu.memory_space<vmem>>, vector<1x256xf32>
      %26 = vector.shape_cast %25 : vector<1x256xf32> to vector<1x256xf32>
      %27 = vector.broadcast %26 : vector<1x256xf32> to vector<256x256xf32>
      %c0_20 = arith.constant 0 : index
      %c0_21 = arith.constant 0 : index
      %28 = vector.load %arg8[%c0_20, %c0_21] : memref<256x256xf32, #tpu.memory_space<vmem>>, vector<256x256xf32>
      tpu.vector_store %arg8[%c0_20, %c0_21], %27 {strides = array<i32>} : memref<256x256xf32, #tpu.memory_space<vmem>>, vector<256x256xf32>,
    } else {
    }
    %c0 = arith.constant 0 : index
    %c0_1 = arith.constant 0 : index
    %3 = vector.load %arg2[%c0, %c0_1] : memref<256x256xf32, #tpu.memory_space<vmem>>, vector<256x256xf32>
    %c0_2 = arith.constant 0 : index
    %c0_3 = arith.constant 0 : index
    %4 = vector.load %arg3[%c0_2, %c0_3] : memref<256x1024xf32, #tpu.memory_space<vmem>>, vector<256x1024xf32>
    %cst = arith.constant dense<0.000000e+00> : vector<256x1024xf32>
    %5 = tpu.matmul %3, %4, %cst {dimension_numbers = #tpu.dot_dimension_numbers<[1], [0], [0], [1], [0, 0, 1, 1], [], []>} : vector<256x256xf32>, vector<256x1024xf32>, vector<256x1024xf32> -> vector<256x1024xf32>
    %c0_4 = arith.constant 0 : index
    %c0_5 = arith.constant 0 : index
    %6 = vector.load %arg4[%c0_4, %c0_5] : memref<1x1024xf32, #tpu.memory_space<vmem>>, vector<1x1024xf32>
    %7 = vector.broadcast %6 : vector<1x1024xf32> to vector<256x1024xf32>
    %8 = arith.addf %5, %7 : vector<256x1024xf32>
    %cst_6 = arith.constant 5.000000e-01 : f32
    %9 = vector.broadcast %cst_6 : f32 to vector<256x1024xf32>
    %10 = arith.mulf %9, %8 : vector<256x1024xf32>
    %cst_7 = arith.constant 0.707106769 : f32
    %11 = vector.broadcast %cst_7 : f32 to vector<256x1024xf32>
    %12 = arith.mulf %8, %11 : vector<256x1024xf32>
    %13 = math.erf %12 : vector<256x1024xf32>
    %cst_8 = arith.constant 1.000000e+00 : f32
    %14 = vector.broadcast %cst_8 : f32 to vector<256x1024xf32>
    %15 = arith.addf %14, %13 : vector<256x1024xf32>
    %16 = arith.mulf %10, %15 : vector<256x1024xf32>
    %c0_9 = arith.constant 0 : index
    %c0_10 = arith.constant 0 : index
    %17 = vector.load %arg8[%c0_9, %c0_10] : memref<256x256xf32, #tpu.memory_space<vmem>>, vector<256x256xf32>
    %c0_11 = arith.constant 0 : index
    %c0_12 = arith.constant 0 : index
    %18 = vector.load %arg5[%c0_11, %c0_12] : memref<1024x256xf32, #tpu.memory_space<vmem>>, vector<1024x256xf32>
    %cst_13 = arith.constant dense<0.000000e+00> : vector<256x256xf32>
    %19 = tpu.matmul %16, %18, %cst_13 {dimension_numbers = #tpu.dot_dimension_numbers<[1], [0], [0], [1], [0, 0, 1, 1], [], []>} : vector<256x1024xf32>, vector<1024x256xf32>, vector<256x256xf32> -> vector<256x256xf32>
    %20 = arith.addf %17, %19 : vector<256x256xf32>
    %c0_14 = arith.constant 0 : index
    %c0_15 = arith.constant 0 : index
    %21 = vector.load %arg8[%c0_14, %c0_15] : memref<256x256xf32, #tpu.memory_space<vmem>>, vector<256x256xf32>
    tpu.vector_store %arg8[%c0_14, %c0_15], %20 {strides = array<i32>} : memref<256x256xf32, #tpu.memory_space<vmem>>, vector<256x256xf32>,
    %c0_i32_16 = arith.constant 0 : i32
    %22 = arith.cmpi eq, %arg1, %c0_i32_16 : i32
    %23 = arith.extui %22 : i1 to i32
    %c0_i32_17 = arith.constant 0 : i32
    %24 = arith.cmpi ne, %23, %c0_i32_17 : i32
    scf.if %24 {
      %c0_18 = arith.constant 0 : index
      %c0_19 = arith.constant 0 : index
      %25 = vector.load %arg8[%c0_18, %c0_19] : memref<256x256xf32, #tpu.memory_space<vmem>>, vector<256x256xf32>
      %c0_20 = arith.constant 0 : index
      %c0_21 = arith.constant 0 : index
      %26 = vector.load %arg7[%c0_20, %c0_21] : memref<256x256xf32, #tpu.memory_space<vmem>>, vector<256x256xf32>
      tpu.vector_store %arg7[%c0_20, %c0_21], %25 {strides = array<i32>} : memref<256x256xf32, #tpu.memory_space<vmem>>, vector<256x256xf32>,
    } else {
    }
    return
  }
  func.func @transform_0(%arg0: i32, %arg1: i32) -> (i32, i32) {
    %c0_i32 = arith.constant 0 : i32
    %c0_i32_0 = arith.constant 0 : i32
    return %arg0, %c0_i32 : i32, i32
  }
  func.func @transform_1(%arg0: i32, %arg1: i32) -> (i32, i32) {
    %c0_i32 = arith.constant 0 : i32
    %c0_i32_0 = arith.constant 0 : i32
    return %c0_i32, %arg1 : i32, i32
  }
  func.func @transform_2(%arg0: i32, %arg1: i32) -> (i32, i32) {
    %c0_i32 = arith.constant 0 : i32
    %c0_i32_0 = arith.constant 0 : i32
    return %c0_i32, %arg1 : i32, i32
  }
  func.func @transform_3(%arg0: i32, %arg1: i32) -> (i32, i32) {
    %c0_i32 = arith.constant 0 : i32
    %c0_i32_0 = arith.constant 0 : i32
    return %arg1, %c0_i32 : i32, i32
  }
  func.func @transform_4(%arg0: i32, %arg1: i32) -> (i32, i32) {
    %c0_i32 = arith.constant 0 : i32
    %c0_i32_0 = arith.constant 0 : i32
    %c0_i32_1 = arith.constant 0 : i32
    return %c0_i32, %c0_i32_0 : i32, i32
  }
  func.func @transform_5(%arg0: i32, %arg1: i32) -> (i32, i32) {
    %c0_i32 = arith.constant 0 : i32
    %c0_i32_0 = arith.constant 0 : i32
    return %arg0, %c0_i32 : i32, i32
  }
}

</mosaic_0001>

<llo_original>
// kernel: tpu_custom_call.1
$region0: #{tpu_custom_call.1}
  #allocation0 [shape = 'u32[]', space=smem, size = 0x4, offset = 0x4, fixed_abs, tag = 'smem constant byte address 0x4 - core index']
  #allocation1 [shape = 'u32[144,128]{1,0:T(1,128)}', space=vmem, size = 0x12000, scoped, tag = 'internal scratch']
  #allocation2 [shape = 'f32[256,256]{1,0:T(8,128)}', space=vmem, size = 0x40000, scoped, tag = 'scratch operand']
  %s0 = inlined_call_operand.hbm [shape: f32[200,256], index: 0, kind: input, shape index: {}]
  %s1 = inlined_call_operand.hbm [shape: f32[256,1024], index: 1, kind: input, shape index: {}]
  %s2 = inlined_call_operand.hbm [shape: f32[1,1024], index: 2, kind: input, shape index: {}]
  %s3 = inlined_call_operand.hbm [shape: f32[1024,256], index: 3, kind: input, shape index: {}]
  %s4 = inlined_call_operand.vmem [shape: f32[1,256], index: 4, kind: input, shape index: {}]
  %s5 = inlined_call_operand.hbm [shape: f32[200,256], index: 5, kind: output, shape index: {}]
  %s6 = sld [smem:[#allocation0]]
  $region54: #{tpu_custom_call.1} parent=0
    _
  %s8 = ssub.s32 1, %s6
  %s9 = scalar_select 0, %s8, %s6
  $region1: #{tpu_custom_call.1} parent=0
    #allocation3 [shape = 'u8[262144]{0}', space=vmem, size = 0x40000, scoped, tag = 'input window, operand 0, single buffered']
    #allocation4 [shape = 's32[1]{0}', space=sflag, size = 0x4, scoped, tag = 'scoped memory for tpu_custom_call.1']
    #allocation5 [shape = 's32[1]{0}', space=sflag, size = 0x4, scoped, tag = 'scoped memory for tpu_custom_call.1']
    #allocation6 [shape = 'u8[1048576]{0}', space=vmem, size = 0x100000, scoped, tag = 'input window, operand 1, single buffered']
    #allocation7 [shape = 's32[1]{0}', space=sflag, size = 0x4, scoped, tag = 'scoped memory for tpu_custom_call.1']
    #allocation8 [shape = 'u8[4096]{0}', space=vmem, size = 0x1000, scoped, tag = 'input window, operand 2, single buffered']
    #allocation9 [shape = 'u8[1048576]{0}', space=vmem, size = 0x100000, scoped, tag = 'input window, operand 3, single buffered']
    #allocation10 [shape = 's32[1]{0}', space=sflag, size = 0x4, scoped, tag = 'scoped memory for tpu_custom_call.1']
    #allocation11 [shape = 'u8[262144]{0}', space=vmem, size = 0x40000, scoped, tag = 'output window, operand 0, single buffered']
    %10 = vsyncpa [#allocation4], 0
    %11 = vsyncpa [#allocation7], 0
    %12 = vsyncpa [#allocation10], 0
    %13 = vsyncpa [#allocation5], 0
    // Predicated region
    $region2: #{tpu_custom_call.1} parent=1 // pred_check
      _
    $region3: #{tpu_custom_call.1} parent=1 // pred_check_branch
      %15 = sbr.rel (0) target = $region5
    $region4: #{tpu_custom_call.1} parent=1 // pred_region
      %s17 = ssub.s32 8192, 6400
      %18 = vsyncadd [#allocation4], %s17
      %s19 = sshll.u32 [#allocation3], 4
      %s20 = int_to_ptr.vmem [resolvable:$true] %s19
      %25 = dma.hbm_to_vmem [thread:$0]  %s0, 6400, %s20, [#allocation4], 256, 256, 16
    $region5: #{tpu_custom_call.1} parent=1 // pred_fallthru
      _
    // Predicated region
    $region6: #{tpu_custom_call.1} parent=1 // pred_check
      _
    $region7: #{tpu_custom_call.1} parent=1 // pred_check_branch
      %27 = sbr.rel (0) target = $region9
    $region8: #{tpu_custom_call.1} parent=1 // pred_region
      %s29 = ssub.s32 32768, 32768
      %30 = vsyncadd [#allocation7], %s29
      %s31 = sshll.u32 [#allocation6], 4
      %s32 = int_to_ptr.vmem [resolvable:$true] %s31
      %37 = dma.hbm_to_vmem [thread:$0]  %s1, 32768, %s32, [#allocation7], 1024, 1024, 64
    $region9: #{tpu_custom_call.1} parent=1 // pred_fallthru
      _
    // Predicated region
    $region10: #{tpu_custom_call.1} parent=1 // pred_check
      _
    $region11: #{tpu_custom_call.1} parent=1 // pred_check_branch
      %39 = sbr.rel (0) target = $region13
    $region12: #{tpu_custom_call.1} parent=1 // pred_region
      %s41 = ssub.s32 128, 128
      %42 = vsyncadd [#allocation7], %s41
      %s44 = sshll.u32 [#allocation8], 4
      %s45 = int_to_ptr.vmem [resolvable:$true] %s44
      %47 = dma.hbm_to_vmem [thread:$0]  %s2, 128, %s45, [#allocation7]
    $region13: #{tpu_custom_call.1} parent=1 // pred_fallthru
      _
    // Predicated region
    $region14: #{tpu_custom_call.1} parent=1 // pred_check
      _
    $region15: #{tpu_custom_call.1} parent=1 // pred_check_branch
      %49 = sbr.rel (0) target = $region17
    $region16: #{tpu_custom_call.1} parent=1 // pred_region
      %s51 = ssub.s32 32768, 32768
      %52 = vsyncadd [#allocation10], %s51
      %s53 = sshll.u32 [#allocation9], 4
      %s54 = int_to_ptr.vmem [resolvable:$true] %s53
      %59 = dma.hbm_to_vmem [thread:$0]  %s3, 32768, %s54, [#allocation10], 256, 256, 16
    $region17: #{tpu_custom_call.1} parent=1 // pred_fallthru
      _
    // Predicated region
    $region18: #{tpu_custom_call.1} parent=1 // pred_check
      _
    $region19: #{tpu_custom_call.1} parent=1 // pred_check_branch
      %61 = sbr.rel (0) target = $region21
    $region20: #{tpu_custom_call.1} parent=1 // pred_region
      _
    $region21: #{tpu_custom_call.1} parent=1 // pred_fallthru
      _
    // Predicated region
    $region22: #{tpu_custom_call.1} parent=1 // pred_check
      _
    $region23: #{tpu_custom_call.1} parent=1 // pred_check_branch
      %63 = sbr.rel (0) target = $region25
    $region24: #{tpu_custom_call.1} parent=1 // pred_region
      %64 = dma.done [#allocation4], 8192
    $region25: #{tpu_custom_call.1} parent=1 // pred_fallthru
      _
    // Predicated region
    $region26: #{tpu_custom_call.1} parent=1 // pred_check
      _
    $region27: #{tpu_custom_call.1} parent=1 // pred_check_branch
      %66 = sbr.rel (0) target = $region29
    $region28: #{tpu_custom_call.1} parent=1 // pred_region
      %67 = dma.done [#allocation7], 32768
    $region29: #{tpu_custom_call.1} parent=1 // pred_fallthru
      _
    // Predicated region
    $region30: #{tpu_custom_call.1} parent=1 // pred_check
      _
    $region31: #{tpu_custom_call.1} parent=1 // pred_check_branch
      %69 = sbr.rel (0) target = $region33
    $region32: #{tpu_custom_call.1} parent=1 // pred_region
      %70 = dma.done [#allocation7], 128
    $region33: #{tpu_custom_call.1} parent=1 // pred_fallthru
      _
    // Predicated region
    $region34: #{tpu_custom_call.1} parent=1 // pred_check
      _
    $region35: #{tpu_custom_call.1} parent=1 // pred_check_branch
      %72 = sbr.rel (0) target = $region37
    $region36: #{tpu_custom_call.1} parent=1 // pred_region
      %73 = dma.done [#allocation10], 32768
    $region37: #{tpu_custom_call.1} parent=1 // pred_fallthru
      _
    %p74 = scmp.eq.s32.totalorder 0, 0
    // Predicated region
    $region38: #{tpu_custom_call.1} parent=1 // pred_check
      %p75 = pneg %p74
    $region39: #{tpu_custom_call.1} parent=1 // pred_check_branch
      %77 = sbr.rel (%p75) target = $region41
    $region40: #{tpu_custom_call.1} parent=1 // pred_region
      %v78 = vld [vmem:[%s4] sm:$0x3]
      %v80 = vlaneseq
      %v81 = vshrl.u32 %v80, 7
      %v82 = vsub.s32 0, %v81
      %v83 = vrot.slane %v78, %v82
      %v84 = vlaneseq
      %v85 = vshrl.u32 %v84, 7
      %v86 = vsub.s32 1, %v85
      %v87 = vrot.slane %v78, %v86
      %90 = vst [vmem:[#allocation2] sm:$0xff] %v83
      %91 = vst [vmem:[#allocation2 + $0x8] sm:$0xff] %v87
      %92 = vst [vmem:[#allocation2 + $0x10] sm:$0xff] %v83
      %93 = vst [vmem:[#allocation2 + $0x18] sm:$0xff] %v87
      %94 = vst [vmem:[#allocation2 + $0x20] sm:$0xff] %v83
      %95 = vst [vmem:[#allocation2 + $0x28] sm:$0xff] %v87
      %96 = vst [vmem:[#allocation2 + $0x30] sm:$0xff] %v83
      %97 = vst [vmem:[#allocation2 + $0x38] sm:$0xff] %v87
      %98 = vst [vmem:[#allocation2 + $0x40] sm:$0xff] %v83
      %99 = vst [vmem:[#allocation2 + $0x48] sm:$0xff] %v87
      %100 = vst [vmem:[#allocation2 + $0x50] sm:$0xff] %v83
      %101 = vst [vmem:[#allocation2 + $0x58] sm:$0xff] %v87
      %102 = vst [vmem:[#allocation2 + $0x60] sm:$0xff] %v83
      %103 = vst [vmem:[#allocation2 + $0x68] sm:$0xff] %v87
      %104 = vst [vmem:[#allocation2 + $0x70] sm:$0xff] %v83
      %105 = vst [vmem:[#allocation2 + $0x78] sm:$0xff] %v87
      %106 = vst [vmem:[#allocation2 + $0x80] sm:$0xff] %v83
      %107 = vst [vmem:[#allocation2 + $0x88] sm:$0xff] %v87
      %108 = vst [vmem:[#allocation2 + $0x90] sm:$0xff] %v83
      %109 = vst [vmem:[#allocation2 + $0x98] sm:$0xff] %v87
      %110 = vst [vmem:[#allocation2 + $0xa0] sm:$0xff] %v83
      %111 = vst [vmem:[#allocation2 + $0xa8] sm:$0xff] %v87
      %112 = vst [vmem:[#allocation2 + $0xb0] sm:$0xff] %v83
      %113 = vst [vmem:[#allocation2 + $0xb8] sm:$0xff] %v87
      %114 = vst [vmem:[#allocation2 + $0xc0] sm:$0xff] %v83
      %115 = vst [vmem:[#allocation2 + $0xc8] sm:$0xff] %v87
      %116 = vst [vmem:[#allocation2 + $0xd0] sm:$0xff] %v83
      %117 = vst [vmem:[#allocation2 + $0xd8] sm:$0xff] %v87
      %118 = vst [vmem:[#allocation2 + $0xe0] sm:$0xff] %v83
      %119 = vst [vmem:[#allocation2 + $0xe8] sm:$0xff] %v87
      %120 = vst [vmem:[#allocation2 + $0xf0] sm:$0xff] %v83
      %121 = vst [vmem:[#allocation2 + $0xf8] sm:$0xff] %v87
      %122 = vst [vmem:[#allocation2 + $0x100] sm:$0xff] %v83
      %123 = vst [vmem:[#allocation2 + $0x108] sm:$0xff] %v87
      %124 = vst [vmem:[#allocation2 + $0x110] sm:$0xff] %v83
      %125 = vst [vmem:[#allocation2 + $0x118] sm:$0xff] %v87
      %126 = vst [vmem:[#allocation2 + $0x120] sm:$0xff] %v83
      %127 = vst [vmem:[#allocation2 + $0x128] sm:$0xff] %v87
      %128 = vst [vmem:[#allocation2 + $0x130] sm:$0xff] %v83
      %129 = vst [vmem:[#allocation2 + $0x138] sm:$0xff] %v87
      %130 = vst [vmem:[#allocation2 + $0x140] sm:$0xff] %v83
      %131 = vst [vmem:[#allocation2 + $0x148] sm:$0xff] %v87
      %132 = vst [vmem:[#allocation2 + $0x150] sm:$0xff] %v83
      %133 = vst [vmem:[#allocation2 + $0x158] sm:$0xff] %v87
      %134 = vst [vmem:[#allocation2 + $0x160] sm:$0xff] %v83
      %135 = vst [vmem:[#allocation2 + $0x168] sm:$0xff] %v87
      %136 = vst [vmem:[#allocation2 + $0x170] sm:$0xff] %v83
      %137 = vst [vmem:[#allocation2 + $0x178] sm:$0xff] %v87
      %138 = vst [vmem:[#allocation2 + $0x180] sm:$0xff] %v83
      %139 = vst [vmem:[#allocation2 + $0x188] sm:$0xff] %v87
      %140 = vst [vmem:[#allocation2 + $0x190] sm:$0xff] %v83
      %141 = vst [vmem:[#allocation2 + $0x198] sm:$0xff] %v87
      %142 = vst [vmem:[#allocation2 + $0x1a0] sm:$0xff] %v83
      %143 = vst [vmem:[#allocation2 + $0x1a8] sm:$0xff] %v87
      %144 = vst [vmem:[#allocation2 + $0x1b0] sm:$0xff] %v83
      %145 = vst [vmem:[#allocation2 + $0x1b8] sm:$0xff] %v87
      %146 = vst [vmem:[#allocation2 + $0x1c0] sm:$0xff] %v83
      %147 = vst [vmem:[#allocation2 + $0x1c8] sm:$0xff] %v87
      %148 = vst [vmem:[#allocation2 + $0x1d0] sm:$0xff] %v83
      %149 = vst [vmem:[#allocation2 + $0x1d8] sm:$0xff] %v87
      %150 = vst [vmem:[#allocation2 + $0x1e0] sm:$0xff] %v83
      %151 = vst [vmem:[#allocation2 + $0x1e8] sm:$0xff] %v87
      %152 = vst [vmem:[#allocation2 + $0x1f0] sm:$0xff] %v83
      %153 = vst [vmem:[#allocation2 + $0x1f8] sm:$0xff] %v87
    $region41: #{tpu_custom_call.1} parent=1 // pred_fallthru
      _
    %v154 = vld [vmem:[#allocation3] sm:$0xff]
    %v155 = vld [vmem:[#allocation3 + $0x8] sm:$0xff]
    %v156 = vld [vmem:[#allocation3 + $0x10] sm:$0xff]
    %v157 = vld [vmem:[#allocation3 + $0x18] sm:$0xff]
    %v158 = vld [vmem:[#allocation3 + $0x20] sm:$0xff]
    %v159 = vld [vmem:[#allocation3 + $0x28] sm:$0xff]
    %v160 = vld [vmem:[#allocation3 + $0x30] sm:$0xff]
    %v161 = vld [vmem:[#allocation3 + $0x38] sm:$0xff]
    %v162 = vld [vmem:[#allocation3 + $0x40] sm:$0xff]
    %v163 = vld [vmem:[#allocation3 + $0x48] sm:$0xff]
    %v164 = vld [vmem:[#allocation3 + $0x50] sm:$0xff]
    %v165 = vld [vmem:[#allocation3 + $0x58] sm:$0xff]
    %v166 = vld [vmem:[#allocation3 + $0x60] sm:$0xff]
    %v167 = vld [vmem:[#allocation3 + $0x68] sm:$0xff]
    %v168 = vld [vmem:[#allocation3 + $0x70] sm:$0xff]
    %v169 = vld [vmem:[#allocation3 + $0x78] sm:$0xff]
    %v170 = vld [vmem:[#allocation3 + $0x80] sm:$0xff]
    %v171 = vld [vmem:[#allocation3 + $0x88] sm:$0xff]
    %v172 = vld [vmem:[#allocation3 + $0x90] sm:$0xff]
    %v173 = vld [vmem:[#allocation3 + $0x98] sm:$0xff]
    %v174 = vld [vmem:[#allocation3 + $0xa0] sm:$0xff]
    %v175 = vld [vmem:[#allocation3 + $0xa8] sm:$0xff]
    %v176 = vld [vmem:[#allocation3 + $0xb0] sm:$0xff]
    %v177 = vld [vmem:[#allocation3 + $0xb8] sm:$0xff]
    %v178 = vld [vmem:[#allocation3 + $0xc0] sm:$0xff]
    %v179 = vld [vmem:[#allocation3 + $0xc8] sm:$0xff]
    %v180 = vld [vmem:[#allocation3 + $0xd0] sm:$0xff]
    %v181 = vld [vmem:[#allocation3 + $0xd8] sm:$0xff]
    %v182 = vld [vmem:[#allocation3 + $0xe0] sm:$0xff]
    %v183 = vld [vmem:[#allocation3 + $0xe8] sm:$0xff]
    %v184 = vld [vmem:[#allocation3 + $0xf0] sm:$0xff]
    %v185 = vld [vmem:[#allocation3 + $0xf8] sm:$0xff]
    %v186 = vld [vmem:[#allocation3 + $0x100] sm:$0xff]
    %v187 = vld [vmem:[#allocation3 + $0x108] sm:$0xff]
    %v188 = vld [vmem:[#allocation3 + $0x110] sm:$0xff]
    %v189 = vld [vmem:[#allocation3 + $0x118] sm:$0xff]
    %v190 = vld [vmem:[#allocation3 + $0x120] sm:$0xff]
    %v191 = vld [vmem:[#allocation3 + $0x128] sm:$0xff]
    %v192 = vld [vmem:[#allocation3 + $0x130] sm:$0xff]
    %v193 = vld [vmem:[#allocation3 + $0x138] sm:$0xff]
    %v194 = vld [vmem:[#allocation3 + $0x140] sm:$0xff]
    %v195 = vld [vmem:[#allocation3 + $0x148] sm:$0xff]
    %v196 = vld [vmem:[#allocation3 + $0x150] sm:$0xff]
    %v197 = vld [vmem:[#allocation3 + $0x158] sm:$0xff]
    %v198 = vld [vmem:[#allocation3 + $0x160] sm:$0xff]
    %v199 = vld [vmem:[#allocation3 + $0x168] sm:$0xff]
    %v200 = vld [vmem:[#allocation3 + $0x170] sm:$0xff]
    %v201 = vld [vmem:[#allocation3 + $0x178] sm:$0xff]
    %v202 = vld [vmem:[#allocation3 + $0x180] sm:$0xff]
    %v203 = vld [vmem:[#allocation3 + $0x188] sm:$0xff]
    %v204 = vld [vmem:[#allocation3 + $0x190] sm:$0xff]
    %v205 = vld [vmem:[#allocation3 + $0x198] sm:$0xff]
    %v206 = vld [vmem:[#allocation3 + $0x1a0] sm:$0xff]
    %v207 = vld [vmem:[#allocation3 + $0x1a8] sm:$0xff]
    %v208 = vld [vmem:[#allocation3 + $0x1b0] sm:$0xff]
    %v209 = vld [vmem:[#allocation3 + $0x1b8] sm:$0xff]
    %v210 = vld [vmem:[#allocation3 + $0x1c0] sm:$0xff]
    %v211 = vld [vmem:[#allocation3 + $0x1c8] sm:$0xff]
    %v212 = vld [vmem:[#allocation3 + $0x1d0] sm:$0xff]
    %v213 = vld [vmem:[#allocation3 + $0x1d8] sm:$0xff]
    %v214 = vld [vmem:[#allocation3 + $0x1e0] sm:$0xff]
    %v215 = vld [vmem:[#allocation3 + $0x1e8] sm:$0xff]
    %v216 = vld [vmem:[#allocation3 + $0x1f0] sm:$0xff]
    %v217 = vld [vmem:[#allocation3 + $0x1f8] sm:$0xff]
    %v218 = vld [vmem:[#allocation6] sm:$0xff]
    %v219 = vld [vmem:[#allocation6 + $0x8] sm:$0xff]
    %v220 = vld [vmem:[#allocation6 + $0x10] sm:$0xff]
    %v221 = vld [vmem:[#allocation6 + $0x18] sm:$0xff]
    %v222 = vld [vmem:[#allocation6 + $0x20] sm:$0xff]
    %v223 = vld [vmem:[#allocation6 + $0x28] sm:$0xff]
    %v224 = vld [vmem:[#allocation6 + $0x30] sm:$0xff]
    %v225 = vld [vmem:[#allocation6 + $0x38] sm:$0xff]
    %v226 = vld [vmem:[#allocation6 + $0x40] sm:$0xff]
    %v227 = vld [vmem:[#allocation6 + $0x48] sm:$0xff]
    %v228 = vld [vmem:[#allocation6 + $0x50] sm:$0xff]
    %v229 = vld [vmem:[#allocation6 + $0x58] sm:$0xff]
    %v230 = vld [vmem:[#allocation6 + $0x60] sm:$0xff]
    %v231 = vld [vmem:[#allocation6 + $0x68] sm:$0xff]
    %v232 = vld [vmem:[#allocation6 + $0x70] sm:$0xff]
    %v233 = vld [vmem:[#allocation6 + $0x78] sm:$0xff]
    %v234 = vld [vmem:[#allocation6 + $0x80] sm:$0xff]
    %v235 = vld [vmem:[#allocation6 + $0x88] sm:$0xff]
    %v236 = vld [vmem:[#allocation6 + $0x90] sm:$0xff]
    %v237 = vld [vmem:[#allocation6 + $0x98] sm:$0xff]
    %v238 = vld [vmem:[#allocation6 + $0xa0] sm:$0xff]
    %v239 = vld [vmem:[#allocation6 + $0xa8] sm:$0xff]
    %v240 = vld [vmem:[#allocation6 + $0xb0] sm:$0xff]
    %v241 = vld [vmem:[#allocation6 + $0xb8] sm:$0xff]
    %v242 = vld [vmem:[#allocation6 + $0xc0] sm:$0xff]
    %v243 = vld [vmem:[#allocation6 + $0xc8] sm:$0xff]
    %v244 = vld [vmem:[#allocation6 + $0xd0] sm:$0xff]
    %v245 = vld [vmem:[#allocation6 + $0xd8] sm:$0xff]
    %v246 = vld [vmem:[#allocation6 + $0xe0] sm:$0xff]
    %v247 = vld [vmem:[#allocation6 + $0xe8] sm:$0xff]
    %v248 = vld [vmem:[#allocation6 + $0xf0] sm:$0xff]
    %v249 = vld [vmem:[#allocation6 + $0xf8] sm:$0xff]
    %v250 = vld [vmem:[#allocation6 + $0x100] sm:$0xff]
    %v251 = vld [vmem:[#allocation6 + $0x108] sm:$0xff]
    %v252 = vld [vmem:[#allocation6 + $0x110] sm:$0xff]
    %v253 = vld [vmem:[#allocation6 + $0x118] sm:$0xff]
    %v254 = vld [vmem:[#allocation6 + $0x120] sm:$0xff]
    %v255 = vld [vmem:[#allocation6 + $0x128] sm:$0xff]
    %v256 = vld [vmem:[#allocation6 + $0x130] sm:$0xff]
    %v257 = vld [vmem:[#allocation6 + $0x138] sm:$0xff]
    %v258 = vld [vmem:[#allocation6 + $0x140] sm:$0xff]
    %v259 = vld [vmem:[#allocation6 + $0x148] sm:$0xff]
    %v260 = vld [vmem:[#allocation6 + $0x150] sm:$0xff]
    %v261 = vld [vmem:[#allocation6 + $0x158] sm:$0xff]
    %v262 = vld [vmem:[#allocation6 + $0x160] sm:$0xff]
    %v263 = vld [vmem:[#allocation6 + $0x168] sm:$0xff]
    %v264 = vld [vmem:[#allocation6 + $0x170] sm:$0xff]
    %v265 = vld [vmem:[#allocation6 + $0x178] sm:$0xff]
    %v266 = vld [vmem:[#allocation6 + $0x180] sm:$0xff]
    %v267 = vld [vmem:[#allocation6 + $0x188] sm:$0xff]
    %v268 = vld [vmem:[#allocation6 + $0x190] sm:$0xff]
    %v269 = vld [vmem:[#allocation6 + $0x198] sm:$0xff]
    %v270 = vld [vmem:[#allocation6 + $0x1a0] sm:$0xff]
    %v271 = vld [vmem:[#allocation6 + $0x1a8] sm:$0xff]
    %v272 = vld [vmem:[#allocation6 + $0x1b0] sm:$0xff]
    %v273 = vld [vmem:[#allocation6 + $0x1b8] sm:$0xff]
    %v274 = vld [vmem:[#allocation6 + $0x1c0] sm:$0xff]
    %v275 = vld [vmem:[#allocation6 + $0x1c8] sm:$0xff]
    %v276 = vld [vmem:[#allocation6 + $0x1d0] sm:$0xff]
    %v277 = vld [vmem:[#allocation6 + $0x1d8] sm:$0xff]
    %v278 = vld [vmem:[#allocation6 + $0x1e0] sm:$0xff]
    %v279 = vld [vmem:[#allocation6 + $0x1e8] sm:$0xff]
    %v280 = vld [vmem:[#allocation6 + $0x1f0] sm:$0xff]
    %v281 = vld [vmem:[#allocation6 + $0x1f8] sm:$0xff]
    %v282 = vld [vmem:[#allocation6 + $0x200] sm:$0xff]
    %v283 = vld [vmem:[#allocation6 + $0x208] sm:$0xff]
    %v284 = vld [vmem:[#allocation6 + $0x210] sm:$0xff]
    %v285 = vld [vmem:[#allocation6 + $0x218] sm:$0xff]
    %v286 = vld [vmem:[#allocation6 + $0x220] sm:$0xff]
    %v287 = vld [vmem:[#allocation6 + $0x228] sm:$0xff]
    %v288 = vld [vmem:[#allocation6 + $0x230] sm:$0xff]
    %v289 = vld [vmem:[#allocation6 + $0x238] sm:$0xff]
    %v290 = vld [vmem:[#allocation6 + $0x240] sm:$0xff]
    %v291 = vld [vmem:[#allocation6 + $0x248] sm:$0xff]
    %v292 = vld [vmem:[#allocation6 + $0x250] sm:$0xff]
    %v293 = vld [vmem:[#allocation6 + $0x258] sm:$0xff]
    %v294 = vld [vmem:[#allocation6 + $0x260] sm:$0xff]
    %v295 = vld [vmem:[#allocation6 + $0x268] sm:$0xff]
    %v296 = vld [vmem:[#allocation6 + $0x270] sm:$0xff]
    %v297 = vld [vmem:[#allocation6 + $0x278] sm:$0xff]
    %v298 = vld [vmem:[#allocation6 + $0x280] sm:$0xff]
    %v299 = vld [vmem:[#allocation6 + $0x288] sm:$0xff]
    %v300 = vld [vmem:[#allocation6 + $0x290] sm:$0xff]
    %v301 = vld [vmem:[#allocation6 + $0x298] sm:$0xff]
    %v302 = vld [vmem:[#allocation6 + $0x2a0] sm:$0xff]
    %v303 = vld [vmem:[#allocation6 + $0x2a8] sm:$0xff]
    %v304 = vld [vmem:[#allocation6 + $0x2b0] sm:$0xff]
    %v305 = vld [vmem:[#allocation6 + $0x2b8] sm:$0xff]
    %v306 = vld [vmem:[#allocation6 + $0x2c0] sm:$0xff]
    %v307 = vld [vmem:[#allocation6 + $0x2c8] sm:$0xff]
    %v308 = vld [vmem:[#allocation6 + $0x2d0] sm:$0xff]
    %v309 = vld [vmem:[#allocation6 + $0x2d8] sm:$0xff]
    %v310 = vld [vmem:[#allocation6 + $0x2e0] sm:$0xff]
    %v311 = vld [vmem:[#allocation6 + $0x2e8] sm:$0xff]
    %v312 = vld [vmem:[#allocation6 + $0x2f0] sm:$0xff]
    %v313 = vld [vmem:[#allocation6 + $0x2f8] sm:$0xff]
    %v314 = vld [vmem:[#allocation6 + $0x300] sm:$0xff]
    %v315 = vld [vmem:[#allocation6 + $0x308] sm:$0xff]
    %v316 = vld [vmem:[#allocation6 + $0x310] sm:$0xff]
    %v317 = vld [vmem:[#allocation6 + $0x318] sm:$0xff]
    %v318 = vld [vmem:[#allocation6 + $0x320] sm:$0xff]
    %v319 = vld [vmem:[#allocation6 + $0x328] sm:$0xff]
    %v320 = vld [vmem:[#allocation6 + $0x330] sm:$0xff]
    %v321 = vld [vmem:[#allocation6 + $0x338] sm:$0xff]
    %v322 = vld [vmem:[#allocation6 + $0x340] sm:$0xff]
    %v323 = vld [vmem:[#allocation6 + $0x348] sm:$0xff]
    %v324 = vld [vmem:[#allocation6 + $0x350] sm:$0xff]
    %v325 = vld [vmem:[#allocation6 + $0x358] sm:$0xff]
    %v326 = vld [vmem:[#allocation6 + $0x360] sm:$0xff]
    %v327 = vld [vmem:[#allocation6 + $0x368] sm:$0xff]
    %v328 = vld [vmem:[#allocation6 + $0x370] sm:$0xff]
    %v329 = vld [vmem:[#allocation6 + $0x378] sm:$0xff]
    %v330 = vld [vmem:[#allocation6 + $0x380] sm:$0xff]
    %v331 = vld [vmem:[#allocation6 + $0x388] sm:$0xff]
    %v332 = vld [vmem:[#allocation6 + $0x390] sm:$0xff]
    %v333 = vld [vmem:[#allocation6 + $0x398] sm:$0xff]
    %v334 = vld [vmem:[#allocation6 + $0x3a0] sm:$0xff]
    %v335 = vld [vmem:[#allocation6 + $0x3a8] sm:$0xff]
    %v336 = vld [vmem:[#allocation6 + $0x3b0] sm:$0xff]
    %v337 = vld [vmem:[#allocation6 + $0x3b8] sm:$0xff]
    %v338 = vld [vmem:[#allocation6 + $0x3c0] sm:$0xff]
    %v339 = vld [vmem:[#allocation6 + $0x3c8] sm:$0xff]
    %v340 = vld [vmem:[#allocation6 + $0x3d0] sm:$0xff]
    %v341 = vld [vmem:[#allocation6 + $0x3d8] sm:$0xff]
    %v342 = vld [vmem:[#allocation6 + $0x3e0] sm:$0xff]
    %v343 = vld [vmem:[#allocation6 + $0x3e8] sm:$0xff]
    %v344 = vld [vmem:[#allocation6 + $0x3f0] sm:$0xff]
    %v345 = vld [vmem:[#allocation6 + $0x3f8] sm:$0xff]
    %v346 = vld [vmem:[#allocation6 + $0x400] sm:$0xff]
    %v347 = vld [vmem:[#allocation6 + $0x408] sm:$0xff]
    %v348 = vld [vmem:[#allocation6 + $0x410] sm:$0xff]
    %v349 = vld [vmem:[#allocation6 + $0x418] sm:$0xff]
    %v350 = vld [vmem:[#allocation6 + $0x420] sm:$0xff]
    %v351 = vld [vmem:[#allocation6 + $0x428] sm:$0xff]
    %v352 = vld [vmem:[#allocation6 + $0x430] sm:$0xff]
    %v353 = vld [vmem:[#allocation6 + $0x438] sm:$0xff]
    %v354 = vld [vmem:[#allocation6 + $0x440] sm:$0xff]
    %v355 = vld [vmem:[#allocation6 + $0x448] sm:$0xff]
    %v356 = vld [vmem:[#allocation6 + $0x450] sm:$0xff]
    %v357 = vld [vmem:[#allocation6 + $0x458] sm:$0xff]
    %v358 = vld [vmem:[#allocation6 + $0x460] sm:$0xff]
    %v359 = vld [vmem:[#allocation6 + $0x468] sm:$0xff]
    %v360 = vld [vmem:[#allocation6 + $0x470] sm:$0xff]
    %v361 = vld [vmem:[#allocation6 + $0x478] sm:$0xff]
    %v362 = vld [vmem:[#allocation6 + $0x480] sm:$0xff]
    %v363 = vld [vmem:[#allocation6 + $0x488] sm:$0xff]
    %v364 = vld [vmem:[#allocation6 + $0x490] sm:$0xff]
    %v365 = vld [vmem:[#allocation6 + $0x498] sm:$0xff]
    %v366 = vld [vmem:[#allocation6 + $0x4a0] sm:$0xff]
    %v367 = vld [vmem:[#allocation6 + $0x4a8] sm:$0xff]
    %v368 = vld [vmem:[#allocation6 + $0x4b0] sm:$0xff]
    %v369 = vld [vmem:[#allocation6 + $0x4b8] sm:$0xff]
    %v370 = vld [vmem:[#allocation6 + $0x4c0] sm:$0xff]
    %v371 = vld [vmem:[#allocation6 + $0x4c8] sm:$0xff]
    %v372 = vld [vmem:[#allocation6 + $0x4d0] sm:$0xff]
    %v373 = vld [vmem:[#allocation6 + $0x4d8] sm:$0xff]
    %v374 = vld [vmem:[#allocation6 + $0x4e0] sm:$0xff]
    %v375 = vld [vmem:[#allocation6 + $0x4e8] sm:$0xff]
    %v376 = vld [vmem:[#allocation6 + $0x4f0] sm:$0xff]
    %v377 = vld [vmem:[#allocation6 + $0x4f8] sm:$0xff]
    %v378 = vld [vmem:[#allocation6 + $0x500] sm:$0xff]
    %v379 = vld [vmem:[#allocation6 + $0x508] sm:$0xff]
    %v380 = vld [vmem:[#allocation6 + $0x510] sm:$0xff]
    %v381 = vld [vmem:[#allocation6 + $0x518] sm:$0xff]
    %v382 = vld [vmem:[#allocation6 + $0x520] sm:$0xff]
    %v383 = vld [vmem:[#allocation6 + $0x528] sm:$0xff]
    %v384 = vld [vmem:[#allocation6 + $0x530] sm:$0xff]
    %v385 = vld [vmem:[#allocation6 + $0x538] sm:$0xff]
    %v386 = vld [vmem:[#allocation6 + $0x540] sm:$0xff]
    %v387 = vld [vmem:[#allocation6 + $0x548] sm:$0xff]
    %v388 = vld [vmem:[#allocation6 + $0x550] sm:$0xff]
    %v389 = vld [vmem:[#allocation6 + $0x558] sm:$0xff]
    %v390 = vld [vmem:[#allocation6 + $0x560] sm:$0xff]
    %v391 = vld [vmem:[#allocation6 + $0x568] sm:$0xff]
    %v392 = vld [vmem:[#allocation6 + $0x570] sm:$0xff]
    %v393 = vld [vmem:[#allocation6 + $0x578] sm:$0xff]
    %v394 = vld [vmem:[#allocation6 + $0x580] sm:$0xff]
    %v395 = vld [vmem:[#allocation6 + $0x588] sm:$0xff]
    %v396 = vld [vmem:[#allocation6 + $0x590] sm:$0xff]
    %v397 = vld [vmem:[#allocation6 + $0x598] sm:$0xff]
    %v398 = vld [vmem:[#allocation6 + $0x5a0] sm:$0xff]
    %v399 = vld [vmem:[#allocation6 + $0x5a8] sm:$0xff]
    %v400 = vld [vmem:[#allocation6 + $0x5b0] sm:$0xff]
    %v401 = vld [vmem:[#allocation6 + $0x5b8] sm:$0xff]
    %v402 = vld [vmem:[#allocation6 + $0x5c0] sm:$0xff]
    %v403 = vld [vmem:[#allocation6 + $0x5c8] sm:$0xff]
    %v404 = vld [vmem:[#allocation6 + $0x5d0] sm:$0xff]
    %v405 = vld [vmem:[#allocation6 + $0x5d8] sm:$0xff]
    %v406 = vld [vmem:[#allocation6 + $0x5e0] sm:$0xff]
    %v407 = vld [vmem:[#allocation6 + $0x5e8] sm:$0xff]
    %v408 = vld [vmem:[#allocation6 + $0x5f0] sm:$0xff]
    %v409 = vld [vmem:[#allocation6 + $0x5f8] sm:$0xff]
    %v410 = vld [vmem:[#allocation6 + $0x600] sm:$0xff]
    %v411 = vld [vmem:[#allocation6 + $0x608] sm:$0xff]
    %v412 = vld [vmem:[#allocation6 + $0x610] sm:$0xff]
    %v413 = vld [vmem:[#allocation6 + $0x618] sm:$0xff]
    %v414 = vld [vmem:[#allocation6 + $0x620] sm:$0xff]
    %v415 = vld [vmem:[#allocation6 + $0x628] sm:$0xff]
    %v416 = vld [vmem:[#allocation6 + $0x630] sm:$0xff]
    %v417 = vld [vmem:[#allocation6 + $0x638] sm:$0xff]
    %v418 = vld [vmem:[#allocation6 + $0x640] sm:$0xff]
    %v419 = vld [vmem:[#allocation6 + $0x648] sm:$0xff]
    %v420 = vld [vmem:[#allocation6 + $0x650] sm:$0xff]
    %v421 = vld [vmem:[#allocation6 + $0x658] sm:$0xff]
    %v422 = vld [vmem:[#allocation6 + $0x660] sm:$0xff]
    %v423 = vld [vmem:[#allocation6 + $0x668] sm:$0xff]
    %v424 = vld [vmem:[#allocation6 + $0x670] sm:$0xff]
    %v425 = vld [vmem:[#allocation6 + $0x678] sm:$0xff]
    %v426 = vld [vmem:[#allocation6 + $0x680] sm:$0xff]
    %v427 = vld [vmem:[#allocation6 + $0x688] sm:$0xff]
    %v428 = vld [vmem:[#allocation6 + $0x690] sm:$0xff]
    %v429 = vld [vmem:[#allocation6 + $0x698] sm:$0xff]
    %v430 = vld [vmem:[#allocation6 + $0x6a0] sm:$0xff]
    %v431 = vld [vmem:[#allocation6 + $0x6a8] sm:$0xff]
    %v432 = vld [vmem:[#allocation6 + $0x6b0] sm:$0xff]
    %v433 = vld [vmem:[#allocation6 + $0x6b8] sm:$0xff]
    %v434 = vld [vmem:[#allocation6 + $0x6c0] sm:$0xff]
    %v435 = vld [vmem:[#allocation6 + $0x6c8] sm:$0xff]
    %v436 = vld [vmem:[#allocation6 + $0x6d0] sm:$0xff]
    %v437 = vld [vmem:[#allocation6 + $0x6d8] sm:$0xff]
    %v438 = vld [vmem:[#allocation6 + $0x6e0] sm:$0xff]
    %v439 = vld [vmem:[#allocation6 + $0x6e8] sm:$0xff]
    %v440 = vld [vmem:[#allocation6 + $0x6f0] sm:$0xff]
    %v441 = vld [vmem:[#allocation6 + $0x6f8] sm:$0xff]
    %v442 = vld [vmem:[#allocation6 + $0x700] sm:$0xff]
    %v443 = vld [vmem:[#allocation6 + $0x708] sm:$0xff]
    %v444 = vld [vmem:[#allocation6 + $0x710] sm:$0xff]
    %v445 = vld [vmem:[#allocation6 + $0x718] sm:$0xff]
    %v446 = vld [vmem:[#allocation6 + $0x720] sm:$0xff]
    %v447 = vld [vmem:[#allocation6 + $0x728] sm:$0xff]
    %v448 = vld [vmem:[#allocation6 + $0x730] sm:$0xff]
    %v449 = vld [vmem:[#allocation6 + $0x738] sm:$0xff]
    %v450 = vld [vmem:[#allocation6 + $0x740] sm:$0xff]
    %v451 = vld [vmem:[#allocation6 + $0x748] sm:$0xff]
    %v452 = vld [vmem:[#allocation6 + $0x750] sm:$0xff]
    %v453 = vld [vmem:[#allocation6 + $0x758] sm:$0xff]
    %v454 = vld [vmem:[#allocation6 + $0x760] sm:$0xff]
    %v455 = vld [vmem:[#allocation6 + $0x768] sm:$0xff]
    %v456 = vld [vmem:[#allocation6 + $0x770] sm:$0xff]
    %v457 = vld [vmem:[#allocation6 + $0x778] sm:$0xff]
    %v458 = vld [vmem:[#allocation6 + $0x780] sm:$0xff]
    %v459 = vld [vmem:[#allocation6 + $0x788] sm:$0xff]
    %v460 = vld [vmem:[#allocation6 + $0x790] sm:$0xff]
    %v461 = vld [vmem:[#allocation6 + $0x798] sm:$0xff]
    %v462 = vld [vmem:[#allocation6 + $0x7a0] sm:$0xff]
    %v463 = vld [vmem:[#allocation6 + $0x7a8] sm:$0xff]
    %v464 = vld [vmem:[#allocation6 + $0x7b0] sm:$0xff]
    %v465 = vld [vmem:[#allocation6 + $0x7b8] sm:$0xff]
    %v466 = vld [vmem:[#allocation6 + $0x7c0] sm:$0xff]
    %v467 = vld [vmem:[#allocation6 + $0x7c8] sm:$0xff]
    %v468 = vld [vmem:[#allocation6 + $0x7d0] sm:$0xff]
    %v469 = vld [vmem:[#allocation6 + $0x7d8] sm:$0xff]
    %v470 = vld [vmem:[#allocation6 + $0x7e0] sm:$0xff]
    %v471 = vld [vmem:[#allocation6 + $0x7e8] sm:$0xff]
    %v472 = vld [vmem:[#allocation6 + $0x7f0] sm:$0xff]
    %v473 = vld [vmem:[#allocation6 + $0x7f8] sm:$0xff]
    %v474 = vld [vmem:[#allocation8] sm:$0xff]
    %v476 = vlaneseq
    %v477 = vshrl.u32 %v476, 7
    %v478 = vsub.s32 0, %v477
    %v479 = vrot.slane %v474, %v478
    %v480 = vlaneseq
    %v481 = vshrl.u32 %v480, 7
    %v482 = vsub.s32 1, %v481
    %v483 = vrot.slane %v474, %v482
    %v484 = vlaneseq
    %v485 = vshrl.u32 %v484, 7
    %v486 = vsub.s32 2, %v485
    %v487 = vrot.slane %v474, %v486
    %v488 = vlaneseq
    %v489 = vshrl.u32 %v488, 7
    %v490 = vsub.s32 3, %v489
    %v491 = vrot.slane %v474, %v490
    %v492 = vlaneseq
    %v493 = vshrl.u32 %v492, 7
    %v494 = vsub.s32 4, %v493
    %v495 = vrot.slane %v474, %v494
    %v496 = vlaneseq
    %v497 = vshrl.u32 %v496, 7
    %v498 = vsub.s32 5, %v497
    %v499 = vrot.slane %v474, %v498
    %v500 = vlaneseq
    %v501 = vshrl.u32 %v500, 7
    %v502 = vsub.s32 6, %v501
    %v503 = vrot.slane %v474, %v502
    %v504 = vlaneseq
    %v505 = vshrl.u32 %v504, 7
    %v506 = vsub.s32 7, %v505
    %v507 = vrot.slane %v474, %v506
    %516 = vmatprep.subr.mxu0 %v219
    %517 = vmatpush1.msra.mxu0 %v218
    %518 = vmatprep.subr.mxu0 %v227
    %519 = vmatpush1.msra.mxu0 %v226
    %520 = vmatprep.subr.mxu0 %v235
    %521 = vmatpush1.msra.mxu0 %v234
    %522 = vmatprep.subr.mxu0 %v243
    %523 = vmatpush1.msra.mxu0 %v242
    %524 = vmatprep.subr.mxu0 %v251
    %525 = vmatpush1.msra.mxu0 %v250
    %526 = vmatprep.subr.mxu0 %v259
    %527 = vmatpush1.msra.mxu0 %v258
    %528 = vmatprep.subr.mxu0 %v267
    %529 = vmatpush1.msra.mxu0 %v266
    %530 = vmatprep.subr.mxu0 %v275
    %531 = vmatpush1.msra.mxu0 %v274
    %532 = vmatprep.subr.mxu0 %v283
    %533 = vmatpush1.msra.mxu0 %v282
    %534 = vmatprep.subr.mxu0 %v291
    %535 = vmatpush1.msra.mxu0 %v290
    %536 = vmatprep.subr.mxu0 %v299
    %537 = vmatpush1.msra.mxu0 %v298
    %538 = vmatprep.subr.mxu0 %v307
    %539 = vmatpush1.msra.mxu0 %v306
    %540 = vmatprep.subr.mxu0 %v315
    %541 = vmatpush1.msra.mxu0 %v314
    %542 = vmatprep.subr.mxu0 %v323
    %543 = vmatpush1.msra.mxu0 %v322
    %544 = vmatprep.subr.mxu0 %v331
    %545 = vmatpush1.msra.mxu0 %v330
    %546 = vmatprep.subr.mxu0 %v339
    %547 = vmatpush1.msra.mxu0 %v338
    %548 = vmatprep.subr.mxu0 %v347
    %549 = vmatpush1.msra.mxu0 %v346
    %550 = vmatprep.subr.mxu0 %v355
    %551 = vmatpush1.msra.mxu0 %v354
    %552 = vmatprep.subr.mxu0 %v363
    %553 = vmatpush1.msra.mxu0 %v362
    %554 = vmatprep.subr.mxu0 %v371
    %555 = vmatpush1.msra.mxu0 %v370
    %556 = vmatprep.subr.mxu0 %v379
    %557 = vmatpush1.msra.mxu0 %v378
    %558 = vmatprep.subr.mxu0 %v387
    %559 = vmatpush1.msra.mxu0 %v386
    %560 = vmatprep.subr.mxu0 %v395
    %561 = vmatpush1.msra.mxu0 %v394
    %562 = vmatprep.subr.mxu0 %v403
    %563 = vmatpush1.msra.mxu0 %v402
    %564 = vmatprep.subr.mxu0 %v411
    %565 = vmatpush1.msra.mxu0 %v410
    %566 = vmatprep.subr.mxu0 %v419
    %567 = vmatpush1.msra.mxu0 %v418
    %568 = vmatprep.subr.mxu0 %v427
    %569 = vmatpush1.msra.mxu0 %v426
    %570 = vmatprep.subr.mxu0 %v435
    %571 = vmatpush1.msra.mxu0 %v434
    %572 = vmatprep.subr.mxu0 %v443
    %573 = vmatpush1.msra.mxu0 %v442
    %574 = vmatprep.subr.mxu0 %v451
    %575 = vmatpush1.msra.mxu0 %v450
    %576 = vmatprep.subr.mxu0 %v459
    %577 = vmatpush1.msra.mxu0 %v458
    %578 = vmatprep.subr.mxu0 %v467
    %579 = vmatpush1.msra.mxu0 %v466
    %580 = vmatprep.mubr.f32.mxu0 %v155
    %581 = vmatmul.mubr.f32.gmra.mrb[0].mxu0 %v154
    %v582 = vpop.f32.mrb[0].mxu0
    %v583 = vadd.f32 %v479, %v582
    %v584 = vpop.f32.mrb[0].mxu0
    %v585 = vadd.f32 %v483, %v584
    %586 = vmatprep.mubr.f32.mxu0 %v157
    %587 = vmatmul.mubr.f32.gmra.mrb[0].mxu0 %v156
    %v588 = vpop.f32.mrb[0].mxu0
    %v589 = vadd.f32 %v479, %v588
    %v590 = vpop.f32.mrb[0].mxu0
    %v591 = vadd.f32 %v483, %v590
    %592 = vmatprep.mubr.f32.mxu0 %v159
    %593 = vmatmul.mubr.f32.gmra.mrb[0].mxu0 %v158
    %v594 = vpop.f32.mrb[0].mxu0
    %v595 = vadd.f32 %v479, %v594
    %v596 = vpop.f32.mrb[0].mxu0
    %v597 = vadd.f32 %v483, %v596
    %598 = vmatprep.mubr.f32.mxu0 %v161
    %599 = vmatmul.mubr.f32.gmra.mrb[0].mxu0 %v160
    %v600 = vpop.f32.mrb[0].mxu0
    %v601 = vadd.f32 %v479, %v600
    %v602 = vpop.f32.mrb[0].mxu0
    %v603 = vadd.f32 %v483, %v602
    %604 = vmatprep.mubr.f32.mxu0 %v163
    %605 = vmatmul.mubr.f32.gmra.mrb[0].mxu0 %v162
    %v606 = vpop.f32.mrb[0].mxu0
    %v607 = vadd.f32 %v479, %v606
    %v608 = vpop.f32.mrb[0].mxu0
    %v609 = vadd.f32 %v483, %v608
    %610 = vmatprep.mubr.f32.mxu0 %v165
    %611 = vmatmul.mubr.f32.gmra.mrb[0].mxu0 %v164
    %v612 = vpop.f32.mrb[0].mxu0
    %v613 = vadd.f32 %v479, %v612
    %v614 = vpop.f32.mrb[0].mxu0
    %v615 = vadd.f32 %v483, %v614
    %616 = vmatprep.mubr.f32.mxu0 %v167
    %617 = vmatmul.mubr.f32.gmra.mrb[0].mxu0 %v166
    %v618 = vpop.f32.mrb[0].mxu0
    %v619 = vadd.f32 %v479, %v618
    %v620 = vpop.f32.mrb[0].mxu0
    %v621 = vadd.f32 %v483, %v620
    %622 = vmatprep.mubr.f32.mxu0 %v169
    %623 = vmatmul.mubr.f32.gmra.mrb[0].mxu0 %v168
    %v624 = vpop.f32.mrb[0].mxu0
    %v625 = vadd.f32 %v479, %v624
    %v626 = vpop.f32.mrb[0].mxu0
    %v627 = vadd.f32 %v483, %v626
    %628 = vmatprep.mubr.f32.mxu0 %v171
    %629 = vmatmul.mubr.f32.gmra.mrb[0].mxu0 %v170
    %v630 = vpop.f32.mrb[0].mxu0
    %v631 = vadd.f32 %v479, %v630
    %v632 = vpop.f32.mrb[0].mxu0
    %v633 = vadd.f32 %v483, %v632
    %634 = vmatprep.mubr.f32.mxu0 %v173
    %635 = vmatmul.mubr.f32.gmra.mrb[0].mxu0 %v172
    %v636 = vpop.f32.mrb[0].mxu0
    %v637 = vadd.f32 %v479, %v636
    %v638 = vpop.f32.mrb[0].mxu0
    %v639 = vadd.f32 %v483, %v638
    %640 = vmatprep.mubr.f32.mxu0 %v175
    %641 = vmatmul.mubr.f32.gmra.mrb[0].mxu0 %v174
    %v642 = vpop.f32.mrb[0].mxu0
    %v643 = vadd.f32 %v479, %v642
    %v644 = vpop.f32.mrb[0].mxu0
    %v645 = vadd.f32 %v483, %v644
    %646 = vmatprep.mubr.f32.mxu0 %v177
    %647 = vmatmul.mubr.f32.gmra.mrb[0].mxu0 %v176
    %v648 = vpop.f32.mrb[0].mxu0
    %v649 = vadd.f32 %v479, %v648
    %v650 = vpop.f32.mrb[0].mxu0
    %v651 = vadd.f32 %v483, %v650
    %652 = vmatprep.mubr.f32.mxu0 %v179
    %653 = vmatmul.mubr.f32.gmra.mrb[0].mxu0 %v178
    %v654 = vpop.f32.mrb[0].mxu0
    %v655 = vadd.f32 %v479, %v654
    %v656 = vpop.f32.mrb[0].mxu0
    %v657 = vadd.f32 %v483, %v656
    %658 = vmatprep.mubr.f32.mxu0 %v181
    %659 = vmatmul.mubr.f32.gmra.mrb[0].mxu0 %v180
    %v660 = vpop.f32.mrb[0].mxu0
    %v661 = vadd.f32 %v479, %v660
    %v662 = vpop.f32.mrb[0].mxu0
    %v663 = vadd.f32 %v483, %v662
    %664 = vmatprep.mubr.f32.mxu0 %v183
    %665 = vmatmul.mubr.f32.gmra.mrb[0].mxu0 %v182
    %v666 = vpop.f32.mrb[0].mxu0
    %v667 = vadd.f32 %v479, %v666
    %v668 = vpop.f32.mrb[0].mxu0
    %v669 = vadd.f32 %v483, %v668
    %670 = vmatprep.mubr.f32.mxu0 %v185
    %671 = vmatmul.mubr.f32.gmra.mrb[0].mxu0 %v184
    %v672 = vpop.f32.mrb[0].mxu0
    %v673 = vadd.f32 %v479, %v672
    %v674 = vpop.f32.mrb[0].mxu0
    %v675 = vadd.f32 %v483, %v674
    %676 = vmatprep.mubr.f32.mxu0 %v187
    %677 = vmatmul.mubr.f32.gmra.mrb[0].mxu0 %v186
    %v678 = vpop.f32.mrb[0].mxu0
    %v679 = vadd.f32 %v479, %v678
    %v680 = vpop.f32.mrb[0].mxu0
    %v681 = vadd.f32 %v483, %v680
    %682 = vmatprep.mubr.f32.mxu0 %v189
    %683 = vmatmul.mubr.f32.gmra.mrb[0].mxu0 %v188
    %v684 = vpop.f32.mrb[0].mxu0
    %v685 = vadd.f32 %v479, %v684
    %v686 = vpop.f32.mrb[0].mxu0
    %v687 = vadd.f32 %v483, %v686
    %688 = vmatprep.mubr.f32.mxu0 %v191
    %689 = vmatmul.mubr.f32.gmra.mrb[0].mxu0 %v190
    %v690 = vpop.f32.mrb[0].mxu0
    %v691 = vadd.f32 %v479, %v690
    %v692 = vpop.f32.mrb[0].mxu0
    %v693 = vadd.f32 %v483, %v692
    %694 = vmatprep.mubr.f32.mxu0 %v193
    %695 = vmatmul.mubr.f32.gmra.mrb[0].mxu0 %v192
    %v696 = vpop.f32.mrb[0].mxu0
    %v697 = vadd.f32 %v479, %v696
    %v698 = vpop.f32.mrb[0].mxu0
    %v699 = vadd.f32 %v483, %v698
    %700 = vmatprep.mubr.f32.mxu0 %v195
    %701 = vmatmul.mubr.f32.gmra.mrb[0].mxu0 %v194
    %v702 = vpop.f32.mrb[0].mxu0
    %v703 = vadd.f32 %v479, %v702
    %v704 = vpop.f32.mrb[0].mxu0
    %v705 = vadd.f32 %v483, %v704
    %706 = vmatprep.mubr.f32.mxu0 %v197
    %707 = vmatmul.mubr.f32.gmra.mrb[0].mxu0 %v196
    %v708 = vpop.f32.mrb[0].mxu0
    %v709 = vadd.f32 %v479, %v708
    %v710 = vpop.f32.mrb[0].mxu0
    %v711 = vadd.f32 %v483, %v710
    %712 = vmatprep.mubr.f32.mxu0 %v199
    %713 = vmatmul.mubr.f32.gmra.mrb[0].mxu0 %v198
    %v714 = vpop.f32.mrb[0].mxu0
    %v715 = vadd.f32 %v479, %v714
    %v716 = vpop.f32.mrb[0].mxu0
    %v717 = vadd.f32 %v483, %v716
    %718 = vmatprep.mubr.f32.mxu0 %v201
    %719 = vmatmul.mubr.f32.gmra.mrb[0].mxu0 %v200
    %v720 = vpop.f32.mrb[0].mxu0
    %v721 = vadd.f32 %v479, %v720
    %v722 = vpop.f32.mrb[0].mxu0
    %v723 = vadd.f32 %v483, %v722
    %724 = vmatprep.mubr.f32.mxu0 %v203
    %725 = vmatmul.mubr.f32.gmra.mrb[0].mxu0 %v202
    %v726 = vpop.f32.mrb[0].mxu0
    %v727 = vadd.f32 %v479, %v726
    %v728 = vpop.f32.mrb[0].mxu0
    %v729 = vadd.f32 %v483, %v728
    %730 = vmatprep.mubr.f32.mxu0 %v205
    %731 = vmatmul.mubr.f32.gmra.mrb[0].mxu0 %v204
    %v732 = vpop.f32.mrb[0].mxu0
    %v733 = vadd.f32 %v479, %v732
    %v734 = vpop.f32.mrb[0].mxu0
    %v735 = vadd.f32 %v483, %v734
    %736 = vmatprep.mubr.f32.mxu0 %v207
    %737 = vmatmul.mubr.f32.gmra.mrb[0].mxu0 %v206
    %v738 = vpop.f32.mrb[0].mxu0
    %v739 = vadd.f32 %v479, %v738
    %v740 = vpop.f32.mrb[0].mxu0
    %v741 = vadd.f32 %v483, %v740
    %742 = vmatprep.mubr.f32.mxu0 %v209
    %743 = vmatmul.mubr.f32.gmra.mrb[0].mxu0 %v208
    %v744 = vpop.f32.mrb[0].mxu0
    %v745 = vadd.f32 %v479, %v744
    %v746 = vpop.f32.mrb[0].mxu0
    %v747 = vadd.f32 %v483, %v746
    %748 = vmatprep.mubr.f32.mxu0 %v211
    %749 = vmatmul.mubr.f32.gmra.mrb[0].mxu0 %v210
    %v750 = vpop.f32.mrb[0].mxu0
    %v751 = vadd.f32 %v479, %v750
    %v752 = vpop.f32.mrb[0].mxu0
    %v753 = vadd.f32 %v483, %v752
    %754 = vmatprep.mubr.f32.mxu0 %v213
    %755 = vmatmul.mubr.f32.gmra.mrb[0].mxu0 %v212
    %v756 = vpop.f32.mrb[0].mxu0
    %v757 = vadd.f32 %v479, %v756
    %v758 = vpop.f32.mrb[0].mxu0
    %v759 = vadd.f32 %v483, %v758
    %760 = vmatprep.mubr.f32.mxu0 %v215
    %761 = vmatmul.mubr.f32.gmra.mrb[0].mxu0 %v214
    %v762 = vpop.f32.mrb[0].mxu0
    %v763 = vadd.f32 %v479, %v762
    %v764 = vpop.f32.mrb[0].mxu0
    %v765 = vadd.f32 %v483, %v764
    %766 = vmatprep.mubr.f32.mxu0 %v217
    %767 = vmatmul.mubr.f32.gmra.mrb[0].mxu0 %v216
    %v768 = vpop.f32.mrb[0].mxu0
    %v769 = vadd.f32 %v479, %v768
    %v770 = vpop.f32.mrb[0].mxu0
    %v771 = vadd.f32 %v483, %v770
    %772 = vdwg.mxu0
    %773 = vmatprep.subr.mxu0 %v221
    %774 = vmatpush1.msra.mxu0 %v220
    %775 = vmatprep.subr.mxu0 %v229
    %776 = vmatpush1.msra.mxu0 %v228
    %777 = vmatprep.subr.mxu0 %v237
    %778 = vmatpush1.msra.mxu0 %v236
    %779 = vmatprep.subr.mxu0 %v245
    %780 = vmatpush1.msra.mxu0 %v244
    %781 = vmatprep.subr.mxu0 %v253
    %782 = vmatpush1.msra.mxu0 %v252
    %783 = vmatprep.subr.mxu0 %v261
    %784 = vmatpush1.msra.mxu0 %v260
    %785 = vmatprep.subr.mxu0 %v269
    %786 = vmatpush1.msra.mxu0 %v268
    %787 = vmatprep.subr.mxu0 %v277
    %788 = vmatpush1.msra.mxu0 %v276
    %789 = vmatprep.subr.mxu0 %v285
    %790 = vmatpush1.msra.mxu0 %v284
    %791 = vmatprep.subr.mxu0 %v293
    %792 = vmatpush1.msra.mxu0 %v292
    %793 = vmatprep.subr.mxu0 %v301
    %794 = vmatpush1.msra.mxu0 %v300
    %795 = vmatprep.subr.mxu0 %v309
    %796 = vmatpush1.msra.mxu0 %v308
    %797 = vmatprep.subr.mxu0 %v317
    %798 = vmatpush1.msra.mxu0 %v316
    %799 = vmatprep.subr.mxu0 %v325
    %800 = vmatpush1.msra.mxu0 %v324
    %801 = vmatprep.subr.mxu0 %v333
    %802 = vmatpush1.msra.mxu0 %v332
    %803 = vmatprep.subr.mxu0 %v341
    %804 = vmatpush1.msra.mxu0 %v340
    %805 = vmatprep.subr.mxu0 %v349
    %806 = vmatpush1.msra.mxu0 %v348
    %807 = vmatprep.subr.mxu0 %v357
    %808 = vmatpush1.msra.mxu0 %v356
    %809 = vmatprep.subr.mxu0 %v365
    %810 = vmatpush1.msra.mxu0 %v364
    %811 = vmatprep.subr.mxu0 %v373
    %812 = vmatpush1.msra.mxu0 %v372
    %813 = vmatprep.subr.mxu0 %v381
    %814 = vmatpush1.msra.mxu0 %v380
    %815 = vmatprep.subr.mxu0 %v389
    %816 = vmatpush1.msra.mxu0 %v388
    %817 = vmatprep.subr.mxu0 %v397
    %818 = vmatpush1.msra.mxu0 %v396
    %819 = vmatprep.subr.mxu0 %v405
    %820 = vmatpush1.msra.mxu0 %v404
    %821 = vmatprep.subr.mxu0 %v413
    %822 = vmatpush1.msra.mxu0 %v412
    %823 = vmatprep.subr.mxu0 %v421
    %824 = vmatpush1.msra.mxu0 %v420
    %825 = vmatprep.subr.mxu0 %v429
    %826 = vmatpush1.msra.mxu0 %v428
    %827 = vmatprep.subr.mxu0 %v437
    %828 = vmatpush1.msra.mxu0 %v436
    %829 = vmatprep.subr.mxu0 %v445
    %830 = vmatpush1.msra.mxu0 %v444
    %831 = vmatprep.subr.mxu0 %v453
    %832 = vmatpush1.msra.mxu0 %v452
    %833 = vmatprep.subr.mxu0 %v461
    %834 = vmatpush1.msra.mxu0 %v460
    %835 = vmatprep.subr.mxu0 %v469
    %836 = vmatpush1.msra.mxu0 %v468
    %837 = vmatprep.mubr.f32.mxu0 %v155
    %838 = vmatmul.mubr.f32.gmra.mrb[0].mxu0 %v154
    %v839 = vpop.f32.mrb[0].mxu0
    %v840 = vadd.f32 %v487, %v839
    %v841 = vpop.f32.mrb[0].mxu0
    %v842 = vadd.f32 %v491, %v841
    %843 = vmatprep.mubr.f32.mxu0 %v157
    %844 = vmatmul.mubr.f32.gmra.mrb[0].mxu0 %v156
    %v845 = vpop.f32.mrb[0].mxu0
    %v846 = vadd.f32 %v487, %v845
    %v847 = vpop.f32.mrb[0].mxu0
    %v848 = vadd.f32 %v491, %v847
    %849 = vmatprep.mubr.f32.mxu0 %v159
    %850 = vmatmul.mubr.f32.gmra.mrb[0].mxu0 %v158
    %v851 = vpop.f32.mrb[0].mxu0
    %v852 = vadd.f32 %v487, %v851
    %v853 = vpop.f32.mrb[0].mxu0
    %v854 = vadd.f32 %v491, %v853
    %855 = vmatprep.mubr.f32.mxu0 %v161
    %856 = vmatmul.mubr.f32.gmra.mrb[0].mxu0 %v160
    %v857 = vpop.f32.mrb[0].mxu0
    %v858 = vadd.f32 %v487, %v857
    %v859 = vpop.f32.mrb[0].mxu0
    %v860 = vadd.f32 %v491, %v859
    %861 = vmatprep.mubr.f32.mxu0 %v163
    %862 = vmatmul.mubr.f32.gmra.mrb[0].mxu0 %v162
    %v863 = vpop.f32.mrb[0].mxu0
    %v864 = vadd.f32 %v487, %v863
    %v865 = vpop.f32.mrb[0].mxu0
    %v866 = vadd.f32 %v491, %v865
    %867 = vmatprep.mubr.f32.mxu0 %v165
    %868 = vmatmul.mubr.f32.gmra.mrb[0].mxu0 %v164
    %v869 = vpop.f32.mrb[0].mxu0
    %v870 = vadd.f32 %v487, %v869
    %v871 = vpop.f32.mrb[0].mxu0
    %v872 = vadd.f32 %v491, %v871
    %873 = vmatprep.mubr.f32.mxu0 %v167
    %874 = vmatmul.mubr.f32.gmra.mrb[0].mxu0 %v166
    %v875 = vpop.f32.mrb[0].mxu0
    %v876 = vadd.f32 %v487, %v875
    %v877 = vpop.f32.mrb[0].mxu0
    %v878 = vadd.f32 %v491, %v877
    %879 = vmatprep.mubr.f32.mxu0 %v169
    %880 = vmatmul.mubr.f32.gmra.mrb[0].mxu0 %v168
    %v881 = vpop.f32.mrb[0].mxu0
    %v882 = vadd.f32 %v487, %v881
    %v883 = vpop.f32.mrb[0].mxu0
    %v884 = vadd.f32 %v491, %v883
    %885 = vmatprep.mubr.f32.mxu0 %v171
    %886 = vmatmul.mubr.f32.gmra.mrb[0].mxu0 %v170
    %v887 = vpop.f32.mrb[0].mxu0
    %v888 = vadd.f32 %v487, %v887
    %v889 = vpop.f32.mrb[0].mxu0
    %v890 = vadd.f32 %v491, %v889
    %891 = vmatprep.mubr.f32.mxu0 %v173
    %892 = vmatmul.mubr.f32.gmra.mrb[0].mxu0 %v172
    %v893 = vpop.f32.mrb[0].mxu0
    %v894 = vadd.f32 %v487, %v893
    %v895 = vpop.f32.mrb[0].mxu0
    %v896 = vadd.f32 %v491, %v895
    %897 = vmatprep.mubr.f32.mxu0 %v175
    %898 = vmatmul.mubr.f32.gmra.mrb[0].mxu0 %v174
    %v899 = vpop.f32.mrb[0].mxu0
    %v900 = vadd.f32 %v487, %v899
    %v901 = vpop.f32.mrb[0].mxu0
    %v902 = vadd.f32 %v491, %v901
    %903 = vmatprep.mubr.f32.mxu0 %v177
    %904 = vmatmul.mubr.f32.gmra.mrb[0].mxu0 %v176
    %v905 = vpop.f32.mrb[0].mxu0
    %v906 = vadd.f32 %v487, %v905
    %v907 = vpop.f32.mrb[0].mxu0
    %v908 = vadd.f32 %v491, %v907
    %909 = vmatprep.mubr.f32.mxu0 %v179
    %910 = vmatmul.mubr.f32.gmra.mrb[0].mxu0 %v178
    %v911 = vpop.f32.mrb[0].mxu0
    %v912 = vadd.f32 %v487, %v911
    %v913 = vpop.f32.mrb[0].mxu0
    %v914 = vadd.f32 %v491, %v913
    %915 = vmatprep.mubr.f32.mxu0 %v181
    %916 = vmatmul.mubr.f32.gmra.mrb[0].mxu0 %v180
    %v917 = vpop.f32.mrb[0].mxu0
    %v918 = vadd.f32 %v487, %v917
    %v919 = vpop.f32.mrb[0].mxu0
    %v920 = vadd.f32 %v491, %v919
    %921 = vmatprep.mubr.f32.mxu0 %v183
    %922 = vmatmul.mubr.f32.gmra.mrb[0].mxu0 %v182
    %v923 = vpop.f32.mrb[0].mxu0
    %v924 = vadd.f32 %v487, %v923
    %v925 = vpop.f32.mrb[0].mxu0
    %v926 = vadd.f32 %v491, %v925
    %927 = vmatprep.mubr.f32.mxu0 %v185
    %928 = vmatmul.mubr.f32.gmra.mrb[0].mxu0 %v184
    %v929 = vpop.f32.mrb[0].mxu0
    %v930 = vadd.f32 %v487, %v929
    %v931 = vpop.f32.mrb[0].mxu0
    %v932 = vadd.f32 %v491, %v931
    %933 = vmatprep.mubr.f32.mxu0 %v187
    %934 = vmatmul.mubr.f32.gmra.mrb[0].mxu0 %v186
    %v935 = vpop.f32.mrb[0].mxu0
    %v936 = vadd.f32 %v487, %v935
    %v937 = vpop.f32.mrb[0].mxu0
    %v938 = vadd.f32 %v491, %v937
    %939 = vmatprep.mubr.f32.mxu0 %v189
    %940 = vmatmul.mubr.f32.gmra.mrb[0].mxu0 %v188
    %v941 = vpop.f32.mrb[0].mxu0
    %v942 = vadd.f32 %v487, %v941
    %v943 = vpop.f32.mrb[0].mxu0
    %v944 = vadd.f32 %v491, %v943
    %945 = vmatprep.mubr.f32.mxu0 %v191
    %946 = vmatmul.mubr.f32.gmra.mrb[0].mxu0 %v190
    %v947 = vpop.f32.mrb[0].mxu0
    %v948 = vadd.f32 %v487, %v947
    %v949 = vpop.f32.mrb[0].mxu0
    %v950 = vadd.f32 %v491, %v949
    %951 = vmatprep.mubr.f32.mxu0 %v193
    %952 = vmatmul.mubr.f32.gmra.mrb[0].mxu0 %v192
    %v953 = vpop.f32.mrb[0].mxu0
    %v954 = vadd.f32 %v487, %v953
    %v955 = vpop.f32.mrb[0].mxu0
    %v956 = vadd.f32 %v491, %v955
    %957 = vmatprep.mubr.f32.mxu0 %v195
    %958 = vmatmul.mubr.f32.gmra.mrb[0].mxu0 %v194
    %v959 = vpop.f32.mrb[0].mxu0
    %v960 = vadd.f32 %v487, %v959
    %v961 = vpop.f32.mrb[0].mxu0
    %v962 = vadd.f32 %v491, %v961
    %963 = vmatprep.mubr.f32.mxu0 %v197
    %964 = vmatmul.mubr.f32.gmra.mrb[0].mxu0 %v196
    %v965 = vpop.f32.mrb[0].mxu0
    %v966 = vadd.f32 %v487, %v965
    %v967 = vpop.f32.mrb[0].mxu0
    %v968 = vadd.f32 %v491, %v967
    %969 = vmatprep.mubr.f32.mxu0 %v199
    %970 = vmatmul.mubr.f32.gmra.mrb[0].mxu0 %v198
    %v971 = vpop.f32.mrb[0].mxu0
    %v972 = vadd.f32 %v487, %v971
    %v973 = vpop.f32.mrb[0].mxu0
    %v974 = vadd.f32 %v491, %v973
    %975 = vmatprep.mubr.f32.mxu0 %v201
    %976 = vmatmul.mubr.f32.gmra.mrb[0].mxu0 %v200
    %v977 = vpop.f32.mrb[0].mxu0
    %v978 = vadd.f32 %v487, %v977
    %v979 = vpop.f32.mrb[0].mxu0
    %v980 = vadd.f32 %v491, %v979
    %981 = vmatprep.mubr.f32.mxu0 %v203
    %982 = vmatmul.mubr.f32.gmra.mrb[0].mxu0 %v202
    %v983 = vpop.f32.mrb[0].mxu0
    %v984 = vadd.f32 %v487, %v983
    %v985 = vpop.f32.mrb[0].mxu0
    %v986 = vadd.f32 %v491, %v985
    %987 = vmatprep.mubr.f32.mxu0 %v205
    %988 = vmatmul.mubr.f32.gmra.mrb[0].mxu0 %v204
    %v989 = vpop.f32.mrb[0].mxu0
    %v990 = vadd.f32 %v487, %v989
    %v991 = vpop.f32.mrb[0].mxu0
    %v992 = vadd.f32 %v491, %v991
    %993 = vmatprep.mubr.f32.mxu0 %v207
    %994 = vmatmul.mubr.f32.gmra.mrb[0].mxu0 %v206
    %v995 = vpop.f32.mrb[0].mxu0
    %v996 = vadd.f32 %v487, %v995
    %v997 = vpop.f32.mrb[0].mxu0
    %v998 = vadd.f32 %v491, %v997
    %999 = vmatprep.mubr.f32.mxu0 %v209
    %1000 = vmatmul.mubr.f32.gmra.mrb[0].mxu0 %v208
    %v1001 = vpop.f32.mrb[0].mxu0
    %v1002 = vadd.f32 %v487, %v1001
    %v1003 = vpop.f32.mrb[0].mxu0
    %v1004 = vadd.f32 %v491, %v1003
    %1005 = vmatprep.mubr.f32.mxu0 %v211
    %1006 = vmatmul.mubr.f32.gmra.mrb[0].mxu0 %v210
    %v1007 = vpop.f32.mrb[0].mxu0
    %v1008 = vadd.f32 %v487, %v1007
    %v1009 = vpop.f32.mrb[0].mxu0
    %v1010 = vadd.f32 %v491, %v1009
    %1011 = vmatprep.mubr.f32.mxu0 %v213
    %1012 = vmatmul.mubr.f32.gmra.mrb[0].mxu0 %v212
    %v1013 = vpop.f32.mrb[0].mxu0
    %v1014 = vadd.f32 %v487, %v1013
    %v1015 = vpop.f32.mrb[0].mxu0
    %v1016 = vadd.f32 %v491, %v1015
    %1017 = vmatprep.mubr.f32.mxu0 %v215
    %1018 = vmatmul.mubr.f32.gmra.mrb[0].mxu0 %v214
    %v1019 = vpop.f32.mrb[0].mxu0
    %v1020 = vadd.f32 %v487, %v1019
    %v1021 = vpop.f32.mrb[0].mxu0
    %v1022 = vadd.f32 %v491, %v1021
    %1023 = vmatprep.mubr.f32.mxu0 %v217
    %1024 = vmatmul.mubr.f32.gmra.mrb[0].mxu0 %v216
    %v1025 = vpop.f32.mrb[0].mxu0
    %v1026 = vadd.f32 %v487, %v1025
    %v1027 = vpop.f32.mrb[0].mxu0
    %v1028 = vadd.f32 %v491, %v1027
    %1029 = vdwg.mxu0
    %1030 = vmatprep.subr.mxu0 %v223
    %1031 = vmatpush1.msra.mxu0 %v222
    %1032 = vmatprep.subr.mxu0 %v231
    %1033 = vmatpush1.msra.mxu0 %v230
    %1034 = vmatprep.subr.mxu0 %v239
    %1035 = vmatpush1.msra.mxu0 %v238
    %1036 = vmatprep.subr.mxu0 %v247
    %1037 = vmatpush1.msra.mxu0 %v246
    %1038 = vmatprep.subr.mxu0 %v255
    %1039 = vmatpush1.msra.mxu0 %v254
    %1040 = vmatprep.subr.mxu0 %v263
    %1041 = vmatpush1.msra.mxu0 %v262
    %1042 = vmatprep.subr.mxu0 %v271
    %1043 = vmatpush1.msra.mxu0 %v270
    %1044 = vmatprep.subr.mxu0 %v279
    %1045 = vmatpush1.msra.mxu0 %v278
    %1046 = vmatprep.subr.mxu0 %v287
    %1047 = vmatpush1.msra.mxu0 %v286
    %1048 = vmatprep.subr.mxu0 %v295
    %1049 = vmatpush1.msra.mxu0 %v294
    %1050 = vmatprep.subr.mxu0 %v303
    %1051 = vmatpush1.msra.mxu0 %v302
    %1052 = vmatprep.subr.mxu0 %v311
    %1053 = vmatpush1.msra.mxu0 %v310
    %1054 = vmatprep.subr.mxu0 %v319
    %1055 = vmatpush1.msra.mxu0 %v318
    %1056 = vmatprep.subr.mxu0 %v327
    %1057 = vmatpush1.msra.mxu0 %v326
    %1058 = vmatprep.subr.mxu0 %v335
    %1059 = vmatpush1.msra.mxu0 %v334
    %1060 = vmatprep.subr.mxu0 %v343
    %1061 = vmatpush1.msra.mxu0 %v342
    %1062 = vmatprep.subr.mxu0 %v351
    %1063 = vmatpush1.msra.mxu0 %v350
    %1064 = vmatprep.subr.mxu0 %v359
    %1065 = vmatpush1.msra.mxu0 %v358
    %1066 = vmatprep.subr.mxu0 %v367
    %1067 = vmatpush1.msra.mxu0 %v366
    %1068 = vmatprep.subr.mxu0 %v375
    %1069 = vmatpush1.msra.mxu0 %v374
    %1070 = vmatprep.subr.mxu0 %v383
    %1071 = vmatpush1.msra.mxu0 %v382
    %1072 = vmatprep.subr.mxu0 %v391
    %1073 = vmatpush1.msra.mxu0 %v390
    %1074 = vmatprep.subr.mxu0 %v399
    %1075 = vmatpush1.msra.mxu0 %v398
    %1076 = vmatprep.subr.mxu0 %v407
    %1077 = vmatpush1.msra.mxu0 %v406
    %1078 = vmatprep.subr.mxu0 %v415
    %1079 = vmatpush1.msra.mxu0 %v414
    %1080 = vmatprep.subr.mxu0 %v423
    %1081 = vmatpush1.msra.mxu0 %v422
    %1082 = vmatprep.subr.mxu0 %v431
    %1083 = vmatpush1.msra.mxu0 %v430
    %1084 = vmatprep.subr.mxu0 %v439
    %1085 = vmatpush1.msra.mxu0 %v438
    %1086 = vmatprep.subr.mxu0 %v447
    %1087 = vmatpush1.msra.mxu0 %v446
    %1088 = vmatprep.subr.mxu0 %v455
    %1089 = vmatpush1.msra.mxu0 %v454
    %1090 = vmatprep.subr.mxu0 %v463
    %1091 = vmatpush1.msra.mxu0 %v462
    %1092 = vmatprep.subr.mxu0 %v471
    %1093 = vmatpush1.msra.mxu0 %v470
    %1094 = vmatprep.mubr.f32.mxu0 %v155
    %1095 = vmatmul.mubr.f32.gmra.mrb[0].mxu0 %v154
    %v1096 = vpop.f32.mrb[0].mxu0
    %v1097 = vadd.f32 %v495, %v1096
    %v1098 = vpop.f32.mrb[0].mxu0
    %v1099 = vadd.f32 %v499, %v1098
    %1100 = vmatprep.mubr.f32.mxu0 %v157
    %1101 = vmatmul.mubr.f32.gmra.mrb[0].mxu0 %v156
    %v1102 = vpop.f32.mrb[0].mxu0
    %v1103 = vadd.f32 %v495, %v1102
    %v1104 = vpop.f32.mrb[0].mxu0
    %v1105 = vadd.f32 %v499, %v1104
    %1106 = vmatprep.mubr.f32.mxu0 %v159
    %1107 = vmatmul.mubr.f32.gmra.mrb[0].mxu0 %v158
    %v1108 = vpop.f32.mrb[0].mxu0
    %v1109 = vadd.f32 %v495, %v1108
    %v1110 = vpop.f32.mrb[0].mxu0
    %v1111 = vadd.f32 %v499, %v1110
    %1112 = vmatprep.mubr.f32.mxu0 %v161
    %1113 = vmatmul.mubr.f32.gmra.mrb[0].mxu0 %v160
    %v1114 = vpop.f32.mrb[0].mxu0
    %v1115 = vadd.f32 %v495, %v1114
    %v1116 = vpop.f32.mrb[0].mxu0
    %v1117 = vadd.f32 %v499, %v1116
    %1118 = vmatprep.mubr.f32.mxu0 %v163
    %1119 = vmatmul.mubr.f32.gmra.mrb[0].mxu0 %v162
    %v1120 = vpop.f32.mrb[0].mxu0
    %v1121 = vadd.f32 %v495, %v1120
    %v1122 = vpop.f32.mrb[0].mxu0
    %v1123 = vadd.f32 %v499, %v1122
    %1124 = vmatprep.mubr.f32.mxu0 %v165
    %1125 = vmatmul.mubr.f32.gmra.mrb[0].mxu0 %v164
    %v1126 = vpop.f32.mrb[0].mxu0
    %v1127 = vadd.f32 %v495, %v1126
    %v1128 = vpop.f32.mrb[0].mxu0
    %v1129 = vadd.f32 %v499, %v1128
    %1130 = vmatprep.mubr.f32.mxu0 %v167
    %1131 = vmatmul.mubr.f32.gmra.mrb[0].mxu0 %v166
    %v1132 = vpop.f32.mrb[0].mxu0
    %v1133 = vadd.f32 %v495, %v1132
    %v1134 = vpop.f32.mrb[0].mxu0
    %v1135 = vadd.f32 %v499, %v1134
    %1136 = vmatprep.mubr.f32.mxu0 %v169
    %1137 = vmatmul.mubr.f32.gmra.mrb[0].mxu0 %v168
    %v1138 = vpop.f32.mrb[0].mxu0
    %v1139 = vadd.f32 %v495, %v1138
    %v1140 = vpop.f32.mrb[0].mxu0
    %v1141 = vadd.f32 %v499, %v1140
    %1142 = vmatprep.mubr.f32.mxu0 %v171
    %1143 = vmatmul.mubr.f32.gmra.mrb[0].mxu0 %v170
    %v1144 = vpop.f32.mrb[0].mxu0
    %v1145 = vadd.f32 %v495, %v1144
    %v1146 = vpop.f32.mrb[0].mxu0
    %v1147 = vadd.f32 %v499, %v1146
    %1148 = vmatprep.mubr.f32.mxu0 %v173
    %1149 = vmatmul.mubr.f32.gmra.mrb[0].mxu0 %v172
    %v1150 = vpop.f32.mrb[0].mxu0
    %v1151 = vadd.f32 %v495, %v1150
    %v1152 = vpop.f32.mrb[0].mxu0
    %v1153 = vadd.f32 %v499, %v1152
    %1154 = vmatprep.mubr.f32.mxu0 %v175
    %1155 = vmatmul.mubr.f32.gmra.mrb[0].mxu0 %v174
    %v1156 = vpop.f32.mrb[0].mxu0
    %v1157 = vadd.f32 %v495, %v1156
    %v1158 = vpop.f32.mrb[0].mxu0
    %v1159 = vadd.f32 %v499, %v1158
    %1160 = vmatprep.mubr.f32.mxu0 %v177
    %1161 = vmatmul.mubr.f32.gmra.mrb[0].mxu0 %v176
    %v1162 = vpop.f32.mrb[0].mxu0
    %v1163 = vadd.f32 %v495, %v1162
    %v1164 = vpop.f32.mrb[0].mxu0
    %v1165 = vadd.f32 %v499, %v1164
    %1166 = vmatprep.mubr.f32.mxu0 %v179
    %1167 = vmatmul.mubr.f32.gmra.mrb[0].mxu0 %v178
    %v1168 = vpop.f32.mrb[0].mxu0
    %v1169 = vadd.f32 %v495, %v1168
    %v1170 = vpop.f32.mrb[0].mxu0
    %v1171 = vadd.f32 %v499, %v1170
    %1172 = vmatprep.mubr.f32.mxu0 %v181
    %1173 = vmatmul.mubr.f32.gmra.mrb[0].mxu0 %v180
    %v1174 = vpop.f32.mrb[0].mxu0
    %v1175 = vadd.f32 %v495, %v1174
    %v1176 = vpop.f32.mrb[0].mxu0
    %v1177 = vadd.f32 %v499, %v1176
    %1178 = vmatprep.mubr.f32.mxu0 %v183
    %1179 = vmatmul.mubr.f32.gmra.mrb[0].mxu0 %v182
    %v1180 = vpop.f32.mrb[0].mxu0
    %v1181 = vadd.f32 %v495, %v1180
    %v1182 = vpop.f32.mrb[0].mxu0
    %v1183 = vadd.f32 %v499, %v1182
    %1184 = vmatprep.mubr.f32.mxu0 %v185
    %1185 = vmatmul.mubr.f32.gmra.mrb[0].mxu0 %v184
    %v1186 = vpop.f32.mrb[0].mxu0
    %v1187 = vadd.f32 %v495, %v1186
    %v1188 = vpop.f32.mrb[0].mxu0
    %v1189 = vadd.f32 %v499, %v1188
    %1190 = vmatprep.mubr.f32.mxu0 %v187
    %1191 = vmatmul.mubr.f32.gmra.mrb[0].mxu0 %v186
    %v1192 = vpop.f32.mrb[0].mxu0
    %v1193 = vadd.f32 %v495, %v1192
    %v1194 = vpop.f32.mrb[0].mxu0
    %v1195 = vadd.f32 %v499, %v1194
    %1196 = vmatprep.mubr.f32.mxu0 %v189
    %1197 = vmatmul.mubr.f32.gmra.mrb[0].mxu0 %v188
    %v1198 = vpop.f32.mrb[0].mxu0
    %v1199 = vadd.f32 %v495, %v1198
    %v1200 = vpop.f32.mrb[0].mxu0
    %v1201 = vadd.f32 %v499, %v1200
    %1202 = vmatprep.mubr.f32.mxu0 %v191
    %1203 = vmatmul.mubr.f32.gmra.mrb[0].mxu0 %v190
    %v1204 = vpop.f32.mrb[0].mxu0
    %v1205 = vadd.f32 %v495, %v1204
    %v1206 = vpop.f32.mrb[0].mxu0
    %v1207 = vadd.f32 %v499, %v1206
    %1208 = vmatprep.mubr.f32.mxu0 %v193
    %1209 = vmatmul.mubr.f32.gmra.mrb[0].mxu0 %v192
    %v1210 = vpop.f32.mrb[0].mxu0
    %v1211 = vadd.f32 %v495, %v1210
    %v1212 = vpop.f32.mrb[0].mxu0
    %v1213 = vadd.f32 %v499, %v1212
    %1214 = vmatprep.mubr.f32.mxu0 %v195
    %1215 = vmatmul.mubr.f32.gmra.mrb[0].mxu0 %v194
    %v1216 = vpop.f32.mrb[0].mxu0
    %v1217 = vadd.f32 %v495, %v1216
    %v1218 = vpop.f32.mrb[0].mxu0
    %v1219 = vadd.f32 %v499, %v1218
    %1220 = vmatprep.mubr.f32.mxu0 %v197
    %1221 = vmatmul.mubr.f32.gmra.mrb[0].mxu0 %v196
    %v1222 = vpop.f32.mrb[0].mxu0
    %v1223 = vadd.f32 %v495, %v1222
    %v1224 = vpop.f32.mrb[0].mxu0
    %v1225 = vadd.f32 %v499, %v1224
    %1226 = vmatprep.mubr.f32.mxu0 %v199
    %1227 = vmatmul.mubr.f32.gmra.mrb[0].mxu0 %v198
    %v1228 = vpop.f32.mrb[0].mxu0
    %v1229 = vadd.f32 %v495, %v1228
    %v1230 = vpop.f32.mrb[0].mxu0
    %v1231 = vadd.f32 %v499, %v1230
    %1232 = vmatprep.mubr.f32.mxu0 %v201
    %1233 = vmatmul.mubr.f32.gmra.mrb[0].mxu0 %v200
    %v1234 = vpop.f32.mrb[0].mxu0
    %v1235 = vadd.f32 %v495, %v1234
    %v1236 = vpop.f32.mrb[0].mxu0
    %v1237 = vadd.f32 %v499, %v1236
    %1238 = vmatprep.mubr.f32.mxu0 %v203
    %1239 = vmatmul.mubr.f32.gmra.mrb[0].mxu0 %v202
    %v1240 = vpop.f32.mrb[0].mxu0
    %v1241 = vadd.f32 %v495, %v1240
    %v1242 = vpop.f32.mrb[0].mxu0
    %v1243 = vadd.f32 %v499, %v1242
    %1244 = vmatprep.mubr.f32.mxu0 %v205
    %1245 = vmatmul.mubr.f32.gmra.mrb[0].mxu0 %v204
    %v1246 = vpop.f32.mrb[0].mxu0
    %v1247 = vadd.f32 %v495, %v1246
    %v1248 = vpop.f32.mrb[0].mxu0
    %v1249 = vadd.f32 %v499, %v1248
    %1250 = vmatprep.mubr.f32.mxu0 %v207
    %1251 = vmatmul.mubr.f32.gmra.mrb[0].mxu0 %v206
    %v1252 = vpop.f32.mrb[0].mxu0
    %v1253 = vadd.f32 %v495, %v1252
    %v1254 = vpop.f32.mrb[0].mxu0
    %v1255 = vadd.f32 %v499, %v1254
    %1256 = vmatprep.mubr.f32.mxu0 %v209
    %1257 = vmatmul.mubr.f32.gmra.mrb[0].mxu0 %v208
    %v1258 = vpop.f32.mrb[0].mxu0
    %v1259 = vadd.f32 %v495, %v1258
    %v1260 = vpop.f32.mrb[0].mxu0
    %v1261 = vadd.f32 %v499, %v1260
    %1262 = vmatprep.mubr.f32.mxu0 %v211
    %1263 = vmatmul.mubr.f32.gmra.mrb[0].mxu0 %v210
    %v1264 = vpop.f32.mrb[0].mxu0
    %v1265 = vadd.f32 %v495, %v1264
    %v1266 = vpop.f32.mrb[0].mxu0
    %v1267 = vadd.f32 %v499, %v1266
    %1268 = vmatprep.mubr.f32.mxu0 %v213
    %1269 = vmatmul.mubr.f32.gmra.mrb[0].mxu0 %v212
    %v1270 = vpop.f32.mrb[0].mxu0
    %v1271 = vadd.f32 %v495, %v1270
    %v1272 = vpop.f32.mrb[0].mxu0
    %v1273 = vadd.f32 %v499, %v1272
    %1274 = vmatprep.mubr.f32.mxu0 %v215
    %1275 = vmatmul.mubr.f32.gmra.mrb[0].mxu0 %v214
    %v1276 = vpop.f32.mrb[0].mxu0
    %v1277 = vadd.f32 %v495, %v1276
    %v1278 = vpop.f32.mrb[0].mxu0
    %v1279 = vadd.f32 %v499, %v1278
    %1280 = vmatprep.mubr.f32.mxu0 %v217
    %1281 = vmatmul.mubr.f32.gmra.mrb[0].mxu0 %v216
    %v1282 = vpop.f32.mrb[0].mxu0
    %v1283 = vadd.f32 %v495, %v1282
    %v1284 = vpop.f32.mrb[0].mxu0
    %v1285 = vadd.f32 %v499, %v1284
    %1286 = vdwg.mxu0
    %1287 = vmatprep.subr.mxu0 %v225
    %1288 = vmatpush1.msra.mxu0 %v224
    %1289 = vmatprep.subr.mxu0 %v233
    %1290 = vmatpush1.msra.mxu0 %v232
    %1291 = vmatprep.subr.mxu0 %v241
    %1292 = vmatpush1.msra.mxu0 %v240
    %1293 = vmatprep.subr.mxu0 %v249
    %1294 = vmatpush1.msra.mxu0 %v248
    %1295 = vmatprep.subr.mxu0 %v257
    %1296 = vmatpush1.msra.mxu0 %v256
    %1297 = vmatprep.subr.mxu0 %v265
    %1298 = vmatpush1.msra.mxu0 %v264
    %1299 = vmatprep.subr.mxu0 %v273
    %1300 = vmatpush1.msra.mxu0 %v272
    %1301 = vmatprep.subr.mxu0 %v281
    %1302 = vmatpush1.msra.mxu0 %v280
    %1303 = vmatprep.subr.mxu0 %v289
    %1304 = vmatpush1.msra.mxu0 %v288
    %1305 = vmatprep.subr.mxu0 %v297
    %1306 = vmatpush1.msra.mxu0 %v296
    %1307 = vmatprep.subr.mxu0 %v305
    %1308 = vmatpush1.msra.mxu0 %v304
    %1309 = vmatprep.subr.mxu0 %v313
    %1310 = vmatpush1.msra.mxu0 %v312
    %1311 = vmatprep.subr.mxu0 %v321
    %1312 = vmatpush1.msra.mxu0 %v320
    %1313 = vmatprep.subr.mxu0 %v329
    %1314 = vmatpush1.msra.mxu0 %v328
    %1315 = vmatprep.subr.mxu0 %v337
    %1316 = vmatpush1.msra.mxu0 %v336
    %1317 = vmatprep.subr.mxu0 %v345
    %1318 = vmatpush1.msra.mxu0 %v344
    %1319 = vmatprep.subr.mxu0 %v353
    %1320 = vmatpush1.msra.mxu0 %v352
    %1321 = vmatprep.subr.mxu0 %v361
    %1322 = vmatpush1.msra.mxu0 %v360
    %1323 = vmatprep.subr.mxu0 %v369
    %1324 = vmatpush1.msra.mxu0 %v368
    %1325 = vmatprep.subr.mxu0 %v377
    %1326 = vmatpush1.msra.mxu0 %v376
    %1327 = vmatprep.subr.mxu0 %v385
    %1328 = vmatpush1.msra.mxu0 %v384
    %1329 = vmatprep.subr.mxu0 %v393
    %1330 = vmatpush1.msra.mxu0 %v392
    %1331 = vmatprep.subr.mxu0 %v401
    %1332 = vmatpush1.msra.mxu0 %v400
    %1333 = vmatprep.subr.mxu0 %v409
    %1334 = vmatpush1.msra.mxu0 %v408
    %1335 = vmatprep.subr.mxu0 %v417
    %1336 = vmatpush1.msra.mxu0 %v416
    %1337 = vmatprep.subr.mxu0 %v425
    %1338 = vmatpush1.msra.mxu0 %v424
    %1339 = vmatprep.subr.mxu0 %v433
    %1340 = vmatpush1.msra.mxu0 %v432
    %1341 = vmatprep.subr.mxu0 %v441
    %1342 = vmatpush1.msra.mxu0 %v440
    %1343 = vmatprep.subr.mxu0 %v449
    %1344 = vmatpush1.msra.mxu0 %v448
    %1345 = vmatprep.subr.mxu0 %v457
    %1346 = vmatpush1.msra.mxu0 %v456
    %1347 = vmatprep.subr.mxu0 %v465
    %1348 = vmatpush1.msra.mxu0 %v464
    %1349 = vmatprep.subr.mxu0 %v473
    %1350 = vmatpush1.msra.mxu0 %v472
    %1351 = vmatprep.mubr.f32.mxu0 %v155
    %1352 = vmatmul.mubr.f32.gmra.mrb[0].mxu0 %v154
    %v1353 = vpop.f32.mrb[0].mxu0
    %v1354 = vadd.f32 %v503, %v1353
    %v1355 = vpop.f32.mrb[0].mxu0
    %v1356 = vadd.f32 %v507, %v1355
    %1357 = vmatprep.mubr.f32.mxu0 %v157
    %1358 = vmatmul.mubr.f32.gmra.mrb[0].mxu0 %v156
    %v1359 = vpop.f32.mrb[0].mxu0
    %v1360 = vadd.f32 %v503, %v1359
    %v1361 = vpop.f32.mrb[0].mxu0
    %v1362 = vadd.f32 %v507, %v1361
    %1363 = vmatprep.mubr.f32.mxu0 %v159
    %1364 = vmatmul.mubr.f32.gmra.mrb[0].mxu0 %v158
    %v1365 = vpop.f32.mrb[0].mxu0
    %v1366 = vadd.f32 %v503, %v1365
    %v1367 = vpop.f32.mrb[0].mxu0
    %v1368 = vadd.f32 %v507, %v1367
    %1369 = vmatprep.mubr.f32.mxu0 %v161
    %1370 = vmatmul.mubr.f32.gmra.mrb[0].mxu0 %v160
    %v1371 = vpop.f32.mrb[0].mxu0
    %v1372 = vadd.f32 %v503, %v1371
    %v1373 = vpop.f32.mrb[0].mxu0
    %v1374 = vadd.f32 %v507, %v1373
    %1375 = vmatprep.mubr.f32.mxu0 %v163
    %1376 = vmatmul.mubr.f32.gmra.mrb[0].mxu0 %v162
    %v1377 = vpop.f32.mrb[0].mxu0
    %v1378 = vadd.f32 %v503, %v1377
    %v1379 = vpop.f32.mrb[0].mxu0
    %v1380 = vadd.f32 %v507, %v1379
    %1381 = vmatprep.mubr.f32.mxu0 %v165
    %1382 = vmatmul.mubr.f32.gmra.mrb[0].mxu0 %v164
    %v1383 = vpop.f32.mrb[0].mxu0
    %v1384 = vadd.f32 %v503, %v1383
    %v1385 = vpop.f32.mrb[0].mxu0
    %v1386 = vadd.f32 %v507, %v1385
    %1387 = vmatprep.mubr.f32.mxu0 %v167
    %1388 = vmatmul.mubr.f32.gmra.mrb[0].mxu0 %v166
    %v1389 = vpop.f32.mrb[0].mxu0
    %v1390 = vadd.f32 %v503, %v1389
    %v1391 = vpop.f32.mrb[0].mxu0
    %v1392 = vadd.f32 %v507, %v1391
    %1393 = vmatprep.mubr.f32.mxu0 %v169
    %1394 = vmatmul.mubr.f32.gmra.mrb[0].mxu0 %v168
    %v1395 = vpop.f32.mrb[0].mxu0
    %v1396 = vadd.f32 %v503, %v1395
    %v1397 = vpop.f32.mrb[0].mxu0
    %v1398 = vadd.f32 %v507, %v1397
    %1399 = vmatprep.mubr.f32.mxu0 %v171
    %1400 = vmatmul.mubr.f32.gmra.mrb[0].mxu0 %v170
    %v1401 = vpop.f32.mrb[0].mxu0
    %v1402 = vadd.f32 %v503, %v1401
    %v1403 = vpop.f32.mrb[0].mxu0
    %v1404 = vadd.f32 %v507, %v1403
    %1405 = vmatprep.mubr.f32.mxu0 %v173
    %1406 = vmatmul.mubr.f32.gmra.mrb[0].mxu0 %v172
    %v1407 = vpop.f32.mrb[0].mxu0
    %v1408 = vadd.f32 %v503, %v1407
    %v1409 = vpop.f32.mrb[0].mxu0
    %v1410 = vadd.f32 %v507, %v1409
    %1411 = vmatprep.mubr.f32.mxu0 %v175
    %1412 = vmatmul.mubr.f32.gmra.mrb[0].mxu0 %v174
    %v1413 = vpop.f32.mrb[0].mxu0
    %v1414 = vadd.f32 %v503, %v1413
    %v1415 = vpop.f32.mrb[0].mxu0
    %v1416 = vadd.f32 %v507, %v1415
    %1417 = vmatprep.mubr.f32.mxu0 %v177
    %1418 = vmatmul.mubr.f32.gmra.mrb[0].mxu0 %v176
    %v1419 = vpop.f32.mrb[0].mxu0
    %v1420 = vadd.f32 %v503, %v1419
    %v1421 = vpop.f32.mrb[0].mxu0
    %v1422 = vadd.f32 %v507, %v1421
    %1423 = vmatprep.mubr.f32.mxu0 %v179
    %1424 = vmatmul.mubr.f32.gmra.mrb[0].mxu0 %v178
    %v1425 = vpop.f32.mrb[0].mxu0
    %v1426 = vadd.f32 %v503, %v1425
    %v1427 = vpop.f32.mrb[0].mxu0
    %v1428 = vadd.f32 %v507, %v1427
    %1429 = vmatprep.mubr.f32.mxu0 %v181
    %1430 = vmatmul.mubr.f32.gmra.mrb[0].mxu0 %v180
    %v1431 = vpop.f32.mrb[0].mxu0
    %v1432 = vadd.f32 %v503, %v1431
    %v1433 = vpop.f32.mrb[0].mxu0
    %v1434 = vadd.f32 %v507, %v1433
    %1435 = vmatprep.mubr.f32.mxu0 %v183
    %1436 = vmatmul.mubr.f32.gmra.mrb[0].mxu0 %v182
    %v1437 = vpop.f32.mrb[0].mxu0
    %v1438 = vadd.f32 %v503, %v1437
    %v1439 = vpop.f32.mrb[0].mxu0
    %v1440 = vadd.f32 %v507, %v1439
    %1441 = vmatprep.mubr.f32.mxu0 %v185
    %1442 = vmatmul.mubr.f32.gmra.mrb[0].mxu0 %v184
    %v1443 = vpop.f32.mrb[0].mxu0
    %v1444 = vadd.f32 %v503, %v1443
    %v1445 = vpop.f32.mrb[0].mxu0
    %v1446 = vadd.f32 %v507, %v1445
    %1447 = vmatprep.mubr.f32.mxu0 %v187
    %1448 = vmatmul.mubr.f32.gmra.mrb[0].mxu0 %v186
    %v1449 = vpop.f32.mrb[0].mxu0
    %v1450 = vadd.f32 %v503, %v1449
    %v1451 = vpop.f32.mrb[0].mxu0
    %v1452 = vadd.f32 %v507, %v1451
    %1453 = vmatprep.mubr.f32.mxu0 %v189
    %1454 = vmatmul.mubr.f32.gmra.mrb[0].mxu0 %v188
    %v1455 = vpop.f32.mrb[0].mxu0
    %v1456 = vadd.f32 %v503, %v1455
    %v1457 = vpop.f32.mrb[0].mxu0
    %v1458 = vadd.f32 %v507, %v1457
    %1459 = vmatprep.mubr.f32.mxu0 %v191
    %1460 = vmatmul.mubr.f32.gmra.mrb[0].mxu0 %v190
    %v1461 = vpop.f32.mrb[0].mxu0
    %v1462 = vadd.f32 %v503, %v1461
    %v1463 = vpop.f32.mrb[0].mxu0
    %v1464 = vadd.f32 %v507, %v1463
    %1465 = vmatprep.mubr.f32.mxu0 %v193
    %1466 = vmatmul.mubr.f32.gmra.mrb[0].mxu0 %v192
    %v1467 = vpop.f32.mrb[0].mxu0
    %v1468 = vadd.f32 %v503, %v1467
    %v1469 = vpop.f32.mrb[0].mxu0
    %v1470 = vadd.f32 %v507, %v1469
    %1471 = vmatprep.mubr.f32.mxu0 %v195
    %1472 = vmatmul.mubr.f32.gmra.mrb[0].mxu0 %v194
    %v1473 = vpop.f32.mrb[0].mxu0
    %v1474 = vadd.f32 %v503, %v1473
    %v1475 = vpop.f32.mrb[0].mxu0
    %v1476 = vadd.f32 %v507, %v1475
    %1477 = vmatprep.mubr.f32.mxu0 %v197
    %1478 = vmatmul.mubr.f32.gmra.mrb[0].mxu0 %v196
    %v1479 = vpop.f32.mrb[0].mxu0
    %v1480 = vadd.f32 %v503, %v1479
    %v1481 = vpop.f32.mrb[0].mxu0
    %v1482 = vadd.f32 %v507, %v1481
    %1483 = vmatprep.mubr.f32.mxu0 %v199
    %1484 = vmatmul.mubr.f32.gmra.mrb[0].mxu0 %v198
    %v1485 = vpop.f32.mrb[0].mxu0
    %v1486 = vadd.f32 %v503, %v1485
    %v1487 = vpop.f32.mrb[0].mxu0
    %v1488 = vadd.f32 %v507, %v1487
    %1489 = vmatprep.mubr.f32.mxu0 %v201
    %1490 = vmatmul.mubr.f32.gmra.mrb[0].mxu0 %v200
    %v1491 = vpop.f32.mrb[0].mxu0
    %v1492 = vadd.f32 %v503, %v1491
    %v1493 = vpop.f32.mrb[0].mxu0
    %v1494 = vadd.f32 %v507, %v1493
    %1495 = vmatprep.mubr.f32.mxu0 %v203
    %1496 = vmatmul.mubr.f32.gmra.mrb[0].mxu0 %v202
    %v1497 = vpop.f32.mrb[0].mxu0
    %v1498 = vadd.f32 %v503, %v1497
    %v1499 = vpop.f32.mrb[0].mxu0
    %v1500 = vadd.f32 %v507, %v1499
    %1501 = vmatprep.mubr.f32.mxu0 %v205
    %1502 = vmatmul.mubr.f32.gmra.mrb[0].mxu0 %v204
    %v1503 = vpop.f32.mrb[0].mxu0
    %v1504 = vadd.f32 %v503, %v1503
    %v1505 = vpop.f32.mrb[0].mxu0
    %v1506 = vadd.f32 %v507, %v1505
    %1507 = vmatprep.mubr.f32.mxu0 %v207
    %1508 = vmatmul.mubr.f32.gmra.mrb[0].mxu0 %v206
    %v1509 = vpop.f32.mrb[0].mxu0
    %v1510 = vadd.f32 %v503, %v1509
    %v1511 = vpop.f32.mrb[0].mxu0
    %v1512 = vadd.f32 %v507, %v1511
    %1513 = vmatprep.mubr.f32.mxu0 %v209
    %1514 = vmatmul.mubr.f32.gmra.mrb[0].mxu0 %v208
    %v1515 = vpop.f32.mrb[0].mxu0
    %v1516 = vadd.f32 %v503, %v1515
    %v1517 = vpop.f32.mrb[0].mxu0
    %v1518 = vadd.f32 %v507, %v1517
    %1519 = vmatprep.mubr.f32.mxu0 %v211
    %1520 = vmatmul.mubr.f32.gmra.mrb[0].mxu0 %v210
    %v1521 = vpop.f32.mrb[0].mxu0
    %v1522 = vadd.f32 %v503, %v1521
    %v1523 = vpop.f32.mrb[0].mxu0
    %v1524 = vadd.f32 %v507, %v1523
    %1525 = vmatprep.mubr.f32.mxu0 %v213
    %1526 = vmatmul.mubr.f32.gmra.mrb[0].mxu0 %v212
    %v1527 = vpop.f32.mrb[0].mxu0
    %v1528 = vadd.f32 %v503, %v1527
    %v1529 = vpop.f32.mrb[0].mxu0
    %v1530 = vadd.f32 %v507, %v1529
    %1531 = vmatprep.mubr.f32.mxu0 %v215
    %1532 = vmatmul.mubr.f32.gmra.mrb[0].mxu0 %v214
    %v1533 = vpop.f32.mrb[0].mxu0
    %v1534 = vadd.f32 %v503, %v1533
    %v1535 = vpop.f32.mrb[0].mxu0
    %v1536 = vadd.f32 %v507, %v1535
    %1537 = vmatprep.mubr.f32.mxu0 %v217
    %1538 = vmatmul.mubr.f32.gmra.mrb[0].mxu0 %v216
    %v1539 = vpop.f32.mrb[0].mxu0
    %v1540 = vadd.f32 %v503, %v1539
    %v1541 = vpop.f32.mrb[0].mxu0
    %v1542 = vadd.f32 %v507, %v1541
    %1543 = vdwg.mxu0
    %v1544 = vmul.f32 %v583, 0.5
    %v1545 = vmul.f32 %v585, 0.5
    %v1546 = vmul.f32 %v840, 0.5
    %v1547 = vmul.f32 %v842, 0.5
    %v1548 = vmul.f32 %v1097, 0.5
    %v1549 = vmul.f32 %v1099, 0.5
    %v1550 = vmul.f32 %v1354, 0.5
    %v1551 = vmul.f32 %v1356, 0.5
    %v1552 = vmul.f32 %v589, 0.5
    %v1553 = vmul.f32 %v591, 0.5
    %v1554 = vmul.f32 %v846, 0.5
    %v1555 = vmul.f32 %v848, 0.5
    %v1556 = vmul.f32 %v1103, 0.5
    %v1557 = vmul.f32 %v1105, 0.5
    %v1558 = vmul.f32 %v1360, 0.5
    %v1559 = vmul.f32 %v1362, 0.5
    %v1560 = vmul.f32 %v595, 0.5
    %v1561 = vmul.f32 %v597, 0.5
    %v1562 = vmul.f32 %v852, 0.5
    %v1563 = vmul.f32 %v854, 0.5
    %v1564 = vmul.f32 %v1109, 0.5
    %v1565 = vmul.f32 %v1111, 0.5
    %v1566 = vmul.f32 %v1366, 0.5
    %v1567 = vmul.f32 %v1368, 0.5
    %v1568 = vmul.f32 %v601, 0.5
    %v1569 = vmul.f32 %v603, 0.5
    %v1570 = vmul.f32 %v858, 0.5
    %v1571 = vmul.f32 %v860, 0.5
    %v1572 = vmul.f32 %v1115, 0.5
    %v1573 = vmul.f32 %v1117, 0.5
    %v1574 = vmul.f32 %v1372, 0.5
    %v1575 = vmul.f32 %v1374, 0.5
    %v1576 = vmul.f32 %v607, 0.5
    %v1577 = vmul.f32 %v609, 0.5
    %v1578 = vmul.f32 %v864, 0.5
    %v1579 = vmul.f32 %v866, 0.5
    %v1580 = vmul.f32 %v1121, 0.5
    %v1581 = vmul.f32 %v1123, 0.5
    %v1582 = vmul.f32 %v1378, 0.5
    %v1583 = vmul.f32 %v1380, 0.5
    %v1584 = vmul.f32 %v613, 0.5
    %v1585 = vmul.f32 %v615, 0.5
    %v1586 = vmul.f32 %v870, 0.5
    %v1587 = vmul.f32 %v872, 0.5
    %v1588 = vmul.f32 %v1127, 0.5
    %v1589 = vmul.f32 %v1129, 0.5
    %v1590 = vmul.f32 %v1384, 0.5
    %v1591 = vmul.f32 %v1386, 0.5
    %v1592 = vmul.f32 %v619, 0.5
    %v1593 = vmul.f32 %v621, 0.5
    %v1594 = vmul.f32 %v876, 0.5
    %v1595 = vmul.f32 %v878, 0.5
    %v1596 = vmul.f32 %v1133, 0.5
    %v1597 = vmul.f32 %v1135, 0.5
    %v1598 = vmul.f32 %v1390, 0.5
    %v1599 = vmul.f32 %v1392, 0.5
    %v1600 = vmul.f32 %v625, 0.5
    %v1601 = vmul.f32 %v627, 0.5
    %v1602 = vmul.f32 %v882, 0.5
    %v1603 = vmul.f32 %v884, 0.5
    %v1604 = vmul.f32 %v1139, 0.5
    %v1605 = vmul.f32 %v1141, 0.5
    %v1606 = vmul.f32 %v1396, 0.5
    %v1607 = vmul.f32 %v1398, 0.5
    %v1608 = vmul.f32 %v631, 0.5
    %v1609 = vmul.f32 %v633, 0.5
    %v1610 = vmul.f32 %v888, 0.5
    %v1611 = vmul.f32 %v890, 0.5
    %v1612 = vmul.f32 %v1145, 0.5
    %v1613 = vmul.f32 %v1147, 0.5
    %v1614 = vmul.f32 %v1402, 0.5
    %v1615 = vmul.f32 %v1404, 0.5
    %v1616 = vmul.f32 %v637, 0.5
    %v1617 = vmul.f32 %v639, 0.5
    %v1618 = vmul.f32 %v894, 0.5
    %v1619 = vmul.f32 %v896, 0.5
    %v1620 = vmul.f32 %v1151, 0.5
    %v1621 = vmul.f32 %v1153, 0.5
    %v1622 = vmul.f32 %v1408, 0.5
    %v1623 = vmul.f32 %v1410, 0.5
    %v1624 = vmul.f32 %v643, 0.5
    %v1625 = vmul.f32 %v645, 0.5
    %v1626 = vmul.f32 %v900, 0.5
    %v1627 = vmul.f32 %v902, 0.5
    %v1628 = vmul.f32 %v1157, 0.5
    %v1629 = vmul.f32 %v1159, 0.5
    %v1630 = vmul.f32 %v1414, 0.5
    %v1631 = vmul.f32 %v1416, 0.5
    %v1632 = vmul.f32 %v649, 0.5
    %v1633 = vmul.f32 %v651, 0.5
    %v1634 = vmul.f32 %v906, 0.5
    %v1635 = vmul.f32 %v908, 0.5
    %v1636 = vmul.f32 %v1163, 0.5
    %v1637 = vmul.f32 %v1165, 0.5
    %v1638 = vmul.f32 %v1420, 0.5
    %v1639 = vmul.f32 %v1422, 0.5
    %v1640 = vmul.f32 %v655, 0.5
    %v1641 = vmul.f32 %v657, 0.5
    %v1642 = vmul.f32 %v912, 0.5
    %v1643 = vmul.f32 %v914, 0.5
    %v1644 = vmul.f32 %v1169, 0.5
    %v1645 = vmul.f32 %v1171, 0.5
    %v1646 = vmul.f32 %v1426, 0.5
    %v1647 = vmul.f32 %v1428, 0.5
    %v1648 = vmul.f32 %v661, 0.5
    %v1649 = vmul.f32 %v663, 0.5
    %v1650 = vmul.f32 %v918, 0.5
    %v1651 = vmul.f32 %v920, 0.5
    %v1652 = vmul.f32 %v1175, 0.5
    %v1653 = vmul.f32 %v1177, 0.5
    %v1654 = vmul.f32 %v1432, 0.5
    %v1655 = vmul.f32 %v1434, 0.5
    %v1656 = vmul.f32 %v667, 0.5
    %v1657 = vmul.f32 %v669, 0.5
    %v1658 = vmul.f32 %v924, 0.5
    %v1659 = vmul.f32 %v926, 0.5
    %v1660 = vmul.f32 %v1181, 0.5
    %v1661 = vmul.f32 %v1183, 0.5
    %v1662 = vmul.f32 %v1438, 0.5
    %v1663 = vmul.f32 %v1440, 0.5
    %v1664 = vmul.f32 %v673, 0.5
    %v1665 = vmul.f32 %v675, 0.5
    %v1666 = vmul.f32 %v930, 0.5
    %v1667 = vmul.f32 %v932, 0.5
    %v1668 = vmul.f32 %v1187, 0.5
    %v1669 = vmul.f32 %v1189, 0.5
    %v1670 = vmul.f32 %v1444, 0.5
    %v1671 = vmul.f32 %v1446, 0.5
    %v1672 = vmul.f32 %v679, 0.5
    %v1673 = vmul.f32 %v681, 0.5
    %v1674 = vmul.f32 %v936, 0.5
    %v1675 = vmul.f32 %v938, 0.5
    %v1676 = vmul.f32 %v1193, 0.5
    %v1677 = vmul.f32 %v1195, 0.5
    %v1678 = vmul.f32 %v1450, 0.5
    %v1679 = vmul.f32 %v1452, 0.5
    %v1680 = vmul.f32 %v685, 0.5
    %v1681 = vmul.f32 %v687, 0.5
    %v1682 = vmul.f32 %v942, 0.5
    %v1683 = vmul.f32 %v944, 0.5
    %v1684 = vmul.f32 %v1199, 0.5
    %v1685 = vmul.f32 %v1201, 0.5
    %v1686 = vmul.f32 %v1456, 0.5
    %v1687 = vmul.f32 %v1458, 0.5
    %v1688 = vmul.f32 %v691, 0.5
    %v1689 = vmul.f32 %v693, 0.5
    %v1690 = vmul.f32 %v948, 0.5
    %v1691 = vmul.f32 %v950, 0.5
    %v1692 = vmul.f32 %v1205, 0.5
    %v1693 = vmul.f32 %v1207, 0.5
    %v1694 = vmul.f32 %v1462, 0.5
    %v1695 = vmul.f32 %v1464, 0.5
    %v1696 = vmul.f32 %v697, 0.5
    %v1697 = vmul.f32 %v699, 0.5
    %v1698 = vmul.f32 %v954, 0.5
    %v1699 = vmul.f32 %v956, 0.5
    %v1700 = vmul.f32 %v1211, 0.5
    %v1701 = vmul.f32 %v1213, 0.5
    %v1702 = vmul.f32 %v1468, 0.5
    %v1703 = vmul.f32 %v1470, 0.5
    %v1704 = vmul.f32 %v703, 0.5
    %v1705 = vmul.f32 %v705, 0.5
    %v1706 = vmul.f32 %v960, 0.5
    %v1707 = vmul.f32 %v962, 0.5
    %v1708 = vmul.f32 %v1217, 0.5
    %v1709 = vmul.f32 %v1219, 0.5
    %v1710 = vmul.f32 %v1474, 0.5
    %v1711 = vmul.f32 %v1476, 0.5
    %v1712 = vmul.f32 %v709, 0.5
    %v1713 = vmul.f32 %v711, 0.5
    %v1714 = vmul.f32 %v966, 0.5
    %v1715 = vmul.f32 %v968, 0.5
    %v1716 = vmul.f32 %v1223, 0.5
    %v1717 = vmul.f32 %v1225, 0.5
    %v1718 = vmul.f32 %v1480, 0.5
    %v1719 = vmul.f32 %v1482, 0.5
    %v1720 = vmul.f32 %v715, 0.5
    %v1721 = vmul.f32 %v717, 0.5
    %v1722 = vmul.f32 %v972, 0.5
    %v1723 = vmul.f32 %v974, 0.5
    %v1724 = vmul.f32 %v1229, 0.5
    %v1725 = vmul.f32 %v1231, 0.5
    %v1726 = vmul.f32 %v1486, 0.5
    %v1727 = vmul.f32 %v1488, 0.5
    %v1728 = vmul.f32 %v721, 0.5
    %v1729 = vmul.f32 %v723, 0.5
    %v1730 = vmul.f32 %v978, 0.5
    %v1731 = vmul.f32 %v980, 0.5
    %v1732 = vmul.f32 %v1235, 0.5
    %v1733 = vmul.f32 %v1237, 0.5
    %v1734 = vmul.f32 %v1492, 0.5
    %v1735 = vmul.f32 %v1494, 0.5
    %v1736 = vmul.f32 %v727, 0.5
    %v1737 = vmul.f32 %v729, 0.5
    %v1738 = vmul.f32 %v984, 0.5
    %v1739 = vmul.f32 %v986, 0.5
    %v1740 = vmul.f32 %v1241, 0.5
    %v1741 = vmul.f32 %v1243, 0.5
    %v1742 = vmul.f32 %v1498, 0.5
    %v1743 = vmul.f32 %v1500, 0.5
    %v1744 = vmul.f32 %v733, 0.5
    %v1745 = vmul.f32 %v735, 0.5
    %v1746 = vmul.f32 %v990, 0.5
    %v1747 = vmul.f32 %v992, 0.5
    %v1748 = vmul.f32 %v1247, 0.5
    %v1749 = vmul.f32 %v1249, 0.5
    %v1750 = vmul.f32 %v1504, 0.5
    %v1751 = vmul.f32 %v1506, 0.5
    %v1752 = vmul.f32 %v739, 0.5
    %v1753 = vmul.f32 %v741, 0.5
    %v1754 = vmul.f32 %v996, 0.5
    %v1755 = vmul.f32 %v998, 0.5
    %v1756 = vmul.f32 %v1253, 0.5
    %v1757 = vmul.f32 %v1255, 0.5
    %v1758 = vmul.f32 %v1510, 0.5
    %v1759 = vmul.f32 %v1512, 0.5
    %v1760 = vmul.f32 %v745, 0.5
    %v1761 = vmul.f32 %v747, 0.5
    %v1762 = vmul.f32 %v1002, 0.5
    %v1763 = vmul.f32 %v1004, 0.5
    %v1764 = vmul.f32 %v1259, 0.5
    %v1765 = vmul.f32 %v1261, 0.5
    %v1766 = vmul.f32 %v1516, 0.5
    %v1767 = vmul.f32 %v1518, 0.5
    %v1768 = vmul.f32 %v751, 0.5
    %v1769 = vmul.f32 %v753, 0.5
    %v1770 = vmul.f32 %v1008, 0.5
    %v1771 = vmul.f32 %v1010, 0.5
    %v1772 = vmul.f32 %v1265, 0.5
    %v1773 = vmul.f32 %v1267, 0.5
    %v1774 = vmul.f32 %v1522, 0.5
    %v1775 = vmul.f32 %v1524, 0.5
    %v1776 = vmul.f32 %v757, 0.5
    %v1777 = vmul.f32 %v759, 0.5
    %v1778 = vmul.f32 %v1014, 0.5
    %v1779 = vmul.f32 %v1016, 0.5
    %v1780 = vmul.f32 %v1271, 0.5
    %v1781 = vmul.f32 %v1273, 0.5
    %v1782 = vmul.f32 %v1528, 0.5
    %v1783 = vmul.f32 %v1530, 0.5
    %v1784 = vmul.f32 %v763, 0.5
    %v1785 = vmul.f32 %v765, 0.5
    %v1786 = vmul.f32 %v1020, 0.5
    %v1787 = vmul.f32 %v1022, 0.5
    %v1788 = vmul.f32 %v1277, 0.5
    %v1789 = vmul.f32 %v1279, 0.5
    %v1790 = vmul.f32 %v1534, 0.5
    %v1791 = vmul.f32 %v1536, 0.5
    %v1792 = vmul.f32 %v769, 0.5
    %v1793 = vmul.f32 %v771, 0.5
    %v1794 = vmul.f32 %v1026, 0.5
    %v1795 = vmul.f32 %v1028, 0.5
    %v1796 = vmul.f32 %v1283, 0.5
    %v1797 = vmul.f32 %v1285, 0.5
    %v1798 = vmul.f32 %v1540, 0.5
    %v1799 = vmul.f32 %v1542, 0.5
    %v1800 = vmul.f32 %v583, 0.70710677
    %v1801 = vmul.f32 %v585, 0.70710677
    %v1802 = vmul.f32 %v840, 0.70710677
    %v1803 = vmul.f32 %v842, 0.70710677
    %v1804 = vmul.f32 %v1097, 0.70710677
    %v1805 = vmul.f32 %v1099, 0.70710677
    %v1806 = vmul.f32 %v1354, 0.70710677
    %v1807 = vmul.f32 %v1356, 0.70710677
    %v1808 = vmul.f32 %v589, 0.70710677
    %v1809 = vmul.f32 %v591, 0.70710677
    %v1810 = vmul.f32 %v846, 0.70710677
    %v1811 = vmul.f32 %v848, 0.70710677
    %v1812 = vmul.f32 %v1103, 0.70710677
    %v1813 = vmul.f32 %v1105, 0.70710677
    %v1814 = vmul.f32 %v1360, 0.70710677
    %v1815 = vmul.f32 %v1362, 0.70710677
    %v1816 = vmul.f32 %v595, 0.70710677
    %v1817 = vmul.f32 %v597, 0.70710677
    %v1818 = vmul.f32 %v852, 0.70710677
    %v1819 = vmul.f32 %v854, 0.70710677
    %v1820 = vmul.f32 %v1109, 0.70710677
    %v1821 = vmul.f32 %v1111, 0.70710677
    %v1822 = vmul.f32 %v1366, 0.70710677
    %v1823 = vmul.f32 %v1368, 0.70710677
    %v1824 = vmul.f32 %v601, 0.70710677
    %v1825 = vmul.f32 %v603, 0.70710677
    %v1826 = vmul.f32 %v858, 0.70710677
    %v1827 = vmul.f32 %v860, 0.70710677
    %v1828 = vmul.f32 %v1115, 0.70710677
    %v1829 = vmul.f32 %v1117, 0.70710677
    %v1830 = vmul.f32 %v1372, 0.70710677
    %v1831 = vmul.f32 %v1374, 0.70710677
    %v1832 = vmul.f32 %v607, 0.70710677
    %v1833 = vmul.f32 %v609, 0.70710677
    %v1834 = vmul.f32 %v864, 0.70710677
    %v1835 = vmul.f32 %v866, 0.70710677
    %v1836 = vmul.f32 %v1121, 0.70710677
    %v1837 = vmul.f32 %v1123, 0.70710677
    %v1838 = vmul.f32 %v1378, 0.70710677
    %v1839 = vmul.f32 %v1380, 0.70710677
    %v1840 = vmul.f32 %v613, 0.70710677
    %v1841 = vmul.f32 %v615, 0.70710677
    %v1842 = vmul.f32 %v870, 0.70710677
    %v1843 = vmul.f32 %v872, 0.70710677
    %v1844 = vmul.f32 %v1127, 0.70710677
    %v1845 = vmul.f32 %v1129, 0.70710677
    %v1846 = vmul.f32 %v1384, 0.70710677
    %v1847 = vmul.f32 %v1386, 0.70710677
    %v1848 = vmul.f32 %v619, 0.70710677
    %v1849 = vmul.f32 %v621, 0.70710677
    %v1850 = vmul.f32 %v876, 0.70710677
    %v1851 = vmul.f32 %v878, 0.70710677
    %v1852 = vmul.f32 %v1133, 0.70710677
    %v1853 = vmul.f32 %v1135, 0.70710677
    %v1854 = vmul.f32 %v1390, 0.70710677
    %v1855 = vmul.f32 %v1392, 0.70710677
    %v1856 = vmul.f32 %v625, 0.70710677
    %v1857 = vmul.f32 %v627, 0.70710677
    %v1858 = vmul.f32 %v882, 0.70710677
    %v1859 = vmul.f32 %v884, 0.70710677
    %v1860 = vmul.f32 %v1139, 0.70710677
    %v1861 = vmul.f32 %v1141, 0.70710677
    %v1862 = vmul.f32 %v1396, 0.70710677
    %v1863 = vmul.f32 %v1398, 0.70710677
    %v1864 = vmul.f32 %v631, 0.70710677
    %v1865 = vmul.f32 %v633, 0.70710677
    %v1866 = vmul.f32 %v888, 0.70710677
    %v1867 = vmul.f32 %v890, 0.70710677
    %v1868 = vmul.f32 %v1145, 0.70710677
    %v1869 = vmul.f32 %v1147, 0.70710677
    %v1870 = vmul.f32 %v1402, 0.70710677
    %v1871 = vmul.f32 %v1404, 0.70710677
    %v1872 = vmul.f32 %v637, 0.70710677
    %v1873 = vmul.f32 %v639, 0.70710677
    %v1874 = vmul.f32 %v894, 0.70710677
    %v1875 = vmul.f32 %v896, 0.70710677
    %v1876 = vmul.f32 %v1151, 0.70710677
    %v1877 = vmul.f32 %v1153, 0.70710677
    %v1878 = vmul.f32 %v1408, 0.70710677
    %v1879 = vmul.f32 %v1410, 0.70710677
    %v1880 = vmul.f32 %v643, 0.70710677
    %v1881 = vmul.f32 %v645, 0.70710677
    %v1882 = vmul.f32 %v900, 0.70710677
    %v1883 = vmul.f32 %v902, 0.70710677
    %v1884 = vmul.f32 %v1157, 0.70710677
    %v1885 = vmul.f32 %v1159, 0.70710677
    %v1886 = vmul.f32 %v1414, 0.70710677
    %v1887 = vmul.f32 %v1416, 0.70710677
    %v1888 = vmul.f32 %v649, 0.70710677
    %v1889 = vmul.f32 %v651, 0.70710677
    %v1890 = vmul.f32 %v906, 0.70710677
    %v1891 = vmul.f32 %v908, 0.70710677
    %v1892 = vmul.f32 %v1163, 0.70710677
    %v1893 = vmul.f32 %v1165, 0.70710677
    %v1894 = vmul.f32 %v1420, 0.70710677
    %v1895 = vmul.f32 %v1422, 0.70710677
    %v1896 = vmul.f32 %v655, 0.70710677
    %v1897 = vmul.f32 %v657, 0.70710677
    %v1898 = vmul.f32 %v912, 0.70710677
    %v1899 = vmul.f32 %v914, 0.70710677
    %v1900 = vmul.f32 %v1169, 0.70710677
    %v1901 = vmul.f32 %v1171, 0.70710677
    %v1902 = vmul.f32 %v1426, 0.70710677
    %v1903 = vmul.f32 %v1428, 0.70710677
    %v1904 = vmul.f32 %v661, 0.70710677
    %v1905 = vmul.f32 %v663, 0.70710677
    %v1906 = vmul.f32 %v918, 0.70710677
    %v1907 = vmul.f32 %v920, 0.70710677
    %v1908 = vmul.f32 %v1175, 0.70710677
    %v1909 = vmul.f32 %v1177, 0.70710677
    %v1910 = vmul.f32 %v1432, 0.70710677
    %v1911 = vmul.f32 %v1434, 0.70710677
    %v1912 = vmul.f32 %v667, 0.70710677
    %v1913 = vmul.f32 %v669, 0.70710677
    %v1914 = vmul.f32 %v924, 0.70710677
    %v1915 = vmul.f32 %v926, 0.70710677
    %v1916 = vmul.f32 %v1181, 0.70710677
    %v1917 = vmul.f32 %v1183, 0.70710677
    %v1918 = vmul.f32 %v1438, 0.70710677
    %v1919 = vmul.f32 %v1440, 0.70710677
    %v1920 = vmul.f32 %v673, 0.70710677
    %v1921 = vmul.f32 %v675, 0.70710677
    %v1922 = vmul.f32 %v930, 0.70710677
    %v1923 = vmul.f32 %v932, 0.70710677
    %v1924 = vmul.f32 %v1187, 0.70710677
    %v1925 = vmul.f32 %v1189, 0.70710677
    %v1926 = vmul.f32 %v1444, 0.70710677
    %v1927 = vmul.f32 %v1446, 0.70710677
    %v1928 = vmul.f32 %v679, 0.70710677
    %v1929 = vmul.f32 %v681, 0.70710677
    %v1930 = vmul.f32 %v936, 0.70710677
    %v1931 = vmul.f32 %v938, 0.70710677
    %v1932 = vmul.f32 %v1193, 0.70710677
    %v1933 = vmul.f32 %v1195, 0.70710677
    %v1934 = vmul.f32 %v1450, 0.70710677
    %v1935 = vmul.f32 %v1452, 0.70710677
    %v1936 = vmul.f32 %v685, 0.70710677
    %v1937 = vmul.f32 %v687, 0.70710677
    %v1938 = vmul.f32 %v942, 0.70710677
    %v1939 = vmul.f32 %v944, 0.70710677
    %v1940 = vmul.f32 %v1199, 0.70710677
    %v1941 = vmul.f32 %v1201, 0.70710677
    %v1942 = vmul.f32 %v1456, 0.70710677
    %v1943 = vmul.f32 %v1458, 0.70710677
    %v1944 = vmul.f32 %v691, 0.70710677
    %v1945 = vmul.f32 %v693, 0.70710677
    %v1946 = vmul.f32 %v948, 0.70710677
    %v1947 = vmul.f32 %v950, 0.70710677
    %v1948 = vmul.f32 %v1205, 0.70710677
    %v1949 = vmul.f32 %v1207, 0.70710677
    %v1950 = vmul.f32 %v1462, 0.70710677
    %v1951 = vmul.f32 %v1464, 0.70710677
    %v1952 = vmul.f32 %v697, 0.70710677
    %v1953 = vmul.f32 %v699, 0.70710677
    %v1954 = vmul.f32 %v954, 0.70710677
    %v1955 = vmul.f32 %v956, 0.70710677
    %v1956 = vmul.f32 %v1211, 0.70710677
    %v1957 = vmul.f32 %v1213, 0.70710677
    %v1958 = vmul.f32 %v1468, 0.70710677
    %v1959 = vmul.f32 %v1470, 0.70710677
    %v1960 = vmul.f32 %v703, 0.70710677
    %v1961 = vmul.f32 %v705, 0.70710677
    %v1962 = vmul.f32 %v960, 0.70710677
    %v1963 = vmul.f32 %v962, 0.70710677
    %v1964 = vmul.f32 %v1217, 0.70710677
    %v1965 = vmul.f32 %v1219, 0.70710677
    %v1966 = vmul.f32 %v1474, 0.70710677
    %v1967 = vmul.f32 %v1476, 0.70710677
    %v1968 = vmul.f32 %v709, 0.70710677
    %v1969 = vmul.f32 %v711, 0.70710677
    %v1970 = vmul.f32 %v966, 0.70710677
    %v1971 = vmul.f32 %v968, 0.70710677
    %v1972 = vmul.f32 %v1223, 0.70710677
    %v1973 = vmul.f32 %v1225, 0.70710677
    %v1974 = vmul.f32 %v1480, 0.70710677
    %v1975 = vmul.f32 %v1482, 0.70710677
    %v1976 = vmul.f32 %v715, 0.70710677
    %v1977 = vmul.f32 %v717, 0.70710677
    %v1978 = vmul.f32 %v972, 0.70710677
    %v1979 = vmul.f32 %v974, 0.70710677
    %v1980 = vmul.f32 %v1229, 0.70710677
    %v1981 = vmul.f32 %v1231, 0.70710677
    %v1982 = vmul.f32 %v1486, 0.70710677
    %v1983 = vmul.f32 %v1488, 0.70710677
    %v1984 = vmul.f32 %v721, 0.70710677
    %v1985 = vmul.f32 %v723, 0.70710677
    %v1986 = vmul.f32 %v978, 0.70710677
    %v1987 = vmul.f32 %v980, 0.70710677
    %v1988 = vmul.f32 %v1235, 0.70710677
    %v1989 = vmul.f32 %v1237, 0.70710677
    %v1990 = vmul.f32 %v1492, 0.70710677
    %v1991 = vmul.f32 %v1494, 0.70710677
    %v1992 = vmul.f32 %v727, 0.70710677
    %v1993 = vmul.f32 %v729, 0.70710677
    %v1994 = vmul.f32 %v984, 0.70710677
    %v1995 = vmul.f32 %v986, 0.70710677
    %v1996 = vmul.f32 %v1241, 0.70710677
    %v1997 = vmul.f32 %v1243, 0.70710677
    %v1998 = vmul.f32 %v1498, 0.70710677
    %v1999 = vmul.f32 %v1500, 0.70710677
    %v2000 = vmul.f32 %v733, 0.70710677
    %v2001 = vmul.f32 %v735, 0.70710677
    %v2002 = vmul.f32 %v990, 0.70710677
    %v2003 = vmul.f32 %v992, 0.70710677
    %v2004 = vmul.f32 %v1247, 0.70710677
    %v2005 = vmul.f32 %v1249, 0.70710677
    %v2006 = vmul.f32 %v1504, 0.70710677
    %v2007 = vmul.f32 %v1506, 0.70710677
    %v2008 = vmul.f32 %v739, 0.70710677
    %v2009 = vmul.f32 %v741, 0.70710677
    %v2010 = vmul.f32 %v996, 0.70710677
    %v2011 = vmul.f32 %v998, 0.70710677
    %v2012 = vmul.f32 %v1253, 0.70710677
    %v2013 = vmul.f32 %v1255, 0.70710677
    %v2014 = vmul.f32 %v1510, 0.70710677
    %v2015 = vmul.f32 %v1512, 0.70710677
    %v2016 = vmul.f32 %v745, 0.70710677
    %v2017 = vmul.f32 %v747, 0.70710677
    %v2018 = vmul.f32 %v1002, 0.70710677
    %v2019 = vmul.f32 %v1004, 0.70710677
    %v2020 = vmul.f32 %v1259, 0.70710677
    %v2021 = vmul.f32 %v1261, 0.70710677
    %v2022 = vmul.f32 %v1516, 0.70710677
    %v2023 = vmul.f32 %v1518, 0.70710677
    %v2024 = vmul.f32 %v751, 0.70710677
    %v2025 = vmul.f32 %v753, 0.70710677
    %v2026 = vmul.f32 %v1008, 0.70710677
    %v2027 = vmul.f32 %v1010, 0.70710677
    %v2028 = vmul.f32 %v1265, 0.70710677
    %v2029 = vmul.f32 %v1267, 0.70710677
    %v2030 = vmul.f32 %v1522, 0.70710677
    %v2031 = vmul.f32 %v1524, 0.70710677
    %v2032 = vmul.f32 %v757, 0.70710677
    %v2033 = vmul.f32 %v759, 0.70710677
    %v2034 = vmul.f32 %v1014, 0.70710677
    %v2035 = vmul.f32 %v1016, 0.70710677
    %v2036 = vmul.f32 %v1271, 0.70710677
    %v2037 = vmul.f32 %v1273, 0.70710677
    %v2038 = vmul.f32 %v1528, 0.70710677
    %v2039 = vmul.f32 %v1530, 0.70710677
    %v2040 = vmul.f32 %v763, 0.70710677
    %v2041 = vmul.f32 %v765, 0.70710677
    %v2042 = vmul.f32 %v1020, 0.70710677
    %v2043 = vmul.f32 %v1022, 0.70710677
    %v2044 = vmul.f32 %v1277, 0.70710677
    %v2045 = vmul.f32 %v1279, 0.70710677
    %v2046 = vmul.f32 %v1534, 0.70710677
    %v2047 = vmul.f32 %v1536, 0.70710677
    %v2048 = vmul.f32 %v769, 0.70710677
    %v2049 = vmul.f32 %v771, 0.70710677
    %v2050 = vmul.f32 %v1026, 0.70710677
    %v2051 = vmul.f32 %v1028, 0.70710677
    %v2052 = vmul.f32 %v1283, 0.70710677
    %v2053 = vmul.f32 %v1285, 0.70710677
    %v2054 = vmul.f32 %v1540, 0.70710677
    %v2055 = vmul.f32 %v1542, 0.70710677
    %v2056 = verf.f32.pop %v1800
    %v2057 = verf.f32.pop %v1801
    %v2058 = verf.f32.pop %v1802
    %v2059 = verf.f32.pop %v1803
    %v2060 = verf.f32.pop %v1804
    %v2061 = verf.f32.pop %v1805
    %v2062 = verf.f32.pop %v1806
    %v2063 = verf.f32.pop %v1807
    %v2064 = verf.f32.pop %v1808
    %v2065 = verf.f32.pop %v1809
    %v2066 = verf.f32.pop %v1810
    %v2067 = verf.f32.pop %v1811
    %v2068 = verf.f32.pop %v1812
    %v2069 = verf.f32.pop %v1813
    %v2070 = verf.f32.pop %v1814
    %v2071 = verf.f32.pop %v1815
    %v2072 = verf.f32.pop %v1816
    %v2073 = verf.f32.pop %v1817
    %v2074 = verf.f32.pop %v1818
    %v2075 = verf.f32.pop %v1819
    %v2076 = verf.f32.pop %v1820
    %v2077 = verf.f32.pop %v1821
    %v2078 = verf.f32.pop %v1822
    %v2079 = verf.f32.pop %v1823
    %v2080 = verf.f32.pop %v1824
    %v2081 = verf.f32.pop %v1825
    %v2082 = verf.f32.pop %v1826
    %v2083 = verf.f32.pop %v1827
    %v2084 = verf.f32.pop %v1828
    %v2085 = verf.f32.pop %v1829
    %v2086 = verf.f32.pop %v1830
    %v2087 = verf.f32.pop %v1831
    %v2088 = verf.f32.pop %v1832
    %v2089 = verf.f32.pop %v1833
    %v2090 = verf.f32.pop %v1834
    %v2091 = verf.f32.pop %v1835
    %v2092 = verf.f32.pop %v1836
    %v2093 = verf.f32.pop %v1837
    %v2094 = verf.f32.pop %v1838
    %v2095 = verf.f32.pop %v1839
    %v2096 = verf.f32.pop %v1840
    %v2097 = verf.f32.pop %v1841
    %v2098 = verf.f32.pop %v1842
    %v2099 = verf.f32.pop %v1843
    %v2100 = verf.f32.pop %v1844
    %v2101 = verf.f32.pop %v1845
    %v2102 = verf.f32.pop %v1846
    %v2103 = verf.f32.pop %v1847
    %v2104 = verf.f32.pop %v1848
    %v2105 = verf.f32.pop %v1849
    %v2106 = verf.f32.pop %v1850
    %v2107 = verf.f32.pop %v1851
    %v2108 = verf.f32.pop %v1852
    %v2109 = verf.f32.pop %v1853
    %v2110 = verf.f32.pop %v1854
    %v2111 = verf.f32.pop %v1855
    %v2112 = verf.f32.pop %v1856
    %v2113 = verf.f32.pop %v1857
    %v2114 = verf.f32.pop %v1858
    %v2115 = verf.f32.pop %v1859
    %v2116 = verf.f32.pop %v1860
    %v2117 = verf.f32.pop %v1861
    %v2118 = verf.f32.pop %v1862
    %v2119 = verf.f32.pop %v1863
    %v2120 = verf.f32.pop %v1864
    %v2121 = verf.f32.pop %v1865
    %v2122 = verf.f32.pop %v1866
    %v2123 = verf.f32.pop %v1867
    %v2124 = verf.f32.pop %v1868
    %v2125 = verf.f32.pop %v1869
    %v2126 = verf.f32.pop %v1870
    %v2127 = verf.f32.pop %v1871
    %v2128 = verf.f32.pop %v1872
    %v2129 = verf.f32.pop %v1873
    %v2130 = verf.f32.pop %v1874
    %v2131 = verf.f32.pop %v1875
    %v2132 = verf.f32.pop %v1876
    %v2133 = verf.f32.pop %v1877
    %v2134 = verf.f32.pop %v1878
    %v2135 = verf.f32.pop %v1879
    %v2136 = verf.f32.pop %v1880
    %v2137 = verf.f32.pop %v1881
    %v2138 = verf.f32.pop %v1882
    %v2139 = verf.f32.pop %v1883
    %v2140 = verf.f32.pop %v1884
    %v2141 = verf.f32.pop %v1885
    %v2142 = verf.f32.pop %v1886
    %v2143 = verf.f32.pop %v1887
    %v2144 = verf.f32.pop %v1888
    %v2145 = verf.f32.pop %v1889
    %v2146 = verf.f32.pop %v1890
    %v2147 = verf.f32.pop %v1891
    %v2148 = verf.f32.pop %v1892
    %v2149 = verf.f32.pop %v1893
    %v2150 = verf.f32.pop %v1894
    %v2151 = verf.f32.pop %v1895
    %v2152 = verf.f32.pop %v1896
    %v2153 = verf.f32.pop %v1897
    %v2154 = verf.f32.pop %v1898
    %v2155 = verf.f32.pop %v1899
    %v2156 = verf.f32.pop %v1900
    %v2157 = verf.f32.pop %v1901
    %v2158 = verf.f32.pop %v1902
    %v2159 = verf.f32.pop %v1903
    %v2160 = verf.f32.pop %v1904
    %v2161 = verf.f32.pop %v1905
    %v2162 = verf.f32.pop %v1906
    %v2163 = verf.f32.pop %v1907
    %v2164 = verf.f32.pop %v1908
    %v2165 = verf.f32.pop %v1909
    %v2166 = verf.f32.pop %v1910
    %v2167 = verf.f32.pop %v1911
    %v2168 = verf.f32.pop %v1912
    %v2169 = verf.f32.pop %v1913
    %v2170 = verf.f32.pop %v1914
    %v2171 = verf.f32.pop %v1915
    %v2172 = verf.f32.pop %v1916
    %v2173 = verf.f32.pop %v1917
    %v2174 = verf.f32.pop %v1918
    %v2175 = verf.f32.pop %v1919
    %v2176 = verf.f32.pop %v1920
    %v2177 = verf.f32.pop %v1921
    %v2178 = verf.f32.pop %v1922
    %v2179 = verf.f32.pop %v1923
    %v2180 = verf.f32.pop %v1924
    %v2181 = verf.f32.pop %v1925
    %v2182 = verf.f32.pop %v1926
    %v2183 = verf.f32.pop %v1927
    %v2184 = verf.f32.pop %v1928
    %v2185 = verf.f32.pop %v1929
    %v2186 = verf.f32.pop %v1930
    %v2187 = verf.f32.pop %v1931
    %v2188 = verf.f32.pop %v1932
    %v2189 = verf.f32.pop %v1933
    %v2190 = verf.f32.pop %v1934
    %v2191 = verf.f32.pop %v1935
    %v2192 = verf.f32.pop %v1936
    %v2193 = verf.f32.pop %v1937
    %v2194 = verf.f32.pop %v1938
    %v2195 = verf.f32.pop %v1939
    %v2196 = verf.f32.pop %v1940
    %v2197 = verf.f32.pop %v1941
    %v2198 = verf.f32.pop %v1942
    %v2199 = verf.f32.pop %v1943
    %v2200 = verf.f32.pop %v1944
    %v2201 = verf.f32.pop %v1945
    %v2202 = verf.f32.pop %v1946
    %v2203 = verf.f32.pop %v1947
    %v2204 = verf.f32.pop %v1948
    %v2205 = verf.f32.pop %v1949
    %v2206 = verf.f32.pop %v1950
    %v2207 = verf.f32.pop %v1951
    %v2208 = verf.f32.pop %v1952
    %v2209 = verf.f32.pop %v1953
    %v2210 = verf.f32.pop %v1954
    %v2211 = verf.f32.pop %v1955
    %v2212 = verf.f32.pop %v1956
    %v2213 = verf.f32.pop %v1957
    %v2214 = verf.f32.pop %v1958
    %v2215 = verf.f32.pop %v1959
    %v2216 = verf.f32.pop %v1960
    %v2217 = verf.f32.pop %v1961
    %v2218 = verf.f32.pop %v1962
    %v2219 = verf.f32.pop %v1963
    %v2220 = verf.f32.pop %v1964
    %v2221 = verf.f32.pop %v1965
    %v2222 = verf.f32.pop %v1966
    %v2223 = verf.f32.pop %v1967
    %v2224 = verf.f32.pop %v1968
    %v2225 = verf.f32.pop %v1969
    %v2226 = verf.f32.pop %v1970
    %v2227 = verf.f32.pop %v1971
    %v2228 = verf.f32.pop %v1972
    %v2229 = verf.f32.pop %v1973
    %v2230 = verf.f32.pop %v1974
    %v2231 = verf.f32.pop %v1975
    %v2232 = verf.f32.pop %v1976
    %v2233 = verf.f32.pop %v1977
    %v2234 = verf.f32.pop %v1978
    %v2235 = verf.f32.pop %v1979
    %v2236 = verf.f32.pop %v1980
    %v2237 = verf.f32.pop %v1981
    %v2238 = verf.f32.pop %v1982
    %v2239 = verf.f32.pop %v1983
    %v2240 = verf.f32.pop %v1984
    %v2241 = verf.f32.pop %v1985
    %v2242 = verf.f32.pop %v1986
    %v2243 = verf.f32.pop %v1987
    %v2244 = verf.f32.pop %v1988
    %v2245 = verf.f32.pop %v1989
    %v2246 = verf.f32.pop %v1990
    %v2247 = verf.f32.pop %v1991
    %v2248 = verf.f32.pop %v1992
    %v2249 = verf.f32.pop %v1993
    %v2250 = verf.f32.pop %v1994
    %v2251 = verf.f32.pop %v1995
    %v2252 = verf.f32.pop %v1996
    %v2253 = verf.f32.pop %v1997
    %v2254 = verf.f32.pop %v1998
    %v2255 = verf.f32.pop %v1999
    %v2256 = verf.f32.pop %v2000
    %v2257 = verf.f32.pop %v2001
    %v2258 = verf.f32.pop %v2002
    %v2259 = verf.f32.pop %v2003
    %v2260 = verf.f32.pop %v2004
    %v2261 = verf.f32.pop %v2005
    %v2262 = verf.f32.pop %v2006
    %v2263 = verf.f32.pop %v2007
    %v2264 = verf.f32.pop %v2008
    %v2265 = verf.f32.pop %v2009
    %v2266 = verf.f32.pop %v2010
    %v2267 = verf.f32.pop %v2011
    %v2268 = verf.f32.pop %v2012
    %v2269 = verf.f32.pop %v2013
    %v2270 = verf.f32.pop %v2014
    %v2271 = verf.f32.pop %v2015
    %v2272 = verf.f32.pop %v2016
    %v2273 = verf.f32.pop %v2017
    %v2274 = verf.f32.pop %v2018
    %v2275 = verf.f32.pop %v2019
    %v2276 = verf.f32.pop %v2020
    %v2277 = verf.f32.pop %v2021
    %v2278 = verf.f32.pop %v2022
    %v2279 = verf.f32.pop %v2023
    %v2280 = verf.f32.pop %v2024
    %v2281 = verf.f32.pop %v2025
    %v2282 = verf.f32.pop %v2026
    %v2283 = verf.f32.pop %v2027
    %v2284 = verf.f32.pop %v2028
    %v2285 = verf.f32.pop %v2029
    %v2286 = verf.f32.pop %v2030
    %v2287 = verf.f32.pop %v2031
    %v2288 = verf.f32.pop %v2032
    %v2289 = verf.f32.pop %v2033
    %v2290 = verf.f32.pop %v2034
    %v2291 = verf.f32.pop %v2035
    %v2292 = verf.f32.pop %v2036
    %v2293 = verf.f32.pop %v2037
    %v2294 = verf.f32.pop %v2038
    %v2295 = verf.f32.pop %v2039
    %v2296 = verf.f32.pop %v2040
    %v2297 = verf.f32.pop %v2041
    %v2298 = verf.f32.pop %v2042
    %v2299 = verf.f32.pop %v2043
    %v2300 = verf.f32.pop %v2044
    %v2301 = verf.f32.pop %v2045
    %v2302 = verf.f32.pop %v2046
    %v2303 = verf.f32.pop %v2047
    %v2304 = verf.f32.pop %v2048
    %v2305 = verf.f32.pop %v2049
    %v2306 = verf.f32.pop %v2050
    %v2307 = verf.f32.pop %v2051
    %v2308 = verf.f32.pop %v2052
    %v2309 = verf.f32.pop %v2053
    %v2310 = verf.f32.pop %v2054
    %v2311 = verf.f32.pop %v2055
    %v2312 = vadd.f32 %v2056, 1.0
    %v2313 = vadd.f32 %v2057, 1.0
    %v2314 = vadd.f32 %v2058, 1.0
    %v2315 = vadd.f32 %v2059, 1.0
    %v2316 = vadd.f32 %v2060, 1.0
    %v2317 = vadd.f32 %v2061, 1.0
    %v2318 = vadd.f32 %v2062, 1.0
    %v2319 = vadd.f32 %v2063, 1.0
    %v2320 = vadd.f32 %v2064, 1.0
    %v2321 = vadd.f32 %v2065, 1.0
    %v2322 = vadd.f32 %v2066, 1.0
    %v2323 = vadd.f32 %v2067, 1.0
    %v2324 = vadd.f32 %v2068, 1.0
    %v2325 = vadd.f32 %v2069, 1.0
    %v2326 = vadd.f32 %v2070, 1.0
    %v2327 = vadd.f32 %v2071, 1.0
    %v2328 = vadd.f32 %v2072, 1.0
    %v2329 = vadd.f32 %v2073, 1.0
    %v2330 = vadd.f32 %v2074, 1.0
    %v2331 = vadd.f32 %v2075, 1.0
    %v2332 = vadd.f32 %v2076, 1.0
    %v2333 = vadd.f32 %v2077, 1.0
    %v2334 = vadd.f32 %v2078, 1.0
    %v2335 = vadd.f32 %v2079, 1.0
    %v2336 = vadd.f32 %v2080, 1.0
    %v2337 = vadd.f32 %v2081, 1.0
    %v2338 = vadd.f32 %v2082, 1.0
    %v2339 = vadd.f32 %v2083, 1.0
    %v2340 = vadd.f32 %v2084, 1.0
    %v2341 = vadd.f32 %v2085, 1.0
    %v2342 = vadd.f32 %v2086, 1.0
    %v2343 = vadd.f32 %v2087, 1.0
    %v2344 = vadd.f32 %v2088, 1.0
    %v2345 = vadd.f32 %v2089, 1.0
    %v2346 = vadd.f32 %v2090, 1.0
    %v2347 = vadd.f32 %v2091, 1.0
    %v2348 = vadd.f32 %v2092, 1.0
    %v2349 = vadd.f32 %v2093, 1.0
    %v2350 = vadd.f32 %v2094, 1.0
    %v2351 = vadd.f32 %v2095, 1.0
    %v2352 = vadd.f32 %v2096, 1.0
    %v2353 = vadd.f32 %v2097, 1.0
    %v2354 = vadd.f32 %v2098, 1.0
    %v2355 = vadd.f32 %v2099, 1.0
    %v2356 = vadd.f32 %v2100, 1.0
    %v2357 = vadd.f32 %v2101, 1.0
    %v2358 = vadd.f32 %v2102, 1.0
    %v2359 = vadd.f32 %v2103, 1.0
    %v2360 = vadd.f32 %v2104, 1.0
    %v2361 = vadd.f32 %v2105, 1.0
    %v2362 = vadd.f32 %v2106, 1.0
    %v2363 = vadd.f32 %v2107, 1.0
    %v2364 = vadd.f32 %v2108, 1.0
    %v2365 = vadd.f32 %v2109, 1.0
    %v2366 = vadd.f32 %v2110, 1.0
    %v2367 = vadd.f32 %v2111, 1.0
    %v2368 = vadd.f32 %v2112, 1.0
    %v2369 = vadd.f32 %v2113, 1.0
    %v2370 = vadd.f32 %v2114, 1.0
    %v2371 = vadd.f32 %v2115, 1.0
    %v2372 = vadd.f32 %v2116, 1.0
    %v2373 = vadd.f32 %v2117, 1.0
    %v2374 = vadd.f32 %v2118, 1.0
    %v2375 = vadd.f32 %v2119, 1.0
    %v2376 = vadd.f32 %v2120, 1.0
    %v2377 = vadd.f32 %v2121, 1.0
    %v2378 = vadd.f32 %v2122, 1.0
    %v2379 = vadd.f32 %v2123, 1.0
    %v2380 = vadd.f32 %v2124, 1.0
    %v2381 = vadd.f32 %v2125, 1.0
    %v2382 = vadd.f32 %v2126, 1.0
    %v2383 = vadd.f32 %v2127, 1.0
    %v2384 = vadd.f32 %v2128, 1.0
    %v2385 = vadd.f32 %v2129, 1.0
    %v2386 = vadd.f32 %v2130, 1.0
    %v2387 = vadd.f32 %v2131, 1.0
    %v2388 = vadd.f32 %v2132, 1.0
    %v2389 = vadd.f32 %v2133, 1.0
    %v2390 = vadd.f32 %v2134, 1.0
    %v2391 = vadd.f32 %v2135, 1.0
    %v2392 = vadd.f32 %v2136, 1.0
    %v2393 = vadd.f32 %v2137, 1.0
    %v2394 = vadd.f32 %v2138, 1.0
    %v2395 = vadd.f32 %v2139, 1.0
    %v2396 = vadd.f32 %v2140, 1.0
    %v2397 = vadd.f32 %v2141, 1.0
    %v2398 = vadd.f32 %v2142, 1.0
    %v2399 = vadd.f32 %v2143, 1.0
    %v2400 = vadd.f32 %v2144, 1.0
    %v2401 = vadd.f32 %v2145, 1.0
    %v2402 = vadd.f32 %v2146, 1.0
    %v2403 = vadd.f32 %v2147, 1.0
    %v2404 = vadd.f32 %v2148, 1.0
    %v2405 = vadd.f32 %v2149, 1.0
    %v2406 = vadd.f32 %v2150, 1.0
    %v2407 = vadd.f32 %v2151, 1.0
    %v2408 = vadd.f32 %v2152, 1.0
    %v2409 = vadd.f32 %v2153, 1.0
    %v2410 = vadd.f32 %v2154, 1.0
    %v2411 = vadd.f32 %v2155, 1.0
    %v2412 = vadd.f32 %v2156, 1.0
    %v2413 = vadd.f32 %v2157, 1.0
    %v2414 = vadd.f32 %v2158, 1.0
    %v2415 = vadd.f32 %v2159, 1.0
    %v2416 = vadd.f32 %v2160, 1.0
    %v2417 = vadd.f32 %v2161, 1.0
    %v2418 = vadd.f32 %v2162, 1.0
    %v2419 = vadd.f32 %v2163, 1.0
    %v2420 = vadd.f32 %v2164, 1.0
    %v2421 = vadd.f32 %v2165, 1.0
    %v2422 = vadd.f32 %v2166, 1.0
    %v2423 = vadd.f32 %v2167, 1.0
    %v2424 = vadd.f32 %v2168, 1.0
    %v2425 = vadd.f32 %v2169, 1.0
    %v2426 = vadd.f32 %v2170, 1.0
    %v2427 = vadd.f32 %v2171, 1.0
    %v2428 = vadd.f32 %v2172, 1.0
    %v2429 = vadd.f32 %v2173, 1.0
    %v2430 = vadd.f32 %v2174, 1.0
    %v2431 = vadd.f32 %v2175, 1.0
    %v2432 = vadd.f32 %v2176, 1.0
    %v2433 = vadd.f32 %v2177, 1.0
    %v2434 = vadd.f32 %v2178, 1.0
    %v2435 = vadd.f32 %v2179, 1.0
    %v2436 = vadd.f32 %v2180, 1.0
    %v2437 = vadd.f32 %v2181, 1.0
    %v2438 = vadd.f32 %v2182, 1.0
    %v2439 = vadd.f32 %v2183, 1.0
    %v2440 = vadd.f32 %v2184, 1.0
    %v2441 = vadd.f32 %v2185, 1.0
    %v2442 = vadd.f32 %v2186, 1.0
    %v2443 = vadd.f32 %v2187, 1.0
    %v2444 = vadd.f32 %v2188, 1.0
    %v2445 = vadd.f32 %v2189, 1.0
    %v2446 = vadd.f32 %v2190, 1.0
    %v2447 = vadd.f32 %v2191, 1.0
    %v2448 = vadd.f32 %v2192, 1.0
    %v2449 = vadd.f32 %v2193, 1.0
    %v2450 = vadd.f32 %v2194, 1.0
    %v2451 = vadd.f32 %v2195, 1.0
    %v2452 = vadd.f32 %v2196, 1.0
    %v2453 = vadd.f32 %v2197, 1.0
    %v2454 = vadd.f32 %v2198, 1.0
    %v2455 = vadd.f32 %v2199, 1.0
    %v2456 = vadd.f32 %v2200, 1.0
    %v2457 = vadd.f32 %v2201, 1.0
    %v2458 = vadd.f32 %v2202, 1.0
    %v2459 = vadd.f32 %v2203, 1.0
    %v2460 = vadd.f32 %v2204, 1.0
    %v2461 = vadd.f32 %v2205, 1.0
    %v2462 = vadd.f32 %v2206, 1.0
    %v2463 = vadd.f32 %v2207, 1.0
    %v2464 = vadd.f32 %v2208, 1.0
    %v2465 = vadd.f32 %v2209, 1.0
    %v2466 = vadd.f32 %v2210, 1.0
    %v2467 = vadd.f32 %v2211, 1.0
    %v2468 = vadd.f32 %v2212, 1.0
    %v2469 = vadd.f32 %v2213, 1.0
    %v2470 = vadd.f32 %v2214, 1.0
    %v2471 = vadd.f32 %v2215, 1.0
    %v2472 = vadd.f32 %v2216, 1.0
    %v2473 = vadd.f32 %v2217, 1.0
    %v2474 = vadd.f32 %v2218, 1.0
    %v2475 = vadd.f32 %v2219, 1.0
    %v2476 = vadd.f32 %v2220, 1.0
    %v2477 = vadd.f32 %v2221, 1.0
    %v2478 = vadd.f32 %v2222, 1.0
    %v2479 = vadd.f32 %v2223, 1.0
    %v2480 = vadd.f32 %v2224, 1.0
    %v2481 = vadd.f32 %v2225, 1.0
    %v2482 = vadd.f32 %v2226, 1.0
    %v2483 = vadd.f32 %v2227, 1.0
    %v2484 = vadd.f32 %v2228, 1.0
    %v2485 = vadd.f32 %v2229, 1.0
    %v2486 = vadd.f32 %v2230, 1.0
    %v2487 = vadd.f32 %v2231, 1.0
    %v2488 = vadd.f32 %v2232, 1.0
    %v2489 = vadd.f32 %v2233, 1.0
    %v2490 = vadd.f32 %v2234, 1.0
    %v2491 = vadd.f32 %v2235, 1.0
    %v2492 = vadd.f32 %v2236, 1.0
    %v2493 = vadd.f32 %v2237, 1.0
    %v2494 = vadd.f32 %v2238, 1.0
    %v2495 = vadd.f32 %v2239, 1.0
    %v2496 = vadd.f32 %v2240, 1.0
    %v2497 = vadd.f32 %v2241, 1.0
    %v2498 = vadd.f32 %v2242, 1.0
    %v2499 = vadd.f32 %v2243, 1.0
    %v2500 = vadd.f32 %v2244, 1.0
    %v2501 = vadd.f32 %v2245, 1.0
    %v2502 = vadd.f32 %v2246, 1.0
    %v2503 = vadd.f32 %v2247, 1.0
    %v2504 = vadd.f32 %v2248, 1.0
    %v2505 = vadd.f32 %v2249, 1.0
    %v2506 = vadd.f32 %v2250, 1.0
    %v2507 = vadd.f32 %v2251, 1.0
    %v2508 = vadd.f32 %v2252, 1.0
    %v2509 = vadd.f32 %v2253, 1.0
    %v2510 = vadd.f32 %v2254, 1.0
    %v2511 = vadd.f32 %v2255, 1.0
    %v2512 = vadd.f32 %v2256, 1.0
    %v2513 = vadd.f32 %v2257, 1.0
    %v2514 = vadd.f32 %v2258, 1.0
    %v2515 = vadd.f32 %v2259, 1.0
    %v2516 = vadd.f32 %v2260, 1.0
    %v2517 = vadd.f32 %v2261, 1.0
    %v2518 = vadd.f32 %v2262, 1.0
    %v2519 = vadd.f32 %v2263, 1.0
    %v2520 = vadd.f32 %v2264, 1.0
    %v2521 = vadd.f32 %v2265, 1.0
    %v2522 = vadd.f32 %v2266, 1.0
    %v2523 = vadd.f32 %v2267, 1.0
    %v2524 = vadd.f32 %v2268, 1.0
    %v2525 = vadd.f32 %v2269, 1.0
    %v2526 = vadd.f32 %v2270, 1.0
    %v2527 = vadd.f32 %v2271, 1.0
    %v2528 = vadd.f32 %v2272, 1.0
    %v2529 = vadd.f32 %v2273, 1.0
    %v2530 = vadd.f32 %v2274, 1.0
    %v2531 = vadd.f32 %v2275, 1.0
    %v2532 = vadd.f32 %v2276, 1.0
    %v2533 = vadd.f32 %v2277, 1.0
    %v2534 = vadd.f32 %v2278, 1.0
    %v2535 = vadd.f32 %v2279, 1.0
    %v2536 = vadd.f32 %v2280, 1.0
    %v2537 = vadd.f32 %v2281, 1.0
    %v2538 = vadd.f32 %v2282, 1.0
    %v2539 = vadd.f32 %v2283, 1.0
    %v2540 = vadd.f32 %v2284, 1.0
    %v2541 = vadd.f32 %v2285, 1.0
    %v2542 = vadd.f32 %v2286, 1.0
    %v2543 = vadd.f32 %v2287, 1.0
    %v2544 = vadd.f32 %v2288, 1.0
    %v2545 = vadd.f32 %v2289, 1.0
    %v2546 = vadd.f32 %v2290, 1.0
    %v2547 = vadd.f32 %v2291, 1.0
    %v2548 = vadd.f32 %v2292, 1.0
    %v2549 = vadd.f32 %v2293, 1.0
    %v2550 = vadd.f32 %v2294, 1.0
    %v2551 = vadd.f32 %v2295, 1.0
    %v2552 = vadd.f32 %v2296, 1.0
    %v2553 = vadd.f32 %v2297, 1.0
    %v2554 = vadd.f32 %v2298, 1.0
    %v2555 = vadd.f32 %v2299, 1.0
    %v2556 = vadd.f32 %v2300, 1.0
    %v2557 = vadd.f32 %v2301, 1.0
    %v2558 = vadd.f32 %v2302, 1.0
    %v2559 = vadd.f32 %v2303, 1.0
    %v2560 = vadd.f32 %v2304, 1.0
    %v2561 = vadd.f32 %v2305, 1.0
    %v2562 = vadd.f32 %v2306, 1.0
    %v2563 = vadd.f32 %v2307, 1.0
    %v2564 = vadd.f32 %v2308, 1.0
    %v2565 = vadd.f32 %v2309, 1.0
    %v2566 = vadd.f32 %v2310, 1.0
    %v2567 = vadd.f32 %v2311, 1.0
    %v2568 = vmul.f32 %v1544, %v2312
    %v2569 = vmul.f32 %v1545, %v2313
    %v2570 = vmul.f32 %v1546, %v2314
    %v2571 = vmul.f32 %v1547, %v2315
    %v2572 = vmul.f32 %v1548, %v2316
    %v2573 = vmul.f32 %v1549, %v2317
    %v2574 = vmul.f32 %v1550, %v2318
    %v2575 = vmul.f32 %v1551, %v2319
    %v2576 = vmul.f32 %v1552, %v2320
    %v2577 = vmul.f32 %v1553, %v2321
    %v2578 = vmul.f32 %v1554, %v2322
    %v2579 = vmul.f32 %v1555, %v2323
    %v2580 = vmul.f32 %v1556, %v2324
    %v2581 = vmul.f32 %v1557, %v2325
    %v2582 = vmul.f32 %v1558, %v2326
    %v2583 = vmul.f32 %v1559, %v2327
    %v2584 = vmul.f32 %v1560, %v2328
    %v2585 = vmul.f32 %v1561, %v2329
    %v2586 = vmul.f32 %v1562, %v2330
    %v2587 = vmul.f32 %v1563, %v2331
    %v2588 = vmul.f32 %v1564, %v2332
    %v2589 = vmul.f32 %v1565, %v2333
    %v2590 = vmul.f32 %v1566, %v2334
    %v2591 = vmul.f32 %v1567, %v2335
    %v2592 = vmul.f32 %v1568, %v2336
    %v2593 = vmul.f32 %v1569, %v2337
    %v2594 = vmul.f32 %v1570, %v2338
    %v2595 = vmul.f32 %v1571, %v2339
    %v2596 = vmul.f32 %v1572, %v2340
    %v2597 = vmul.f32 %v1573, %v2341
    %v2598 = vmul.f32 %v1574, %v2342
    %v2599 = vmul.f32 %v1575, %v2343
    %v2600 = vmul.f32 %v1576, %v2344
    %v2601 = vmul.f32 %v1577, %v2345
    %v2602 = vmul.f32 %v1578, %v2346
    %v2603 = vmul.f32 %v1579, %v2347
    %v2604 = vmul.f32 %v1580, %v2348
    %v2605 = vmul.f32 %v1581, %v2349
    %v2606 = vmul.f32 %v1582, %v2350
    %v2607 = vmul.f32 %v1583, %v2351
    %v2608 = vmul.f32 %v1584, %v2352
    %v2609 = vmul.f32 %v1585, %v2353
    %v2610 = vmul.f32 %v1586, %v2354
    %v2611 = vmul.f32 %v1587, %v2355
    %v2612 = vmul.f32 %v1588, %v2356
    %v2613 = vmul.f32 %v1589, %v2357
    %v2614 = vmul.f32 %v1590, %v2358
    %v2615 = vmul.f32 %v1591, %v2359
    %v2616 = vmul.f32 %v1592, %v2360
    %v2617 = vmul.f32 %v1593, %v2361
    %v2618 = vmul.f32 %v1594, %v2362
    %v2619 = vmul.f32 %v1595, %v2363
    %v2620 = vmul.f32 %v1596, %v2364
    %v2621 = vmul.f32 %v1597, %v2365
    %v2622 = vmul.f32 %v1598, %v2366
    %v2623 = vmul.f32 %v1599, %v2367
    %v2624 = vmul.f32 %v1600, %v2368
    %v2625 = vmul.f32 %v1601, %v2369
    %v2626 = vmul.f32 %v1602, %v2370
    %v2627 = vmul.f32 %v1603, %v2371
    %v2628 = vmul.f32 %v1604, %v2372
    %v2629 = vmul.f32 %v1605, %v2373
    %v2630 = vmul.f32 %v1606, %v2374
    %v2631 = vmul.f32 %v1607, %v2375
    %v2632 = vmul.f32 %v1608, %v2376
    %v2633 = vmul.f32 %v1609, %v2377
    %v2634 = vmul.f32 %v1610, %v2378
    %v2635 = vmul.f32 %v1611, %v2379
    %v2636 = vmul.f32 %v1612, %v2380
    %v2637 = vmul.f32 %v1613, %v2381
    %v2638 = vmul.f32 %v1614, %v2382
    %v2639 = vmul.f32 %v1615, %v2383
    %v2640 = vmul.f32 %v1616, %v2384
    %v2641 = vmul.f32 %v1617, %v2385
    %v2642 = vmul.f32 %v1618, %v2386
    %v2643 = vmul.f32 %v1619, %v2387
    %v2644 = vmul.f32 %v1620, %v2388
    %v2645 = vmul.f32 %v1621, %v2389
    %v2646 = vmul.f32 %v1622, %v2390
    %v2647 = vmul.f32 %v1623, %v2391
    %v2648 = vmul.f32 %v1624, %v2392
    %v2649 = vmul.f32 %v1625, %v2393
    %v2650 = vmul.f32 %v1626, %v2394
    %v2651 = vmul.f32 %v1627, %v2395
    %v2652 = vmul.f32 %v1628, %v2396
    %v2653 = vmul.f32 %v1629, %v2397
    %v2654 = vmul.f32 %v1630, %v2398
    %v2655 = vmul.f32 %v1631, %v2399
    %v2656 = vmul.f32 %v1632, %v2400
    %v2657 = vmul.f32 %v1633, %v2401
    %v2658 = vmul.f32 %v1634, %v2402
    %v2659 = vmul.f32 %v1635, %v2403
    %v2660 = vmul.f32 %v1636, %v2404
    %v2661 = vmul.f32 %v1637, %v2405
    %v2662 = vmul.f32 %v1638, %v2406
    %v2663 = vmul.f32 %v1639, %v2407
    %v2664 = vmul.f32 %v1640, %v2408
    %v2665 = vmul.f32 %v1641, %v2409
    %v2666 = vmul.f32 %v1642, %v2410
    %v2667 = vmul.f32 %v1643, %v2411
    %v2668 = vmul.f32 %v1644, %v2412
    %v2669 = vmul.f32 %v1645, %v2413
    %v2670 = vmul.f32 %v1646, %v2414
    %v2671 = vmul.f32 %v1647, %v2415
    %v2672 = vmul.f32 %v1648, %v2416
    %v2673 = vmul.f32 %v1649, %v2417
    %v2674 = vmul.f32 %v1650, %v2418
    %v2675 = vmul.f32 %v1651, %v2419
    %v2676 = vmul.f32 %v1652, %v2420
    %v2677 = vmul.f32 %v1653, %v2421
    %v2678 = vmul.f32 %v1654, %v2422
    %v2679 = vmul.f32 %v1655, %v2423
    %v2680 = vmul.f32 %v1656, %v2424
    %v2681 = vmul.f32 %v1657, %v2425
    %v2682 = vmul.f32 %v1658, %v2426
    %v2683 = vmul.f32 %v1659, %v2427
    %v2684 = vmul.f32 %v1660, %v2428
    %v2685 = vmul.f32 %v1661, %v2429
    %v2686 = vmul.f32 %v1662, %v2430
    %v2687 = vmul.f32 %v1663, %v2431
    %v2688 = vmul.f32 %v1664, %v2432
    %v2689 = vmul.f32 %v1665, %v2433
    %v2690 = vmul.f32 %v1666, %v2434
    %v2691 = vmul.f32 %v1667, %v2435
    %v2692 = vmul.f32 %v1668, %v2436
    %v2693 = vmul.f32 %v1669, %v2437
    %v2694 = vmul.f32 %v1670, %v2438
    %v2695 = vmul.f32 %v1671, %v2439
    %v2696 = vmul.f32 %v1672, %v2440
    %v2697 = vmul.f32 %v1673, %v2441
    %v2698 = vmul.f32 %v1674, %v2442
    %v2699 = vmul.f32 %v1675, %v2443
    %v2700 = vmul.f32 %v1676, %v2444
    %v2701 = vmul.f32 %v1677, %v2445
    %v2702 = vmul.f32 %v1678, %v2446
    %v2703 = vmul.f32 %v1679, %v2447
    %v2704 = vmul.f32 %v1680, %v2448
    %v2705 = vmul.f32 %v1681, %v2449
    %v2706 = vmul.f32 %v1682, %v2450
    %v2707 = vmul.f32 %v1683, %v2451
    %v2708 = vmul.f32 %v1684, %v2452
    %v2709 = vmul.f32 %v1685, %v2453
    %v2710 = vmul.f32 %v1686, %v2454
    %v2711 = vmul.f32 %v1687, %v2455
    %v2712 = vmul.f32 %v1688, %v2456
    %v2713 = vmul.f32 %v1689, %v2457
    %v2714 = vmul.f32 %v1690, %v2458
    %v2715 = vmul.f32 %v1691, %v2459
    %v2716 = vmul.f32 %v1692, %v2460
    %v2717 = vmul.f32 %v1693, %v2461
    %v2718 = vmul.f32 %v1694, %v2462
    %v2719 = vmul.f32 %v1695, %v2463
    %v2720 = vmul.f32 %v1696, %v2464
    %v2721 = vmul.f32 %v1697, %v2465
    %v2722 = vmul.f32 %v1698, %v2466
    %v2723 = vmul.f32 %v1699, %v2467
    %v2724 = vmul.f32 %v1700, %v2468
    %v2725 = vmul.f32 %v1701, %v2469
    %v2726 = vmul.f32 %v1702, %v2470
    %v2727 = vmul.f32 %v1703, %v2471
    %v2728 = vmul.f32 %v1704, %v2472
    %v2729 = vmul.f32 %v1705, %v2473
    %v2730 = vmul.f32 %v1706, %v2474
    %v2731 = vmul.f32 %v1707, %v2475
    %v2732 = vmul.f32 %v1708, %v2476
    %v2733 = vmul.f32 %v1709, %v2477
    %v2734 = vmul.f32 %v1710, %v2478
    %v2735 = vmul.f32 %v1711, %v2479
    %v2736 = vmul.f32 %v1712, %v2480
    %v2737 = vmul.f32 %v1713, %v2481
    %v2738 = vmul.f32 %v1714, %v2482
    %v2739 = vmul.f32 %v1715, %v2483
    %v2740 = vmul.f32 %v1716, %v2484
    %v2741 = vmul.f32 %v1717, %v2485
    %v2742 = vmul.f32 %v1718, %v2486
    %v2743 = vmul.f32 %v1719, %v2487
    %v2744 = vmul.f32 %v1720, %v2488
    %v2745 = vmul.f32 %v1721, %v2489
    %v2746 = vmul.f32 %v1722, %v2490
    %v2747 = vmul.f32 %v1723, %v2491
    %v2748 = vmul.f32 %v1724, %v2492
    %v2749 = vmul.f32 %v1725, %v2493
    %v2750 = vmul.f32 %v1726, %v2494
    %v2751 = vmul.f32 %v1727, %v2495
    %v2752 = vmul.f32 %v1728, %v2496
    %v2753 = vmul.f32 %v1729, %v2497
    %v2754 = vmul.f32 %v1730, %v2498
    %v2755 = vmul.f32 %v1731, %v2499
    %v2756 = vmul.f32 %v1732, %v2500
    %v2757 = vmul.f32 %v1733, %v2501
    %v2758 = vmul.f32 %v1734, %v2502
    %v2759 = vmul.f32 %v1735, %v2503
    %v2760 = vmul.f32 %v1736, %v2504
    %v2761 = vmul.f32 %v1737, %v2505
    %v2762 = vmul.f32 %v1738, %v2506
    %v2763 = vmul.f32 %v1739, %v2507
    %v2764 = vmul.f32 %v1740, %v2508
    %v2765 = vmul.f32 %v1741, %v2509
    %v2766 = vmul.f32 %v1742, %v2510
    %v2767 = vmul.f32 %v1743, %v2511
    %v2768 = vmul.f32 %v1744, %v2512
    %v2769 = vmul.f32 %v1745, %v2513
    %v2770 = vmul.f32 %v1746, %v2514
    %v2771 = vmul.f32 %v1747, %v2515
    %v2772 = vmul.f32 %v1748, %v2516
    %v2773 = vmul.f32 %v1749, %v2517
    %v2774 = vmul.f32 %v1750, %v2518
    %v2775 = vmul.f32 %v1751, %v2519
    %v2776 = vmul.f32 %v1752, %v2520
    %v2777 = vmul.f32 %v1753, %v2521
    %v2778 = vmul.f32 %v1754, %v2522
    %v2779 = vmul.f32 %v1755, %v2523
    %v2780 = vmul.f32 %v1756, %v2524
    %v2781 = vmul.f32 %v1757, %v2525
    %v2782 = vmul.f32 %v1758, %v2526
    %v2783 = vmul.f32 %v1759, %v2527
    %v2784 = vmul.f32 %v1760, %v2528
    %v2785 = vmul.f32 %v1761, %v2529
    %v2786 = vmul.f32 %v1762, %v2530
    %v2787 = vmul.f32 %v1763, %v2531
    %v2788 = vmul.f32 %v1764, %v2532
    %v2789 = vmul.f32 %v1765, %v2533
    %v2790 = vmul.f32 %v1766, %v2534
    %v2791 = vmul.f32 %v1767, %v2535
    %v2792 = vmul.f32 %v1768, %v2536
    %v2793 = vmul.f32 %v1769, %v2537
    %v2794 = vmul.f32 %v1770, %v2538
    %v2795 = vmul.f32 %v1771, %v2539
    %v2796 = vmul.f32 %v1772, %v2540
    %v2797 = vmul.f32 %v1773, %v2541
    %v2798 = vmul.f32 %v1774, %v2542
    %v2799 = vmul.f32 %v1775, %v2543
    %v2800 = vmul.f32 %v1776, %v2544
    %v2801 = vmul.f32 %v1777, %v2545
    %v2802 = vmul.f32 %v1778, %v2546
    %v2803 = vmul.f32 %v1779, %v2547
    %v2804 = vmul.f32 %v1780, %v2548
    %v2805 = vmul.f32 %v1781, %v2549
    %v2806 = vmul.f32 %v1782, %v2550
    %v2807 = vmul.f32 %v1783, %v2551
    %v2808 = vmul.f32 %v1784, %v2552
    %v2809 = vmul.f32 %v1785, %v2553
    %v2810 = vmul.f32 %v1786, %v2554
    %v2811 = vmul.f32 %v1787, %v2555
    %v2812 = vmul.f32 %v1788, %v2556
    %v2813 = vmul.f32 %v1789, %v2557
    %v2814 = vmul.f32 %v1790, %v2558
    %v2815 = vmul.f32 %v1791, %v2559
    %v2816 = vmul.f32 %v1792, %v2560
    %v2817 = vmul.f32 %v1793, %v2561
    %v2818 = vmul.f32 %v1794, %v2562
    %v2819 = vmul.f32 %v1795, %v2563
    %v2820 = vmul.f32 %v1796, %v2564
    %v2821 = vmul.f32 %v1797, %v2565
    %v2822 = vmul.f32 %v1798, %v2566
    %v2823 = vmul.f32 %v1799, %v2567
    %v2824 = vld [vmem:[#allocation2] sm:$0xff]
    %v2825 = vld [vmem:[#allocation2 + $0x8] sm:$0xff]
    %v2826 = vld [vmem:[#allocation2 + $0x10] sm:$0xff]
    %v2827 = vld [vmem:[#allocation2 + $0x18] sm:$0xff]
    %v2828 = vld [vmem:[#allocation2 + $0x20] sm:$0xff]
    %v2829 = vld [vmem:[#allocation2 + $0x28] sm:$0xff]
    %v2830 = vld [vmem:[#allocation2 + $0x30] sm:$0xff]
    %v2831 = vld [vmem:[#allocation2 + $0x38] sm:$0xff]
    %v2832 = vld [vmem:[#allocation2 + $0x40] sm:$0xff]
    %v2833 = vld [vmem:[#allocation2 + $0x48] sm:$0xff]
    %v2834 = vld [vmem:[#allocation2 + $0x50] sm:$0xff]
    %v2835 = vld [vmem:[#allocation2 + $0x58] sm:$0xff]
    %v2836 = vld [vmem:[#allocation2 + $0x60] sm:$0xff]
    %v2837 = vld [vmem:[#allocation2 + $0x68] sm:$0xff]
    %v2838 = vld [vmem:[#allocation2 + $0x70] sm:$0xff]
    %v2839 = vld [vmem:[#allocation2 + $0x78] sm:$0xff]
    %v2840 = vld [vmem:[#allocation2 + $0x80] sm:$0xff]
    %v2841 = vld [vmem:[#allocation2 + $0x88] sm:$0xff]
    %v2842 = vld [vmem:[#allocation2 + $0x90] sm:$0xff]
    %v2843 = vld [vmem:[#allocation2 + $0x98] sm:$0xff]
    %v2844 = vld [vmem:[#allocation2 + $0xa0] sm:$0xff]
    %v2845 = vld [vmem:[#allocation2 + $0xa8] sm:$0xff]
    %v2846 = vld [vmem:[#allocation2 + $0xb0] sm:$0xff]
    %v2847 = vld [vmem:[#allocation2 + $0xb8] sm:$0xff]
    %v2848 = vld [vmem:[#allocation2 + $0xc0] sm:$0xff]
    %v2849 = vld [vmem:[#allocation2 + $0xc8] sm:$0xff]
    %v2850 = vld [vmem:[#allocation2 + $0xd0] sm:$0xff]
    %v2851 = vld [vmem:[#allocation2 + $0xd8] sm:$0xff]
    %v2852 = vld [vmem:[#allocation2 + $0xe0] sm:$0xff]
    %v2853 = vld [vmem:[#allocation2 + $0xe8] sm:$0xff]
    %v2854 = vld [vmem:[#allocation2 + $0xf0] sm:$0xff]
    %v2855 = vld [vmem:[#allocation2 + $0xf8] sm:$0xff]
    %v2856 = vld [vmem:[#allocation2 + $0x100] sm:$0xff]
    %v2857 = vld [vmem:[#allocation2 + $0x108] sm:$0xff]
    %v2858 = vld [vmem:[#allocation2 + $0x110] sm:$0xff]
    %v2859 = vld [vmem:[#allocation2 + $0x118] sm:$0xff]
    %v2860 = vld [vmem:[#allocation2 + $0x120] sm:$0xff]
    %v2861 = vld [vmem:[#allocation2 + $0x128] sm:$0xff]
    %v2862 = vld [vmem:[#allocation2 + $0x130] sm:$0xff]
    %v2863 = vld [vmem:[#allocation2 + $0x138] sm:$0xff]
    %v2864 = vld [vmem:[#allocation2 + $0x140] sm:$0xff]
    %v2865 = vld [vmem:[#allocation2 + $0x148] sm:$0xff]
    %v2866 = vld [vmem:[#allocation2 + $0x150] sm:$0xff]
    %v2867 = vld [vmem:[#allocation2 + $0x158] sm:$0xff]
    %v2868 = vld [vmem:[#allocation2 + $0x160] sm:$0xff]
    %v2869 = vld [vmem:[#allocation2 + $0x168] sm:$0xff]
    %v2870 = vld [vmem:[#allocation2 + $0x170] sm:$0xff]
    %v2871 = vld [vmem:[#allocation2 + $0x178] sm:$0xff]
    %v2872 = vld [vmem:[#allocation2 + $0x180] sm:$0xff]
    %v2873 = vld [vmem:[#allocation2 + $0x188] sm:$0xff]
    %v2874 = vld [vmem:[#allocation2 + $0x190] sm:$0xff]
    %v2875 = vld [vmem:[#allocation2 + $0x198] sm:$0xff]
    %v2876 = vld [vmem:[#allocation2 + $0x1a0] sm:$0xff]
    %v2877 = vld [vmem:[#allocation2 + $0x1a8] sm:$0xff]
    %v2878 = vld [vmem:[#allocation2 + $0x1b0] sm:$0xff]
    %v2879 = vld [vmem:[#allocation2 + $0x1b8] sm:$0xff]
    %v2880 = vld [vmem:[#allocation2 + $0x1c0] sm:$0xff]
    %v2881 = vld [vmem:[#allocation2 + $0x1c8] sm:$0xff]
    %v2882 = vld [vmem:[#allocation2 + $0x1d0] sm:$0xff]
    %v2883 = vld [vmem:[#allocation2 + $0x1d8] sm:$0xff]
    %v2884 = vld [vmem:[#allocation2 + $0x1e0] sm:$0xff]
    %v2885 = vld [vmem:[#allocation2 + $0x1e8] sm:$0xff]
    %v2886 = vld [vmem:[#allocation2 + $0x1f0] sm:$0xff]
    %v2887 = vld [vmem:[#allocation2 + $0x1f8] sm:$0xff]
    %v2888 = vld [vmem:[#allocation9] sm:$0xff]
    %v2889 = vld [vmem:[#allocation9 + $0x8] sm:$0xff]
    %v2890 = vld [vmem:[#allocation9 + $0x10] sm:$0xff]
    %v2891 = vld [vmem:[#allocation9 + $0x18] sm:$0xff]
    %v2892 = vld [vmem:[#allocation9 + $0x20] sm:$0xff]
    %v2893 = vld [vmem:[#allocation9 + $0x28] sm:$0xff]
    %v2894 = vld [vmem:[#allocation9 + $0x30] sm:$0xff]
    %v2895 = vld [vmem:[#allocation9 + $0x38] sm:$0xff]
    %v2896 = vld [vmem:[#allocation9 + $0x40] sm:$0xff]
    %v2897 = vld [vmem:[#allocation9 + $0x48] sm:$0xff]
    %v2898 = vld [vmem:[#allocation9 + $0x50] sm:$0xff]
    %v2899 = vld [vmem:[#allocation9 + $0x58] sm:$0xff]
    %v2900 = vld [vmem:[#allocation9 + $0x60] sm:$0xff]
    %v2901 = vld [vmem:[#allocation9 + $0x68] sm:$0xff]
    %v2902 = vld [vmem:[#allocation9 + $0x70] sm:$0xff]
    %v2903 = vld [vmem:[#allocation9 + $0x78] sm:$0xff]
    %v2904 = vld [vmem:[#allocation9 + $0x80] sm:$0xff]
    %v2905 = vld [vmem:[#allocation9 + $0x88] sm:$0xff]
    %v2906 = vld [vmem:[#allocation9 + $0x90] sm:$0xff]
    %v2907 = vld [vmem:[#allocation9 + $0x98] sm:$0xff]
    %v2908 = vld [vmem:[#allocation9 + $0xa0] sm:$0xff]
    %v2909 = vld [vmem:[#allocation9 + $0xa8] sm:$0xff]
    %v2910 = vld [vmem:[#allocation9 + $0xb0] sm:$0xff]
    %v2911 = vld [vmem:[#allocation9 + $0xb8] sm:$0xff]
    %v2912 = vld [vmem:[#allocation9 + $0xc0] sm:$0xff]
    %v2913 = vld [vmem:[#allocation9 + $0xc8] sm:$0xff]
    %v2914 = vld [vmem:[#allocation9 + $0xd0] sm:$0xff]
    %v2915 = vld [vmem:[#allocation9 + $0xd8] sm:$0xff]
    %v2916 = vld [vmem:[#allocation9 + $0xe0] sm:$0xff]
    %v2917 = vld [vmem:[#allocation9 + $0xe8] sm:$0xff]
    %v2918 = vld [vmem:[#allocation9 + $0xf0] sm:$0xff]
    %v2919 = vld [vmem:[#allocation9 + $0xf8] sm:$0xff]
    %v2920 = vld [vmem:[#allocation9 + $0x100] sm:$0xff]
    %v2921 = vld [vmem:[#allocation9 + $0x108] sm:$0xff]
    %v2922 = vld [vmem:[#allocation9 + $0x110] sm:$0xff]
    %v2923 = vld [vmem:[#allocation9 + $0x118] sm:$0xff]
    %v2924 = vld [vmem:[#allocation9 + $0x120] sm:$0xff]
    %v2925 = vld [vmem:[#allocation9 + $0x128] sm:$0xff]
    %v2926 = vld [vmem:[#allocation9 + $0x130] sm:$0xff]
    %v2927 = vld [vmem:[#allocation9 + $0x138] sm:$0xff]
    %v2928 = vld [vmem:[#allocation9 + $0x140] sm:$0xff]
    %v2929 = vld [vmem:[#allocation9 + $0x148] sm:$0xff]
    %v2930 = vld [vmem:[#allocation9 + $0x150] sm:$0xff]
    %v2931 = vld [vmem:[#allocation9 + $0x158] sm:$0xff]
    %v2932 = vld [vmem:[#allocation9 + $0x160] sm:$0xff]
    %v2933 = vld [vmem:[#allocation9 + $0x168] sm:$0xff]
    %v2934 = vld [vmem:[#allocation9 + $0x170] sm:$0xff]
    %v2935 = vld [vmem:[#allocation9 + $0x178] sm:$0xff]
    %v2936 = vld [vmem:[#allocation9 + $0x180] sm:$0xff]
    %v2937 = vld [vmem:[#allocation9 + $0x188] sm:$0xff]
    %v2938 = vld [vmem:[#allocation9 + $0x190] sm:$0xff]
    %v2939 = vld [vmem:[#allocation9 + $0x198] sm:$0xff]
    %v2940 = vld [vmem:[#allocation9 + $0x1a0] sm:$0xff]
    %v2941 = vld [vmem:[#allocation9 + $0x1a8] sm:$0xff]
    %v2942 = vld [vmem:[#allocation9 + $0x1b0] sm:$0xff]
    %v2943 = vld [vmem:[#allocation9 + $0x1b8] sm:$0xff]
    %v2944 = vld [vmem:[#allocation9 + $0x1c0] sm:$0xff]
    %v2945 = vld [vmem:[#allocation9 + $0x1c8] sm:$0xff]
    %v2946 = vld [vmem:[#allocation9 + $0x1d0] sm:$0xff]
    %v2947 = vld [vmem:[#allocation9 + $0x1d8] sm:$0xff]
    %v2948 = vld [vmem:[#allocation9 + $0x1e0] sm:$0xff]
    %v2949 = vld [vmem:[#allocation9 + $0x1e8] sm:$0xff]
    %v2950 = vld [vmem:[#allocation9 + $0x1f0] sm:$0xff]
    %v2951 = vld [vmem:[#allocation9 + $0x1f8] sm:$0xff]
    %v2952 = vld [vmem:[#allocation9 + $0x200] sm:$0xff]
    %v2953 = vld [vmem:[#allocation9 + $0x208] sm:$0xff]
    %v2954 = vld [vmem:[#allocation9 + $0x210] sm:$0xff]
    %v2955 = vld [vmem:[#allocation9 + $0x218] sm:$0xff]
    %v2956 = vld [vmem:[#allocation9 + $0x220] sm:$0xff]
    %v2957 = vld [vmem:[#allocation9 + $0x228] sm:$0xff]
    %v2958 = vld [vmem:[#allocation9 + $0x230] sm:$0xff]
    %v2959 = vld [vmem:[#allocation9 + $0x238] sm:$0xff]
    %v2960 = vld [vmem:[#allocation9 + $0x240] sm:$0xff]
    %v2961 = vld [vmem:[#allocation9 + $0x248] sm:$0xff]
    %v2962 = vld [vmem:[#allocation9 + $0x250] sm:$0xff]
    %v2963 = vld [vmem:[#allocation9 + $0x258] sm:$0xff]
    %v2964 = vld [vmem:[#allocation9 + $0x260] sm:$0xff]
    %v2965 = vld [vmem:[#allocation9 + $0x268] sm:$0xff]
    %v2966 = vld [vmem:[#allocation9 + $0x270] sm:$0xff]
    %v2967 = vld [vmem:[#allocation9 + $0x278] sm:$0xff]
    %v2968 = vld [vmem:[#allocation9 + $0x280] sm:$0xff]
    %v2969 = vld [vmem:[#allocation9 + $0x288] sm:$0xff]
    %v2970 = vld [vmem:[#allocation9 + $0x290] sm:$0xff]
    %v2971 = vld [vmem:[#allocation9 + $0x298] sm:$0xff]
    %v2972 = vld [vmem:[#allocation9 + $0x2a0] sm:$0xff]
    %v2973 = vld [vmem:[#allocation9 + $0x2a8] sm:$0xff]
    %v2974 = vld [vmem:[#allocation9 + $0x2b0] sm:$0xff]
    %v2975 = vld [vmem:[#allocation9 + $0x2b8] sm:$0xff]
    %v2976 = vld [vmem:[#allocation9 + $0x2c0] sm:$0xff]
    %v2977 = vld [vmem:[#allocation9 + $0x2c8] sm:$0xff]
    %v2978 = vld [vmem:[#allocation9 + $0x2d0] sm:$0xff]
    %v2979 = vld [vmem:[#allocation9 + $0x2d8] sm:$0xff]
    %v2980 = vld [vmem:[#allocation9 + $0x2e0] sm:$0xff]
    %v2981 = vld [vmem:[#allocation9 + $0x2e8] sm:$0xff]
    %v2982 = vld [vmem:[#allocation9 + $0x2f0] sm:$0xff]
    %v2983 = vld [vmem:[#allocation9 + $0x2f8] sm:$0xff]
    %v2984 = vld [vmem:[#allocation9 + $0x300] sm:$0xff]
    %v2985 = vld [vmem:[#allocation9 + $0x308] sm:$0xff]
    %v2986 = vld [vmem:[#allocation9 + $0x310] sm:$0xff]
    %v2987 = vld [vmem:[#allocation9 + $0x318] sm:$0xff]
    %v2988 = vld [vmem:[#allocation9 + $0x320] sm:$0xff]
    %v2989 = vld [vmem:[#allocation9 + $0x328] sm:$0xff]
    %v2990 = vld [vmem:[#allocation9 + $0x330] sm:$0xff]
    %v2991 = vld [vmem:[#allocation9 + $0x338] sm:$0xff]
    %v2992 = vld [vmem:[#allocation9 + $0x340] sm:$0xff]
    %v2993 = vld [vmem:[#allocation9 + $0x348] sm:$0xff]
    %v2994 = vld [vmem:[#allocation9 + $0x350] sm:$0xff]
    %v2995 = vld [vmem:[#allocation9 + $0x358] sm:$0xff]
    %v2996 = vld [vmem:[#allocation9 + $0x360] sm:$0xff]
    %v2997 = vld [vmem:[#allocation9 + $0x368] sm:$0xff]
    %v2998 = vld [vmem:[#allocation9 + $0x370] sm:$0xff]
    %v2999 = vld [vmem:[#allocation9 + $0x378] sm:$0xff]
    %v3000 = vld [vmem:[#allocation9 + $0x380] sm:$0xff]
    %v3001 = vld [vmem:[#allocation9 + $0x388] sm:$0xff]
    %v3002 = vld [vmem:[#allocation9 + $0x390] sm:$0xff]
    %v3003 = vld [vmem:[#allocation9 + $0x398] sm:$0xff]
    %v3004 = vld [vmem:[#allocation9 + $0x3a0] sm:$0xff]
    %v3005 = vld [vmem:[#allocation9 + $0x3a8] sm:$0xff]
    %v3006 = vld [vmem:[#allocation9 + $0x3b0] sm:$0xff]
    %v3007 = vld [vmem:[#allocation9 + $0x3b8] sm:$0xff]
    %v3008 = vld [vmem:[#allocation9 + $0x3c0] sm:$0xff]
    %v3009 = vld [vmem:[#allocation9 + $0x3c8] sm:$0xff]
    %v3010 = vld [vmem:[#allocation9 + $0x3d0] sm:$0xff]
    %v3011 = vld [vmem:[#allocation9 + $0x3d8] sm:$0xff]
    %v3012 = vld [vmem:[#allocation9 + $0x3e0] sm:$0xff]
    %v3013 = vld [vmem:[#allocation9 + $0x3e8] sm:$0xff]
    %v3014 = vld [vmem:[#allocation9 + $0x3f0] sm:$0xff]
    %v3015 = vld [vmem:[#allocation9 + $0x3f8] sm:$0xff]
    %v3016 = vld [vmem:[#allocation9 + $0x400] sm:$0xff]
    %v3017 = vld [vmem:[#allocation9 + $0x408] sm:$0xff]
    %v3018 = vld [vmem:[#allocation9 + $0x410] sm:$0xff]
    %v3019 = vld [vmem:[#allocation9 + $0x418] sm:$0xff]
    %v3020 = vld [vmem:[#allocation9 + $0x420] sm:$0xff]
    %v3021 = vld [vmem:[#allocation9 + $0x428] sm:$0xff]
    %v3022 = vld [vmem:[#allocation9 + $0x430] sm:$0xff]
    %v3023 = vld [vmem:[#allocation9 + $0x438] sm:$0xff]
    %v3024 = vld [vmem:[#allocation9 + $0x440] sm:$0xff]
    %v3025 = vld [vmem:[#allocation9 + $0x448] sm:$0xff]
    %v3026 = vld [vmem:[#allocation9 + $0x450] sm:$0xff]
    %v3027 = vld [vmem:[#allocation9 + $0x458] sm:$0xff]
    %v3028 = vld [vmem:[#allocation9 + $0x460] sm:$0xff]
    %v3029 = vld [vmem:[#allocation9 + $0x468] sm:$0xff]
    %v3030 = vld [vmem:[#allocation9 + $0x470] sm:$0xff]
    %v3031 = vld [vmem:[#allocation9 + $0x478] sm:$0xff]
    %v3032 = vld [vmem:[#allocation9 + $0x480] sm:$0xff]
    %v3033 = vld [vmem:[#allocation9 + $0x488] sm:$0xff]
    %v3034 = vld [vmem:[#allocation9 + $0x490] sm:$0xff]
    %v3035 = vld [vmem:[#allocation9 + $0x498] sm:$0xff]
    %v3036 = vld [vmem:[#allocation9 + $0x4a0] sm:$0xff]
    %v3037 = vld [vmem:[#allocation9 + $0x4a8] sm:$0xff]
    %v3038 = vld [vmem:[#allocation9 + $0x4b0] sm:$0xff]
    %v3039 = vld [vmem:[#allocation9 + $0x4b8] sm:$0xff]
    %v3040 = vld [vmem:[#allocation9 + $0x4c0] sm:$0xff]
    %v3041 = vld [vmem:[#allocation9 + $0x4c8] sm:$0xff]
    %v3042 = vld [vmem:[#allocation9 + $0x4d0] sm:$0xff]
    %v3043 = vld [vmem:[#allocation9 + $0x4d8] sm:$0xff]
    %v3044 = vld [vmem:[#allocation9 + $0x4e0] sm:$0xff]
    %v3045 = vld [vmem:[#allocation9 + $0x4e8] sm:$0xff]
    %v3046 = vld [vmem:[#allocation9 + $0x4f0] sm:$0xff]
    %v3047 = vld [vmem:[#allocation9 + $0x4f8] sm:$0xff]
    %v3048 = vld [vmem:[#allocation9 + $0x500] sm:$0xff]
    %v3049 = vld [vmem:[#allocation9 + $0x508] sm:$0xff]
    %v3050 = vld [vmem:[#allocation9 + $0x510] sm:$0xff]
    %v3051 = vld [vmem:[#allocation9 + $0x518] sm:$0xff]
    %v3052 = vld [vmem:[#allocation9 + $0x520] sm:$0xff]
    %v3053 = vld [vmem:[#allocation9 + $0x528] sm:$0xff]
    %v3054 = vld [vmem:[#allocation9 + $0x530] sm:$0xff]
    %v3055 = vld [vmem:[#allocation9 + $0x538] sm:$0xff]
    %v3056 = vld [vmem:[#allocation9 + $0x540] sm:$0xff]
    %v3057 = vld [vmem:[#allocation9 + $0x548] sm:$0xff]
    %v3058 = vld [vmem:[#allocation9 + $0x550] sm:$0xff]
    %v3059 = vld [vmem:[#allocation9 + $0x558] sm:$0xff]
    %v3060 = vld [vmem:[#allocation9 + $0x560] sm:$0xff]
    %v3061 = vld [vmem:[#allocation9 + $0x568] sm:$0xff]
    %v3062 = vld [vmem:[#allocation9 + $0x570] sm:$0xff]
    %v3063 = vld [vmem:[#allocation9 + $0x578] sm:$0xff]
    %v3064 = vld [vmem:[#allocation9 + $0x580] sm:$0xff]
    %v3065 = vld [vmem:[#allocation9 + $0x588] sm:$0xff]
    %v3066 = vld [vmem:[#allocation9 + $0x590] sm:$0xff]
    %v3067 = vld [vmem:[#allocation9 + $0x598] sm:$0xff]
    %v3068 = vld [vmem:[#allocation9 + $0x5a0] sm:$0xff]
    %v3069 = vld [vmem:[#allocation9 + $0x5a8] sm:$0xff]
    %v3070 = vld [vmem:[#allocation9 + $0x5b0] sm:$0xff]
    %v3071 = vld [vmem:[#allocation9 + $0x5b8] sm:$0xff]
    %v3072 = vld [vmem:[#allocation9 + $0x5c0] sm:$0xff]
    %v3073 = vld [vmem:[#allocation9 + $0x5c8] sm:$0xff]
    %v3074 = vld [vmem:[#allocation9 + $0x5d0] sm:$0xff]
    %v3075 = vld [vmem:[#allocation9 + $0x5d8] sm:$0xff]
    %v3076 = vld [vmem:[#allocation9 + $0x5e0] sm:$0xff]
    %v3077 = vld [vmem:[#allocation9 + $0x5e8] sm:$0xff]
    %v3078 = vld [vmem:[#allocation9 + $0x5f0] sm:$0xff]
    %v3079 = vld [vmem:[#allocation9 + $0x5f8] sm:$0xff]
    %v3080 = vld [vmem:[#allocation9 + $0x600] sm:$0xff]
    %v3081 = vld [vmem:[#allocation9 + $0x608] sm:$0xff]
    %v3082 = vld [vmem:[#allocation9 + $0x610] sm:$0xff]
    %v3083 = vld [vmem:[#allocation9 + $0x618] sm:$0xff]
    %v3084 = vld [vmem:[#allocation9 + $0x620] sm:$0xff]
    %v3085 = vld [vmem:[#allocation9 + $0x628] sm:$0xff]
    %v3086 = vld [vmem:[#allocation9 + $0x630] sm:$0xff]
    %v3087 = vld [vmem:[#allocation9 + $0x638] sm:$0xff]
    %v3088 = vld [vmem:[#allocation9 + $0x640] sm:$0xff]
    %v3089 = vld [vmem:[#allocation9 + $0x648] sm:$0xff]
    %v3090 = vld [vmem:[#allocation9 + $0x650] sm:$0xff]
    %v3091 = vld [vmem:[#allocation9 + $0x658] sm:$0xff]
    %v3092 = vld [vmem:[#allocation9 + $0x660] sm:$0xff]
    %v3093 = vld [vmem:[#allocation9 + $0x668] sm:$0xff]
    %v3094 = vld [vmem:[#allocation9 + $0x670] sm:$0xff]
    %v3095 = vld [vmem:[#allocation9 + $0x678] sm:$0xff]
    %v3096 = vld [vmem:[#allocation9 + $0x680] sm:$0xff]
    %v3097 = vld [vmem:[#allocation9 + $0x688] sm:$0xff]
    %v3098 = vld [vmem:[#allocation9 + $0x690] sm:$0xff]
    %v3099 = vld [vmem:[#allocation9 + $0x698] sm:$0xff]
    %v3100 = vld [vmem:[#allocation9 + $0x6a0] sm:$0xff]
    %v3101 = vld [vmem:[#allocation9 + $0x6a8] sm:$0xff]
    %v3102 = vld [vmem:[#allocation9 + $0x6b0] sm:$0xff]
    %v3103 = vld [vmem:[#allocation9 + $0x6b8] sm:$0xff]
    %v3104 = vld [vmem:[#allocation9 + $0x6c0] sm:$0xff]
    %v3105 = vld [vmem:[#allocation9 + $0x6c8] sm:$0xff]
    %v3106 = vld [vmem:[#allocation9 + $0x6d0] sm:$0xff]
    %v3107 = vld [vmem:[#allocation9 + $0x6d8] sm:$0xff]
    %v3108 = vld [vmem:[#allocation9 + $0x6e0] sm:$0xff]
    %v3109 = vld [vmem:[#allocation9 + $0x6e8] sm:$0xff]
    %v3110 = vld [vmem:[#allocation9 + $0x6f0] sm:$0xff]
    %v3111 = vld [vmem:[#allocation9 + $0x6f8] sm:$0xff]
    %v3112 = vld [vmem:[#allocation9 + $0x700] sm:$0xff]
    %v3113 = vld [vmem:[#allocation9 + $0x708] sm:$0xff]
    %v3114 = vld [vmem:[#allocation9 + $0x710] sm:$0xff]
    %v3115 = vld [vmem:[#allocation9 + $0x718] sm:$0xff]
    %v3116 = vld [vmem:[#allocation9 + $0x720] sm:$0xff]
    %v3117 = vld [vmem:[#allocation9 + $0x728] sm:$0xff]
    %v3118 = vld [vmem:[#allocation9 + $0x730] sm:$0xff]
    %v3119 = vld [vmem:[#allocation9 + $0x738] sm:$0xff]
    %v3120 = vld [vmem:[#allocation9 + $0x740] sm:$0xff]
    %v3121 = vld [vmem:[#allocation9 + $0x748] sm:$0xff]
    %v3122 = vld [vmem:[#allocation9 + $0x750] sm:$0xff]
    %v3123 = vld [vmem:[#allocation9 + $0x758] sm:$0xff]
    %v3124 = vld [vmem:[#allocation9 + $0x760] sm:$0xff]
    %v3125 = vld [vmem:[#allocation9 + $0x768] sm:$0xff]
    %v3126 = vld [vmem:[#allocation9 + $0x770] sm:$0xff]
    %v3127 = vld [vmem:[#allocation9 + $0x778] sm:$0xff]
    %v3128 = vld [vmem:[#allocation9 + $0x780] sm:$0xff]
    %v3129 = vld [vmem:[#allocation9 + $0x788] sm:$0xff]
    %v3130 = vld [vmem:[#allocation9 + $0x790] sm:$0xff]
    %v3131 = vld [vmem:[#allocation9 + $0x798] sm:$0xff]
    %v3132 = vld [vmem:[#allocation9 + $0x7a0] sm:$0xff]
    %v3133 = vld [vmem:[#allocation9 + $0x7a8] sm:$0xff]
    %v3134 = vld [vmem:[#allocation9 + $0x7b0] sm:$0xff]
    %v3135 = vld [vmem:[#allocation9 + $0x7b8] sm:$0xff]
    %v3136 = vld [vmem:[#allocation9 + $0x7c0] sm:$0xff]
    %v3137 = vld [vmem:[#allocation9 + $0x7c8] sm:$0xff]
    %v3138 = vld [vmem:[#allocation9 + $0x7d0] sm:$0xff]
    %v3139 = vld [vmem:[#allocation9 + $0x7d8] sm:$0xff]
    %v3140 = vld [vmem:[#allocation9 + $0x7e0] sm:$0xff]
    %v3141 = vld [vmem:[#allocation9 + $0x7e8] sm:$0xff]
    %v3142 = vld [vmem:[#allocation9 + $0x7f0] sm:$0xff]
    %v3143 = vld [vmem:[#allocation9 + $0x7f8] sm:$0xff]
    %3144 = vmatprep.subr.mxu0 %v2889
    %3145 = vmatpush1.msra.mxu0 %v2888
    %3146 = vmatprep.subr.mxu0 %v2891
    %3147 = vmatpush1.msra.mxu0 %v2890
    %3148 = vmatprep.subr.mxu0 %v2893
    %3149 = vmatpush1.msra.mxu0 %v2892
    %3150 = vmatprep.subr.mxu0 %v2895
    %3151 = vmatpush1.msra.mxu0 %v2894
    %3152 = vmatprep.subr.mxu0 %v2897
    %3153 = vmatpush1.msra.mxu0 %v2896
    %3154 = vmatprep.subr.mxu0 %v2899
    %3155 = vmatpush1.msra.mxu0 %v2898
    %3156 = vmatprep.subr.mxu0 %v2901
    %3157 = vmatpush1.msra.mxu0 %v2900
    %3158 = vmatprep.subr.mxu0 %v2903
    %3159 = vmatpush1.msra.mxu0 %v2902
    %3160 = vmatprep.subr.mxu0 %v2905
    %3161 = vmatpush1.msra.mxu0 %v2904
    %3162 = vmatprep.subr.mxu0 %v2907
    %3163 = vmatpush1.msra.mxu0 %v2906
    %3164 = vmatprep.subr.mxu0 %v2909
    %3165 = vmatpush1.msra.mxu0 %v2908
    %3166 = vmatprep.subr.mxu0 %v2911
    %3167 = vmatpush1.msra.mxu0 %v2910
    %3168 = vmatprep.subr.mxu0 %v2913
    %3169 = vmatpush1.msra.mxu0 %v2912
    %3170 = vmatprep.subr.mxu0 %v2915
    %3171 = vmatpush1.msra.mxu0 %v2914
    %3172 = vmatprep.subr.mxu0 %v2917
    %3173 = vmatpush1.msra.mxu0 %v2916
    %3174 = vmatprep.subr.mxu0 %v2919
    %3175 = vmatpush1.msra.mxu0 %v2918
    %3176 = vmatprep.subr.mxu0 %v2921
    %3177 = vmatpush1.msra.mxu0 %v2920
    %3178 = vmatprep.subr.mxu0 %v2923
    %3179 = vmatpush1.msra.mxu0 %v2922
    %3180 = vmatprep.subr.mxu0 %v2925
    %3181 = vmatpush1.msra.mxu0 %v2924
    %3182 = vmatprep.subr.mxu0 %v2927
    %3183 = vmatpush1.msra.mxu0 %v2926
    %3184 = vmatprep.subr.mxu0 %v2929
    %3185 = vmatpush1.msra.mxu0 %v2928
    %3186 = vmatprep.subr.mxu0 %v2931
    %3187 = vmatpush1.msra.mxu0 %v2930
    %3188 = vmatprep.subr.mxu0 %v2933
    %3189 = vmatpush1.msra.mxu0 %v2932
    %3190 = vmatprep.subr.mxu0 %v2935
    %3191 = vmatpush1.msra.mxu0 %v2934
    %3192 = vmatprep.subr.mxu0 %v2937
    %3193 = vmatpush1.msra.mxu0 %v2936
    %3194 = vmatprep.subr.mxu0 %v2939
    %3195 = vmatpush1.msra.mxu0 %v2938
    %3196 = vmatprep.subr.mxu0 %v2941
    %3197 = vmatpush1.msra.mxu0 %v2940
    %3198 = vmatprep.subr.mxu0 %v2943
    %3199 = vmatpush1.msra.mxu0 %v2942
    %3200 = vmatprep.subr.mxu0 %v2945
    %3201 = vmatpush1.msra.mxu0 %v2944
    %3202 = vmatprep.subr.mxu0 %v2947
    %3203 = vmatpush1.msra.mxu0 %v2946
    %3204 = vmatprep.subr.mxu0 %v2949
    %3205 = vmatpush1.msra.mxu0 %v2948
    %3206 = vmatprep.subr.mxu0 %v2951
    %3207 = vmatpush1.msra.mxu0 %v2950
    %3208 = vmatprep.mubr.f32.mxu0 %v2569
    %3209 = vmatmul.mubr.f32.gmra.mrb[0].mxu0 %v2568
    %v3210 = vpop.f32.mrb[0].mxu0
    %v3211 = vadd.f32 0.0, %v3210
    %v3212 = vpop.f32.mrb[0].mxu0
    %v3213 = vadd.f32 0.0, %v3212
    %3214 = vmatprep.mubr.f32.mxu0 %v2577
    %3215 = vmatmul.mubr.f32.gmra.mrb[0].mxu0 %v2576
    %v3216 = vpop.f32.mrb[0].mxu0
    %v3217 = vadd.f32 0.0, %v3216
    %v3218 = vpop.f32.mrb[0].mxu0
    %v3219 = vadd.f32 0.0, %v3218
    %3220 = vmatprep.mubr.f32.mxu0 %v2585
    %3221 = vmatmul.mubr.f32.gmra.mrb[0].mxu0 %v2584
    %v3222 = vpop.f32.mrb[0].mxu0
    %v3223 = vadd.f32 0.0, %v3222
    %v3224 = vpop.f32.mrb[0].mxu0
    %v3225 = vadd.f32 0.0, %v3224
    %3226 = vmatprep.mubr.f32.mxu0 %v2593
    %3227 = vmatmul.mubr.f32.gmra.mrb[0].mxu0 %v2592
    %v3228 = vpop.f32.mrb[0].mxu0
    %v3229 = vadd.f32 0.0, %v3228
    %v3230 = vpop.f32.mrb[0].mxu0
    %v3231 = vadd.f32 0.0, %v3230
    %3232 = vmatprep.mubr.f32.mxu0 %v2601
    %3233 = vmatmul.mubr.f32.gmra.mrb[0].mxu0 %v2600
    %v3234 = vpop.f32.mrb[0].mxu0
    %v3235 = vadd.f32 0.0, %v3234
    %v3236 = vpop.f32.mrb[0].mxu0
    %v3237 = vadd.f32 0.0, %v3236
    %3238 = vmatprep.mubr.f32.mxu0 %v2609
    %3239 = vmatmul.mubr.f32.gmra.mrb[0].mxu0 %v2608
    %v3240 = vpop.f32.mrb[0].mxu0
    %v3241 = vadd.f32 0.0, %v3240
    %v3242 = vpop.f32.mrb[0].mxu0
    %v3243 = vadd.f32 0.0, %v3242
    %3244 = vmatprep.mubr.f32.mxu0 %v2617
    %3245 = vmatmul.mubr.f32.gmra.mrb[0].mxu0 %v2616
    %v3246 = vpop.f32.mrb[0].mxu0
    %v3247 = vadd.f32 0.0, %v3246
    %v3248 = vpop.f32.mrb[0].mxu0
    %v3249 = vadd.f32 0.0, %v3248
    %3250 = vmatprep.mubr.f32.mxu0 %v2625
    %3251 = vmatmul.mubr.f32.gmra.mrb[0].mxu0 %v2624
    %v3252 = vpop.f32.mrb[0].mxu0
    %v3253 = vadd.f32 0.0, %v3252
    %v3254 = vpop.f32.mrb[0].mxu0
    %v3255 = vadd.f32 0.0, %v3254
    %3256 = vmatprep.mubr.f32.mxu0 %v2633
    %3257 = vmatmul.mubr.f32.gmra.mrb[0].mxu0 %v2632
    %v3258 = vpop.f32.mrb[0].mxu0
    %v3259 = vadd.f32 0.0, %v3258
    %v3260 = vpop.f32.mrb[0].mxu0
    %v3261 = vadd.f32 0.0, %v3260
    %3262 = vmatprep.mubr.f32.mxu0 %v2641
    %3263 = vmatmul.mubr.f32.gmra.mrb[0].mxu0 %v2640
    %v3264 = vpop.f32.mrb[0].mxu0
    %v3265 = vadd.f32 0.0, %v3264
    %v3266 = vpop.f32.mrb[0].mxu0
    %v3267 = vadd.f32 0.0, %v3266
    %3268 = vmatprep.mubr.f32.mxu0 %v2649
    %3269 = vmatmul.mubr.f32.gmra.mrb[0].mxu0 %v2648
    %v3270 = vpop.f32.mrb[0].mxu0
    %v3271 = vadd.f32 0.0, %v3270
    %v3272 = vpop.f32.mrb[0].mxu0
    %v3273 = vadd.f32 0.0, %v3272
    %3274 = vmatprep.mubr.f32.mxu0 %v2657
    %3275 = vmatmul.mubr.f32.gmra.mrb[0].mxu0 %v2656
    %v3276 = vpop.f32.mrb[0].mxu0
    %v3277 = vadd.f32 0.0, %v3276
    %v3278 = vpop.f32.mrb[0].mxu0
    %v3279 = vadd.f32 0.0, %v3278
    %3280 = vmatprep.mubr.f32.mxu0 %v2665
    %3281 = vmatmul.mubr.f32.gmra.mrb[0].mxu0 %v2664
    %v3282 = vpop.f32.mrb[0].mxu0
    %v3283 = vadd.f32 0.0, %v3282
    %v3284 = vpop.f32.mrb[0].mxu0
    %v3285 = vadd.f32 0.0, %v3284
    %3286 = vmatprep.mubr.f32.mxu0 %v2673
    %3287 = vmatmul.mubr.f32.gmra.mrb[0].mxu0 %v2672
    %v3288 = vpop.f32.mrb[0].mxu0
    %v3289 = vadd.f32 0.0, %v3288
    %v3290 = vpop.f32.mrb[0].mxu0
    %v3291 = vadd.f32 0.0, %v3290
    %3292 = vmatprep.mubr.f32.mxu0 %v2681
    %3293 = vmatmul.mubr.f32.gmra.mrb[0].mxu0 %v2680
    %v3294 = vpop.f32.mrb[0].mxu0
    %v3295 = vadd.f32 0.0, %v3294
    %v3296 = vpop.f32.mrb[0].mxu0
    %v3297 = vadd.f32 0.0, %v3296
    %3298 = vmatprep.mubr.f32.mxu0 %v2689
    %3299 = vmatmul.mubr.f32.gmra.mrb[0].mxu0 %v2688
    %v3300 = vpop.f32.mrb[0].mxu0
    %v3301 = vadd.f32 0.0, %v3300
    %v3302 = vpop.f32.mrb[0].mxu0
    %v3303 = vadd.f32 0.0, %v3302
    %3304 = vmatprep.mubr.f32.mxu0 %v2697
    %3305 = vmatmul.mubr.f32.gmra.mrb[0].mxu0 %v2696
    %v3306 = vpop.f32.mrb[0].mxu0
    %v3307 = vadd.f32 0.0, %v3306
    %v3308 = vpop.f32.mrb[0].mxu0
    %v3309 = vadd.f32 0.0, %v3308
    %3310 = vmatprep.mubr.f32.mxu0 %v2705
    %3311 = vmatmul.mubr.f32.gmra.mrb[0].mxu0 %v2704
    %v3312 = vpop.f32.mrb[0].mxu0
    %v3313 = vadd.f32 0.0, %v3312
    %v3314 = vpop.f32.mrb[0].mxu0
    %v3315 = vadd.f32 0.0, %v3314
    %3316 = vmatprep.mubr.f32.mxu0 %v2713
    %3317 = vmatmul.mubr.f32.gmra.mrb[0].mxu0 %v2712
    %v3318 = vpop.f32.mrb[0].mxu0
    %v3319 = vadd.f32 0.0, %v3318
    %v3320 = vpop.f32.mrb[0].mxu0
    %v3321 = vadd.f32 0.0, %v3320
    %3322 = vmatprep.mubr.f32.mxu0 %v2721
    %3323 = vmatmul.mubr.f32.gmra.mrb[0].mxu0 %v2720
    %v3324 = vpop.f32.mrb[0].mxu0
    %v3325 = vadd.f32 0.0, %v3324
    %v3326 = vpop.f32.mrb[0].mxu0
    %v3327 = vadd.f32 0.0, %v3326
    %3328 = vmatprep.mubr.f32.mxu0 %v2729
    %3329 = vmatmul.mubr.f32.gmra.mrb[0].mxu0 %v2728
    %v3330 = vpop.f32.mrb[0].mxu0
    %v3331 = vadd.f32 0.0, %v3330
    %v3332 = vpop.f32.mrb[0].mxu0
    %v3333 = vadd.f32 0.0, %v3332
    %3334 = vmatprep.mubr.f32.mxu0 %v2737
    %3335 = vmatmul.mubr.f32.gmra.mrb[0].mxu0 %v2736
    %v3336 = vpop.f32.mrb[0].mxu0
    %v3337 = vadd.f32 0.0, %v3336
    %v3338 = vpop.f32.mrb[0].mxu0
    %v3339 = vadd.f32 0.0, %v3338
    %3340 = vmatprep.mubr.f32.mxu0 %v2745
    %3341 = vmatmul.mubr.f32.gmra.mrb[0].mxu0 %v2744
    %v3342 = vpop.f32.mrb[0].mxu0
    %v3343 = vadd.f32 0.0, %v3342
    %v3344 = vpop.f32.mrb[0].mxu0
    %v3345 = vadd.f32 0.0, %v3344
    %3346 = vmatprep.mubr.f32.mxu0 %v2753
    %3347 = vmatmul.mubr.f32.gmra.mrb[0].mxu0 %v2752
    %v3348 = vpop.f32.mrb[0].mxu0
    %v3349 = vadd.f32 0.0, %v3348
    %v3350 = vpop.f32.mrb[0].mxu0
    %v3351 = vadd.f32 0.0, %v3350
    %3352 = vmatprep.mubr.f32.mxu0 %v2761
    %3353 = vmatmul.mubr.f32.gmra.mrb[0].mxu0 %v2760
    %v3354 = vpop.f32.mrb[0].mxu0
    %v3355 = vadd.f32 0.0, %v3354
    %v3356 = vpop.f32.mrb[0].mxu0
    %v3357 = vadd.f32 0.0, %v3356
    %3358 = vmatprep.mubr.f32.mxu0 %v2769
    %3359 = vmatmul.mubr.f32.gmra.mrb[0].mxu0 %v2768
    %v3360 = vpop.f32.mrb[0].mxu0
    %v3361 = vadd.f32 0.0, %v3360
    %v3362 = vpop.f32.mrb[0].mxu0
    %v3363 = vadd.f32 0.0, %v3362
    %3364 = vmatprep.mubr.f32.mxu0 %v2777
    %3365 = vmatmul.mubr.f32.gmra.mrb[0].mxu0 %v2776
    %v3366 = vpop.f32.mrb[0].mxu0
    %v3367 = vadd.f32 0.0, %v3366
    %v3368 = vpop.f32.mrb[0].mxu0
    %v3369 = vadd.f32 0.0, %v3368
    %3370 = vmatprep.mubr.f32.mxu0 %v2785
    %3371 = vmatmul.mubr.f32.gmra.mrb[0].mxu0 %v2784
    %v3372 = vpop.f32.mrb[0].mxu0
    %v3373 = vadd.f32 0.0, %v3372
    %v3374 = vpop.f32.mrb[0].mxu0
    %v3375 = vadd.f32 0.0, %v3374
    %3376 = vmatprep.mubr.f32.mxu0 %v2793
    %3377 = vmatmul.mubr.f32.gmra.mrb[0].mxu0 %v2792
    %v3378 = vpop.f32.mrb[0].mxu0
    %v3379 = vadd.f32 0.0, %v3378
    %v3380 = vpop.f32.mrb[0].mxu0
    %v3381 = vadd.f32 0.0, %v3380
    %3382 = vmatprep.mubr.f32.mxu0 %v2801
    %3383 = vmatmul.mubr.f32.gmra.mrb[0].mxu0 %v2800
    %v3384 = vpop.f32.mrb[0].mxu0
    %v3385 = vadd.f32 0.0, %v3384
    %v3386 = vpop.f32.mrb[0].mxu0
    %v3387 = vadd.f32 0.0, %v3386
    %3388 = vmatprep.mubr.f32.mxu0 %v2809
    %3389 = vmatmul.mubr.f32.gmra.mrb[0].mxu0 %v2808
    %v3390 = vpop.f32.mrb[0].mxu0
    %v3391 = vadd.f32 0.0, %v3390
    %v3392 = vpop.f32.mrb[0].mxu0
    %v3393 = vadd.f32 0.0, %v3392
    %3394 = vmatprep.mubr.f32.mxu0 %v2817
    %3395 = vmatmul.mubr.f32.gmra.mrb[0].mxu0 %v2816
    %v3396 = vpop.f32.mrb[0].mxu0
    %v3397 = vadd.f32 0.0, %v3396
    %v3398 = vpop.f32.mrb[0].mxu0
    %v3399 = vadd.f32 0.0, %v3398
    %3400 = vdwg.mxu0
    %3401 = vmatprep.subr.mxu0 %v2953
    %3402 = vmatpush1.msra.mxu0 %v2952
    %3403 = vmatprep.subr.mxu0 %v2955
    %3404 = vmatpush1.msra.mxu0 %v2954
    %3405 = vmatprep.subr.mxu0 %v2957
    %3406 = vmatpush1.msra.mxu0 %v2956
    %3407 = vmatprep.subr.mxu0 %v2959
    %3408 = vmatpush1.msra.mxu0 %v2958
    %3409 = vmatprep.subr.mxu0 %v2961
    %3410 = vmatpush1.msra.mxu0 %v2960
    %3411 = vmatprep.subr.mxu0 %v2963
    %3412 = vmatpush1.msra.mxu0 %v2962
    %3413 = vmatprep.subr.mxu0 %v2965
    %3414 = vmatpush1.msra.mxu0 %v2964
    %3415 = vmatprep.subr.mxu0 %v2967
    %3416 = vmatpush1.msra.mxu0 %v2966
    %3417 = vmatprep.subr.mxu0 %v2969
    %3418 = vmatpush1.msra.mxu0 %v2968
    %3419 = vmatprep.subr.mxu0 %v2971
    %3420 = vmatpush1.msra.mxu0 %v2970
    %3421 = vmatprep.subr.mxu0 %v2973
    %3422 = vmatpush1.msra.mxu0 %v2972
    %3423 = vmatprep.subr.mxu0 %v2975
    %3424 = vmatpush1.msra.mxu0 %v2974
    %3425 = vmatprep.subr.mxu0 %v2977
    %3426 = vmatpush1.msra.mxu0 %v2976
    %3427 = vmatprep.subr.mxu0 %v2979
    %3428 = vmatpush1.msra.mxu0 %v2978
    %3429 = vmatprep.subr.mxu0 %v2981
    %3430 = vmatpush1.msra.mxu0 %v2980
    %3431 = vmatprep.subr.mxu0 %v2983
    %3432 = vmatpush1.msra.mxu0 %v2982
    %3433 = vmatprep.subr.mxu0 %v2985
    %3434 = vmatpush1.msra.mxu0 %v2984
    %3435 = vmatprep.subr.mxu0 %v2987
    %3436 = vmatpush1.msra.mxu0 %v2986
    %3437 = vmatprep.subr.mxu0 %v2989
    %3438 = vmatpush1.msra.mxu0 %v2988
    %3439 = vmatprep.subr.mxu0 %v2991
    %3440 = vmatpush1.msra.mxu0 %v2990
    %3441 = vmatprep.subr.mxu0 %v2993
    %3442 = vmatpush1.msra.mxu0 %v2992
    %3443 = vmatprep.subr.mxu0 %v2995
    %3444 = vmatpush1.msra.mxu0 %v2994
    %3445 = vmatprep.subr.mxu0 %v2997
    %3446 = vmatpush1.msra.mxu0 %v2996
    %3447 = vmatprep.subr.mxu0 %v2999
    %3448 = vmatpush1.msra.mxu0 %v2998
    %3449 = vmatprep.subr.mxu0 %v3001
    %3450 = vmatpush1.msra.mxu0 %v3000
    %3451 = vmatprep.subr.mxu0 %v3003
    %3452 = vmatpush1.msra.mxu0 %v3002
    %3453 = vmatprep.subr.mxu0 %v3005
    %3454 = vmatpush1.msra.mxu0 %v3004
    %3455 = vmatprep.subr.mxu0 %v3007
    %3456 = vmatpush1.msra.mxu0 %v3006
    %3457 = vmatprep.subr.mxu0 %v3009
    %3458 = vmatpush1.msra.mxu0 %v3008
    %3459 = vmatprep.subr.mxu0 %v3011
    %3460 = vmatpush1.msra.mxu0 %v3010
    %3461 = vmatprep.subr.mxu0 %v3013
    %3462 = vmatpush1.msra.mxu0 %v3012
    %3463 = vmatprep.subr.mxu0 %v3015
    %3464 = vmatpush1.msra.mxu0 %v3014
    %3465 = vmatprep.mubr.f32.mxu0 %v2571
    %3466 = vmatmul.mubr.f32.gmra.mrb[0].mxu0 %v2570
    %v3467 = vpop.f32.mrb[0].mxu0
    %v3468 = vadd.f32 %v3211, %v3467
    %v3469 = vpop.f32.mrb[0].mxu0
    %v3470 = vadd.f32 %v3213, %v3469
    %3471 = vmatprep.mubr.f32.mxu0 %v2579
    %3472 = vmatmul.mubr.f32.gmra.mrb[0].mxu0 %v2578
    %v3473 = vpop.f32.mrb[0].mxu0
    %v3474 = vadd.f32 %v3217, %v3473
    %v3475 = vpop.f32.mrb[0].mxu0
    %v3476 = vadd.f32 %v3219, %v3475
    %3477 = vmatprep.mubr.f32.mxu0 %v2587
    %3478 = vmatmul.mubr.f32.gmra.mrb[0].mxu0 %v2586
    %v3479 = vpop.f32.mrb[0].mxu0
    %v3480 = vadd.f32 %v3223, %v3479
    %v3481 = vpop.f32.mrb[0].mxu0
    %v3482 = vadd.f32 %v3225, %v3481
    %3483 = vmatprep.mubr.f32.mxu0 %v2595
    %3484 = vmatmul.mubr.f32.gmra.mrb[0].mxu0 %v2594
    %v3485 = vpop.f32.mrb[0].mxu0
    %v3486 = vadd.f32 %v3229, %v3485
    %v3487 = vpop.f32.mrb[0].mxu0
    %v3488 = vadd.f32 %v3231, %v3487
    %3489 = vmatprep.mubr.f32.mxu0 %v2603
    %3490 = vmatmul.mubr.f32.gmra.mrb[0].mxu0 %v2602
    %v3491 = vpop.f32.mrb[0].mxu0
    %v3492 = vadd.f32 %v3235, %v3491
    %v3493 = vpop.f32.mrb[0].mxu0
    %v3494 = vadd.f32 %v3237, %v3493
    %3495 = vmatprep.mubr.f32.mxu0 %v2611
    %3496 = vmatmul.mubr.f32.gmra.mrb[0].mxu0 %v2610
    %v3497 = vpop.f32.mrb[0].mxu0
    %v3498 = vadd.f32 %v3241, %v3497
    %v3499 = vpop.f32.mrb[0].mxu0
    %v3500 = vadd.f32 %v3243, %v3499
    %3501 = vmatprep.mubr.f32.mxu0 %v2619
    %3502 = vmatmul.mubr.f32.gmra.mrb[0].mxu0 %v2618
    %v3503 = vpop.f32.mrb[0].mxu0
    %v3504 = vadd.f32 %v3247, %v3503
    %v3505 = vpop.f32.mrb[0].mxu0
    %v3506 = vadd.f32 %v3249, %v3505
    %3507 = vmatprep.mubr.f32.mxu0 %v2627
    %3508 = vmatmul.mubr.f32.gmra.mrb[0].mxu0 %v2626
    %v3509 = vpop.f32.mrb[0].mxu0
    %v3510 = vadd.f32 %v3253, %v3509
    %v3511 = vpop.f32.mrb[0].mxu0
    %v3512 = vadd.f32 %v3255, %v3511
    %3513 = vmatprep.mubr.f32.mxu0 %v2635
    %3514 = vmatmul.mubr.f32.gmra.mrb[0].mxu0 %v2634
    %v3515 = vpop.f32.mrb[0].mxu0
    %v3516 = vadd.f32 %v3259, %v3515
    %v3517 = vpop.f32.mrb[0].mxu0
    %v3518 = vadd.f32 %v3261, %v3517
    %3519 = vmatprep.mubr.f32.mxu0 %v2643
    %3520 = vmatmul.mubr.f32.gmra.mrb[0].mxu0 %v2642
    %v3521 = vpop.f32.mrb[0].mxu0
    %v3522 = vadd.f32 %v3265, %v3521
    %v3523 = vpop.f32.mrb[0].mxu0
    %v3524 = vadd.f32 %v3267, %v3523
    %3525 = vmatprep.mubr.f32.mxu0 %v2651
    %3526 = vmatmul.mubr.f32.gmra.mrb[0].mxu0 %v2650
    %v3527 = vpop.f32.mrb[0].mxu0
    %v3528 = vadd.f32 %v3271, %v3527
    %v3529 = vpop.f32.mrb[0].mxu0
    %v3530 = vadd.f32 %v3273, %v3529
    %3531 = vmatprep.mubr.f32.mxu0 %v2659
    %3532 = vmatmul.mubr.f32.gmra.mrb[0].mxu0 %v2658
    %v3533 = vpop.f32.mrb[0].mxu0
    %v3534 = vadd.f32 %v3277, %v3533
    %v3535 = vpop.f32.mrb[0].mxu0
    %v3536 = vadd.f32 %v3279, %v3535
    %3537 = vmatprep.mubr.f32.mxu0 %v2667
    %3538 = vmatmul.mubr.f32.gmra.mrb[0].mxu0 %v2666
    %v3539 = vpop.f32.mrb[0].mxu0
    %v3540 = vadd.f32 %v3283, %v3539
    %v3541 = vpop.f32.mrb[0].mxu0
    %v3542 = vadd.f32 %v3285, %v3541
    %3543 = vmatprep.mubr.f32.mxu0 %v2675
    %3544 = vmatmul.mubr.f32.gmra.mrb[0].mxu0 %v2674
    %v3545 = vpop.f32.mrb[0].mxu0
    %v3546 = vadd.f32 %v3289, %v3545
    %v3547 = vpop.f32.mrb[0].mxu0
    %v3548 = vadd.f32 %v3291, %v3547
    %3549 = vmatprep.mubr.f32.mxu0 %v2683
    %3550 = vmatmul.mubr.f32.gmra.mrb[0].mxu0 %v2682
    %v3551 = vpop.f32.mrb[0].mxu0
    %v3552 = vadd.f32 %v3295, %v3551
    %v3553 = vpop.f32.mrb[0].mxu0
    %v3554 = vadd.f32 %v3297, %v3553
    %3555 = vmatprep.mubr.f32.mxu0 %v2691
    %3556 = vmatmul.mubr.f32.gmra.mrb[0].mxu0 %v2690
    %v3557 = vpop.f32.mrb[0].mxu0
    %v3558 = vadd.f32 %v3301, %v3557
    %v3559 = vpop.f32.mrb[0].mxu0
    %v3560 = vadd.f32 %v3303, %v3559
    %3561 = vmatprep.mubr.f32.mxu0 %v2699
    %3562 = vmatmul.mubr.f32.gmra.mrb[0].mxu0 %v2698
    %v3563 = vpop.f32.mrb[0].mxu0
    %v3564 = vadd.f32 %v3307, %v3563
    %v3565 = vpop.f32.mrb[0].mxu0
    %v3566 = vadd.f32 %v3309, %v3565
    %3567 = vmatprep.mubr.f32.mxu0 %v2707
    %3568 = vmatmul.mubr.f32.gmra.mrb[0].mxu0 %v2706
    %v3569 = vpop.f32.mrb[0].mxu0
    %v3570 = vadd.f32 %v3313, %v3569
    %v3571 = vpop.f32.mrb[0].mxu0
    %v3572 = vadd.f32 %v3315, %v3571
    %3573 = vmatprep.mubr.f32.mxu0 %v2715
    %3574 = vmatmul.mubr.f32.gmra.mrb[0].mxu0 %v2714
    %v3575 = vpop.f32.mrb[0].mxu0
    %v3576 = vadd.f32 %v3319, %v3575
    %v3577 = vpop.f32.mrb[0].mxu0
    %v3578 = vadd.f32 %v3321, %v3577
    %3579 = vmatprep.mubr.f32.mxu0 %v2723
    %3580 = vmatmul.mubr.f32.gmra.mrb[0].mxu0 %v2722
    %v3581 = vpop.f32.mrb[0].mxu0
    %v3582 = vadd.f32 %v3325, %v3581
    %v3583 = vpop.f32.mrb[0].mxu0
    %v3584 = vadd.f32 %v3327, %v3583
    %3585 = vmatprep.mubr.f32.mxu0 %v2731
    %3586 = vmatmul.mubr.f32.gmra.mrb[0].mxu0 %v2730
    %v3587 = vpop.f32.mrb[0].mxu0
    %v3588 = vadd.f32 %v3331, %v3587
    %v3589 = vpop.f32.mrb[0].mxu0
    %v3590 = vadd.f32 %v3333, %v3589
    %3591 = vmatprep.mubr.f32.mxu0 %v2739
    %3592 = vmatmul.mubr.f32.gmra.mrb[0].mxu0 %v2738
    %v3593 = vpop.f32.mrb[0].mxu0
    %v3594 = vadd.f32 %v3337, %v3593
    %v3595 = vpop.f32.mrb[0].mxu0
    %v3596 = vadd.f32 %v3339, %v3595
    %3597 = vmatprep.mubr.f32.mxu0 %v2747
    %3598 = vmatmul.mubr.f32.gmra.mrb[0].mxu0 %v2746
    %v3599 = vpop.f32.mrb[0].mxu0
    %v3600 = vadd.f32 %v3343, %v3599
    %v3601 = vpop.f32.mrb[0].mxu0
    %v3602 = vadd.f32 %v3345, %v3601
    %3603 = vmatprep.mubr.f32.mxu0 %v2755
    %3604 = vmatmul.mubr.f32.gmra.mrb[0].mxu0 %v2754
    %v3605 = vpop.f32.mrb[0].mxu0
    %v3606 = vadd.f32 %v3349, %v3605
    %v3607 = vpop.f32.mrb[0].mxu0
    %v3608 = vadd.f32 %v3351, %v3607
    %3609 = vmatprep.mubr.f32.mxu0 %v2763
    %3610 = vmatmul.mubr.f32.gmra.mrb[0].mxu0 %v2762
    %v3611 = vpop.f32.mrb[0].mxu0
    %v3612 = vadd.f32 %v3355, %v3611
    %v3613 = vpop.f32.mrb[0].mxu0
    %v3614 = vadd.f32 %v3357, %v3613
    %3615 = vmatprep.mubr.f32.mxu0 %v2771
    %3616 = vmatmul.mubr.f32.gmra.mrb[0].mxu0 %v2770
    %v3617 = vpop.f32.mrb[0].mxu0
    %v3618 = vadd.f32 %v3361, %v3617
    %v3619 = vpop.f32.mrb[0].mxu0
    %v3620 = vadd.f32 %v3363, %v3619
    %3621 = vmatprep.mubr.f32.mxu0 %v2779
    %3622 = vmatmul.mubr.f32.gmra.mrb[0].mxu0 %v2778
    %v3623 = vpop.f32.mrb[0].mxu0
    %v3624 = vadd.f32 %v3367, %v3623
    %v3625 = vpop.f32.mrb[0].mxu0
    %v3626 = vadd.f32 %v3369, %v3625
    %3627 = vmatprep.mubr.f32.mxu0 %v2787
    %3628 = vmatmul.mubr.f32.gmra.mrb[0].mxu0 %v2786
    %v3629 = vpop.f32.mrb[0].mxu0
    %v3630 = vadd.f32 %v3373, %v3629
    %v3631 = vpop.f32.mrb[0].mxu0
    %v3632 = vadd.f32 %v3375, %v3631
    %3633 = vmatprep.mubr.f32.mxu0 %v2795
    %3634 = vmatmul.mubr.f32.gmra.mrb[0].mxu0 %v2794
    %v3635 = vpop.f32.mrb[0].mxu0
    %v3636 = vadd.f32 %v3379, %v3635
    %v3637 = vpop.f32.mrb[0].mxu0
    %v3638 = vadd.f32 %v3381, %v3637
    %3639 = vmatprep.mubr.f32.mxu0 %v2803
    %3640 = vmatmul.mubr.f32.gmra.mrb[0].mxu0 %v2802
    %v3641 = vpop.f32.mrb[0].mxu0
    %v3642 = vadd.f32 %v3385, %v3641
    %v3643 = vpop.f32.mrb[0].mxu0
    %v3644 = vadd.f32 %v3387, %v3643
    %3645 = vmatprep.mubr.f32.mxu0 %v2811
    %3646 = vmatmul.mubr.f32.gmra.mrb[0].mxu0 %v2810
    %v3647 = vpop.f32.mrb[0].mxu0
    %v3648 = vadd.f32 %v3391, %v3647
    %v3649 = vpop.f32.mrb[0].mxu0
    %v3650 = vadd.f32 %v3393, %v3649
    %3651 = vmatprep.mubr.f32.mxu0 %v2819
    %3652 = vmatmul.mubr.f32.gmra.mrb[0].mxu0 %v2818
    %v3653 = vpop.f32.mrb[0].mxu0
    %v3654 = vadd.f32 %v3397, %v3653
    %v3655 = vpop.f32.mrb[0].mxu0
    %v3656 = vadd.f32 %v3399, %v3655
    %3657 = vdwg.mxu0
    %3658 = vmatprep.subr.mxu0 %v3017
    %3659 = vmatpush1.msra.mxu0 %v3016
    %3660 = vmatprep.subr.mxu0 %v3019
    %3661 = vmatpush1.msra.mxu0 %v3018
    %3662 = vmatprep.subr.mxu0 %v3021
    %3663 = vmatpush1.msra.mxu0 %v3020
    %3664 = vmatprep.subr.mxu0 %v3023
    %3665 = vmatpush1.msra.mxu0 %v3022
    %3666 = vmatprep.subr.mxu0 %v3025
    %3667 = vmatpush1.msra.mxu0 %v3024
    %3668 = vmatprep.subr.mxu0 %v3027
    %3669 = vmatpush1.msra.mxu0 %v3026
    %3670 = vmatprep.subr.mxu0 %v3029
    %3671 = vmatpush1.msra.mxu0 %v3028
    %3672 = vmatprep.subr.mxu0 %v3031
    %3673 = vmatpush1.msra.mxu0 %v3030
    %3674 = vmatprep.subr.mxu0 %v3033
    %3675 = vmatpush1.msra.mxu0 %v3032
    %3676 = vmatprep.subr.mxu0 %v3035
    %3677 = vmatpush1.msra.mxu0 %v3034
    %3678 = vmatprep.subr.mxu0 %v3037
    %3679 = vmatpush1.msra.mxu0 %v3036
    %3680 = vmatprep.subr.mxu0 %v3039
    %3681 = vmatpush1.msra.mxu0 %v3038
    %3682 = vmatprep.subr.mxu0 %v3041
    %3683 = vmatpush1.msra.mxu0 %v3040
    %3684 = vmatprep.subr.mxu0 %v3043
    %3685 = vmatpush1.msra.mxu0 %v3042
    %3686 = vmatprep.subr.mxu0 %v3045
    %3687 = vmatpush1.msra.mxu0 %v3044
    %3688 = vmatprep.subr.mxu0 %v3047
    %3689 = vmatpush1.msra.mxu0 %v3046
    %3690 = vmatprep.subr.mxu0 %v3049
    %3691 = vmatpush1.msra.mxu0 %v3048
    %3692 = vmatprep.subr.mxu0 %v3051
    %3693 = vmatpush1.msra.mxu0 %v3050
    %3694 = vmatprep.subr.mxu0 %v3053
    %3695 = vmatpush1.msra.mxu0 %v3052
    %3696 = vmatprep.subr.mxu0 %v3055
    %3697 = vmatpush1.msra.mxu0 %v3054
    %3698 = vmatprep.subr.mxu0 %v3057
    %3699 = vmatpush1.msra.mxu0 %v3056
    %3700 = vmatprep.subr.mxu0 %v3059
    %3701 = vmatpush1.msra.mxu0 %v3058
    %3702 = vmatprep.subr.mxu0 %v3061
    %3703 = vmatpush1.msra.mxu0 %v3060
    %3704 = vmatprep.subr.mxu0 %v3063
    %3705 = vmatpush1.msra.mxu0 %v3062
    %3706 = vmatprep.subr.mxu0 %v3065
    %3707 = vmatpush1.msra.mxu0 %v3064
    %3708 = vmatprep.subr.mxu0 %v3067
    %3709 = vmatpush1.msra.mxu0 %v3066
    %3710 = vmatprep.subr.mxu0 %v3069
    %3711 = vmatpush1.msra.mxu0 %v3068
    %3712 = vmatprep.subr.mxu0 %v3071
    %3713 = vmatpush1.msra.mxu0 %v3070
    %3714 = vmatprep.subr.mxu0 %v3073
    %3715 = vmatpush1.msra.mxu0 %v3072
    %3716 = vmatprep.subr.mxu0 %v3075
    %3717 = vmatpush1.msra.mxu0 %v3074
    %3718 = vmatprep.subr.mxu0 %v3077
    %3719 = vmatpush1.msra.mxu0 %v3076
    %3720 = vmatprep.subr.mxu0 %v3079
    %3721 = vmatpush1.msra.mxu0 %v3078
    %3722 = vmatprep.mubr.f32.mxu0 %v2573
    %3723 = vmatmul.mubr.f32.gmra.mrb[0].mxu0 %v2572
    %v3724 = vpop.f32.mrb[0].mxu0
    %v3725 = vadd.f32 %v3468, %v3724
    %v3726 = vpop.f32.mrb[0].mxu0
    %v3727 = vadd.f32 %v3470, %v3726
    %3728 = vmatprep.mubr.f32.mxu0 %v2581
    %3729 = vmatmul.mubr.f32.gmra.mrb[0].mxu0 %v2580
    %v3730 = vpop.f32.mrb[0].mxu0
    %v3731 = vadd.f32 %v3474, %v3730
    %v3732 = vpop.f32.mrb[0].mxu0
    %v3733 = vadd.f32 %v3476, %v3732
    %3734 = vmatprep.mubr.f32.mxu0 %v2589
    %3735 = vmatmul.mubr.f32.gmra.mrb[0].mxu0 %v2588
    %v3736 = vpop.f32.mrb[0].mxu0
    %v3737 = vadd.f32 %v3480, %v3736
    %v3738 = vpop.f32.mrb[0].mxu0
    %v3739 = vadd.f32 %v3482, %v3738
    %3740 = vmatprep.mubr.f32.mxu0 %v2597
    %3741 = vmatmul.mubr.f32.gmra.mrb[0].mxu0 %v2596
    %v3742 = vpop.f32.mrb[0].mxu0
    %v3743 = vadd.f32 %v3486, %v3742
    %v3744 = vpop.f32.mrb[0].mxu0
    %v3745 = vadd.f32 %v3488, %v3744
    %3746 = vmatprep.mubr.f32.mxu0 %v2605
    %3747 = vmatmul.mubr.f32.gmra.mrb[0].mxu0 %v2604
    %v3748 = vpop.f32.mrb[0].mxu0
    %v3749 = vadd.f32 %v3492, %v3748
    %v3750 = vpop.f32.mrb[0].mxu0
    %v3751 = vadd.f32 %v3494, %v3750
    %3752 = vmatprep.mubr.f32.mxu0 %v2613
    %3753 = vmatmul.mubr.f32.gmra.mrb[0].mxu0 %v2612
    %v3754 = vpop.f32.mrb[0].mxu0
    %v3755 = vadd.f32 %v3498, %v3754
    %v3756 = vpop.f32.mrb[0].mxu0
    %v3757 = vadd.f32 %v3500, %v3756
    %3758 = vmatprep.mubr.f32.mxu0 %v2621
    %3759 = vmatmul.mubr.f32.gmra.mrb[0].mxu0 %v2620
    %v3760 = vpop.f32.mrb[0].mxu0
    %v3761 = vadd.f32 %v3504, %v3760
    %v3762 = vpop.f32.mrb[0].mxu0
    %v3763 = vadd.f32 %v3506, %v3762
    %3764 = vmatprep.mubr.f32.mxu0 %v2629
    %3765 = vmatmul.mubr.f32.gmra.mrb[0].mxu0 %v2628
    %v3766 = vpop.f32.mrb[0].mxu0
    %v3767 = vadd.f32 %v3510, %v3766
    %v3768 = vpop.f32.mrb[0].mxu0
    %v3769 = vadd.f32 %v3512, %v3768
    %3770 = vmatprep.mubr.f32.mxu0 %v2637
    %3771 = vmatmul.mubr.f32.gmra.mrb[0].mxu0 %v2636
    %v3772 = vpop.f32.mrb[0].mxu0
    %v3773 = vadd.f32 %v3516, %v3772
    %v3774 = vpop.f32.mrb[0].mxu0
    %v3775 = vadd.f32 %v3518, %v3774
    %3776 = vmatprep.mubr.f32.mxu0 %v2645
    %3777 = vmatmul.mubr.f32.gmra.mrb[0].mxu0 %v2644
    %v3778 = vpop.f32.mrb[0].mxu0
    %v3779 = vadd.f32 %v3522, %v3778
    %v3780 = vpop.f32.mrb[0].mxu0
    %v3781 = vadd.f32 %v3524, %v3780
    %3782 = vmatprep.mubr.f32.mxu0 %v2653
    %3783 = vmatmul.mubr.f32.gmra.mrb[0].mxu0 %v2652
    %v3784 = vpop.f32.mrb[0].mxu0
    %v3785 = vadd.f32 %v3528, %v3784
    %v3786 = vpop.f32.mrb[0].mxu0
    %v3787 = vadd.f32 %v3530, %v3786
    %3788 = vmatprep.mubr.f32.mxu0 %v2661
    %3789 = vmatmul.mubr.f32.gmra.mrb[0].mxu0 %v2660
    %v3790 = vpop.f32.mrb[0].mxu0
    %v3791 = vadd.f32 %v3534, %v3790
    %v3792 = vpop.f32.mrb[0].mxu0
    %v3793 = vadd.f32 %v3536, %v3792
    %3794 = vmatprep.mubr.f32.mxu0 %v2669
    %3795 = vmatmul.mubr.f32.gmra.mrb[0].mxu0 %v2668
    %v3796 = vpop.f32.mrb[0].mxu0
    %v3797 = vadd.f32 %v3540, %v3796
    %v3798 = vpop.f32.mrb[0].mxu0
    %v3799 = vadd.f32 %v3542, %v3798
    %3800 = vmatprep.mubr.f32.mxu0 %v2677
    %3801 = vmatmul.mubr.f32.gmra.mrb[0].mxu0 %v2676
    %v3802 = vpop.f32.mrb[0].mxu0
    %v3803 = vadd.f32 %v3546, %v3802
    %v3804 = vpop.f32.mrb[0].mxu0
    %v3805 = vadd.f32 %v3548, %v3804
    %3806 = vmatprep.mubr.f32.mxu0 %v2685
    %3807 = vmatmul.mubr.f32.gmra.mrb[0].mxu0 %v2684
    %v3808 = vpop.f32.mrb[0].mxu0
    %v3809 = vadd.f32 %v3552, %v3808
    %v3810 = vpop.f32.mrb[0].mxu0
    %v3811 = vadd.f32 %v3554, %v3810
    %3812 = vmatprep.mubr.f32.mxu0 %v2693
    %3813 = vmatmul.mubr.f32.gmra.mrb[0].mxu0 %v2692
    %v3814 = vpop.f32.mrb[0].mxu0
    %v3815 = vadd.f32 %v3558, %v3814
    %v3816 = vpop.f32.mrb[0].mxu0
    %v3817 = vadd.f32 %v3560, %v3816
    %3818 = vmatprep.mubr.f32.mxu0 %v2701
    %3819 = vmatmul.mubr.f32.gmra.mrb[0].mxu0 %v2700
    %v3820 = vpop.f32.mrb[0].mxu0
    %v3821 = vadd.f32 %v3564, %v3820
    %v3822 = vpop.f32.mrb[0].mxu0
    %v3823 = vadd.f32 %v3566, %v3822
    %3824 = vmatprep.mubr.f32.mxu0 %v2709
    %3825 = vmatmul.mubr.f32.gmra.mrb[0].mxu0 %v2708
    %v3826 = vpop.f32.mrb[0].mxu0
    %v3827 = vadd.f32 %v3570, %v3826
    %v3828 = vpop.f32.mrb[0].mxu0
    %v3829 = vadd.f32 %v3572, %v3828
    %3830 = vmatprep.mubr.f32.mxu0 %v2717
    %3831 = vmatmul.mubr.f32.gmra.mrb[0].mxu0 %v2716
    %v3832 = vpop.f32.mrb[0].mxu0
    %v3833 = vadd.f32 %v3576, %v3832
    %v3834 = vpop.f32.mrb[0].mxu0
    %v3835 = vadd.f32 %v3578, %v3834
    %3836 = vmatprep.mubr.f32.mxu0 %v2725
    %3837 = vmatmul.mubr.f32.gmra.mrb[0].mxu0 %v2724
    %v3838 = vpop.f32.mrb[0].mxu0
    %v3839 = vadd.f32 %v3582, %v3838
    %v3840 = vpop.f32.mrb[0].mxu0
    %v3841 = vadd.f32 %v3584, %v3840
    %3842 = vmatprep.mubr.f32.mxu0 %v2733
    %3843 = vmatmul.mubr.f32.gmra.mrb[0].mxu0 %v2732
    %v3844 = vpop.f32.mrb[0].mxu0
    %v3845 = vadd.f32 %v3588, %v3844
    %v3846 = vpop.f32.mrb[0].mxu0
    %v3847 = vadd.f32 %v3590, %v3846
    %3848 = vmatprep.mubr.f32.mxu0 %v2741
    %3849 = vmatmul.mubr.f32.gmra.mrb[0].mxu0 %v2740
    %v3850 = vpop.f32.mrb[0].mxu0
    %v3851 = vadd.f32 %v3594, %v3850
    %v3852 = vpop.f32.mrb[0].mxu0
    %v3853 = vadd.f32 %v3596, %v3852
    %3854 = vmatprep.mubr.f32.mxu0 %v2749
    %3855 = vmatmul.mubr.f32.gmra.mrb[0].mxu0 %v2748
    %v3856 = vpop.f32.mrb[0].mxu0
    %v3857 = vadd.f32 %v3600, %v3856
    %v3858 = vpop.f32.mrb[0].mxu0
    %v3859 = vadd.f32 %v3602, %v3858
    %3860 = vmatprep.mubr.f32.mxu0 %v2757
    %3861 = vmatmul.mubr.f32.gmra.mrb[0].mxu0 %v2756
    %v3862 = vpop.f32.mrb[0].mxu0
    %v3863 = vadd.f32 %v3606, %v3862
    %v3864 = vpop.f32.mrb[0].mxu0
    %v3865 = vadd.f32 %v3608, %v3864
    %3866 = vmatprep.mubr.f32.mxu0 %v2765
    %3867 = vmatmul.mubr.f32.gmra.mrb[0].mxu0 %v2764
    %v3868 = vpop.f32.mrb[0].mxu0
    %v3869 = vadd.f32 %v3612, %v3868
    %v3870 = vpop.f32.mrb[0].mxu0
    %v3871 = vadd.f32 %v3614, %v3870
    %3872 = vmatprep.mubr.f32.mxu0 %v2773
    %3873 = vmatmul.mubr.f32.gmra.mrb[0].mxu0 %v2772
    %v3874 = vpop.f32.mrb[0].mxu0
    %v3875 = vadd.f32 %v3618, %v3874
    %v3876 = vpop.f32.mrb[0].mxu0
    %v3877 = vadd.f32 %v3620, %v3876
    %3878 = vmatprep.mubr.f32.mxu0 %v2781
    %3879 = vmatmul.mubr.f32.gmra.mrb[0].mxu0 %v2780
    %v3880 = vpop.f32.mrb[0].mxu0
    %v3881 = vadd.f32 %v3624, %v3880
    %v3882 = vpop.f32.mrb[0].mxu0
    %v3883 = vadd.f32 %v3626, %v3882
    %3884 = vmatprep.mubr.f32.mxu0 %v2789
    %3885 = vmatmul.mubr.f32.gmra.mrb[0].mxu0 %v2788
    %v3886 = vpop.f32.mrb[0].mxu0
    %v3887 = vadd.f32 %v3630, %v3886
    %v3888 = vpop.f32.mrb[0].mxu0
    %v3889 = vadd.f32 %v3632, %v3888
    %3890 = vmatprep.mubr.f32.mxu0 %v2797
    %3891 = vmatmul.mubr.f32.gmra.mrb[0].mxu0 %v2796
    %v3892 = vpop.f32.mrb[0].mxu0
    %v3893 = vadd.f32 %v3636, %v3892
    %v3894 = vpop.f32.mrb[0].mxu0
    %v3895 = vadd.f32 %v3638, %v3894
    %3896 = vmatprep.mubr.f32.mxu0 %v2805
    %3897 = vmatmul.mubr.f32.gmra.mrb[0].mxu0 %v2804
    %v3898 = vpop.f32.mrb[0].mxu0
    %v3899 = vadd.f32 %v3642, %v3898
    %v3900 = vpop.f32.mrb[0].mxu0
    %v3901 = vadd.f32 %v3644, %v3900
    %3902 = vmatprep.mubr.f32.mxu0 %v2813
    %3903 = vmatmul.mubr.f32.gmra.mrb[0].mxu0 %v2812
    %v3904 = vpop.f32.mrb[0].mxu0
    %v3905 = vadd.f32 %v3648, %v3904
    %v3906 = vpop.f32.mrb[0].mxu0
    %v3907 = vadd.f32 %v3650, %v3906
    %3908 = vmatprep.mubr.f32.mxu0 %v2821
    %3909 = vmatmul.mubr.f32.gmra.mrb[0].mxu0 %v2820
    %v3910 = vpop.f32.mrb[0].mxu0
    %v3911 = vadd.f32 %v3654, %v3910
    %v3912 = vpop.f32.mrb[0].mxu0
    %v3913 = vadd.f32 %v3656, %v3912
    %3914 = vdwg.mxu0
    %3915 = vmatprep.subr.mxu0 %v3081
    %3916 = vmatpush1.msra.mxu0 %v3080
    %3917 = vmatprep.subr.mxu0 %v3083
    %3918 = vmatpush1.msra.mxu0 %v3082
    %3919 = vmatprep.subr.mxu0 %v3085
    %3920 = vmatpush1.msra.mxu0 %v3084
    %3921 = vmatprep.subr.mxu0 %v3087
    %3922 = vmatpush1.msra.mxu0 %v3086
    %3923 = vmatprep.subr.mxu0 %v3089
    %3924 = vmatpush1.msra.mxu0 %v3088
    %3925 = vmatprep.subr.mxu0 %v3091
    %3926 = vmatpush1.msra.mxu0 %v3090
    %3927 = vmatprep.subr.mxu0 %v3093
    %3928 = vmatpush1.msra.mxu0 %v3092
    %3929 = vmatprep.subr.mxu0 %v3095
    %3930 = vmatpush1.msra.mxu0 %v3094
    %3931 = vmatprep.subr.mxu0 %v3097
    %3932 = vmatpush1.msra.mxu0 %v3096
    %3933 = vmatprep.subr.mxu0 %v3099
    %3934 = vmatpush1.msra.mxu0 %v3098
    %3935 = vmatprep.subr.mxu0 %v3101
    %3936 = vmatpush1.msra.mxu0 %v3100
    %3937 = vmatprep.subr.mxu0 %v3103
    %3938 = vmatpush1.msra.mxu0 %v3102
    %3939 = vmatprep.subr.mxu0 %v3105
    %3940 = vmatpush1.msra.mxu0 %v3104
    %3941 = vmatprep.subr.mxu0 %v3107
    %3942 = vmatpush1.msra.mxu0 %v3106
    %3943 = vmatprep.subr.mxu0 %v3109
    %3944 = vmatpush1.msra.mxu0 %v3108
    %3945 = vmatprep.subr.mxu0 %v3111
    %3946 = vmatpush1.msra.mxu0 %v3110
    %3947 = vmatprep.subr.mxu0 %v3113
    %3948 = vmatpush1.msra.mxu0 %v3112
    %3949 = vmatprep.subr.mxu0 %v3115
    %3950 = vmatpush1.msra.mxu0 %v3114
    %3951 = vmatprep.subr.mxu0 %v3117
    %3952 = vmatpush1.msra.mxu0 %v3116
    %3953 = vmatprep.subr.mxu0 %v3119
    %3954 = vmatpush1.msra.mxu0 %v3118
    %3955 = vmatprep.subr.mxu0 %v3121
    %3956 = vmatpush1.msra.mxu0 %v3120
    %3957 = vmatprep.subr.mxu0 %v3123
    %3958 = vmatpush1.msra.mxu0 %v3122
    %3959 = vmatprep.subr.mxu0 %v3125
    %3960 = vmatpush1.msra.mxu0 %v3124
    %3961 = vmatprep.subr.mxu0 %v3127
    %3962 = vmatpush1.msra.mxu0 %v3126
    %3963 = vmatprep.subr.mxu0 %v3129
    %3964 = vmatpush1.msra.mxu0 %v3128
    %3965 = vmatprep.subr.mxu0 %v3131
    %3966 = vmatpush1.msra.mxu0 %v3130
    %3967 = vmatprep.subr.mxu0 %v3133
    %3968 = vmatpush1.msra.mxu0 %v3132
    %3969 = vmatprep.subr.mxu0 %v3135
    %3970 = vmatpush1.msra.mxu0 %v3134
    %3971 = vmatprep.subr.mxu0 %v3137
    %3972 = vmatpush1.msra.mxu0 %v3136
    %3973 = vmatprep.subr.mxu0 %v3139
    %3974 = vmatpush1.msra.mxu0 %v3138
    %3975 = vmatprep.subr.mxu0 %v3141
    %3976 = vmatpush1.msra.mxu0 %v3140
    %3977 = vmatprep.subr.mxu0 %v3143
    %3978 = vmatpush1.msra.mxu0 %v3142
    %3979 = vmatprep.mubr.f32.mxu0 %v2575
    %3980 = vmatmul.mubr.f32.gmra.mrb[0].mxu0 %v2574
    %v3981 = vpop.f32.mrb[0].mxu0
    %v3982 = vadd.f32 %v3725, %v3981
    %v3983 = vpop.f32.mrb[0].mxu0
    %v3984 = vadd.f32 %v3727, %v3983
    %3985 = vmatprep.mubr.f32.mxu0 %v2583
    %3986 = vmatmul.mubr.f32.gmra.mrb[0].mxu0 %v2582
    %v3987 = vpop.f32.mrb[0].mxu0
    %v3988 = vadd.f32 %v3731, %v3987
    %v3989 = vpop.f32.mrb[0].mxu0
    %v3990 = vadd.f32 %v3733, %v3989
    %3991 = vmatprep.mubr.f32.mxu0 %v2591
    %3992 = vmatmul.mubr.f32.gmra.mrb[0].mxu0 %v2590
    %v3993 = vpop.f32.mrb[0].mxu0
    %v3994 = vadd.f32 %v3737, %v3993
    %v3995 = vpop.f32.mrb[0].mxu0
    %v3996 = vadd.f32 %v3739, %v3995
    %3997 = vmatprep.mubr.f32.mxu0 %v2599
    %3998 = vmatmul.mubr.f32.gmra.mrb[0].mxu0 %v2598
    %v3999 = vpop.f32.mrb[0].mxu0
    %v4000 = vadd.f32 %v3743, %v3999
    %v4001 = vpop.f32.mrb[0].mxu0
    %v4002 = vadd.f32 %v3745, %v4001
    %4003 = vmatprep.mubr.f32.mxu0 %v2607
    %4004 = vmatmul.mubr.f32.gmra.mrb[0].mxu0 %v2606
    %v4005 = vpop.f32.mrb[0].mxu0
    %v4006 = vadd.f32 %v3749, %v4005
    %v4007 = vpop.f32.mrb[0].mxu0
    %v4008 = vadd.f32 %v3751, %v4007
    %4009 = vmatprep.mubr.f32.mxu0 %v2615
    %4010 = vmatmul.mubr.f32.gmra.mrb[0].mxu0 %v2614
    %v4011 = vpop.f32.mrb[0].mxu0
    %v4012 = vadd.f32 %v3755, %v4011
    %v4013 = vpop.f32.mrb[0].mxu0
    %v4014 = vadd.f32 %v3757, %v4013
    %4015 = vmatprep.mubr.f32.mxu0 %v2623
    %4016 = vmatmul.mubr.f32.gmra.mrb[0].mxu0 %v2622
    %v4017 = vpop.f32.mrb[0].mxu0
    %v4018 = vadd.f32 %v3761, %v4017
    %v4019 = vpop.f32.mrb[0].mxu0
    %v4020 = vadd.f32 %v3763, %v4019
    %4021 = vmatprep.mubr.f32.mxu0 %v2631
    %4022 = vmatmul.mubr.f32.gmra.mrb[0].mxu0 %v2630
    %v4023 = vpop.f32.mrb[0].mxu0
    %v4024 = vadd.f32 %v3767, %v4023
    %v4025 = vpop.f32.mrb[0].mxu0
    %v4026 = vadd.f32 %v3769, %v4025
    %4027 = vmatprep.mubr.f32.mxu0 %v2639
    %4028 = vmatmul.mubr.f32.gmra.mrb[0].mxu0 %v2638
    %v4029 = vpop.f32.mrb[0].mxu0
    %v4030 = vadd.f32 %v3773, %v4029
    %v4031 = vpop.f32.mrb[0].mxu0
    %v4032 = vadd.f32 %v3775, %v4031
    %4033 = vmatprep.mubr.f32.mxu0 %v2647
    %4034 = vmatmul.mubr.f32.gmra.mrb[0].mxu0 %v2646
    %v4035 = vpop.f32.mrb[0].mxu0
    %v4036 = vadd.f32 %v3779, %v4035
    %v4037 = vpop.f32.mrb[0].mxu0
    %v4038 = vadd.f32 %v3781, %v4037
    %4039 = vmatprep.mubr.f32.mxu0 %v2655
    %4040 = vmatmul.mubr.f32.gmra.mrb[0].mxu0 %v2654
    %v4041 = vpop.f32.mrb[0].mxu0
    %v4042 = vadd.f32 %v3785, %v4041
    %v4043 = vpop.f32.mrb[0].mxu0
    %v4044 = vadd.f32 %v3787, %v4043
    %4045 = vmatprep.mubr.f32.mxu0 %v2663
    %4046 = vmatmul.mubr.f32.gmra.mrb[0].mxu0 %v2662
    %v4047 = vpop.f32.mrb[0].mxu0
    %v4048 = vadd.f32 %v3791, %v4047
    %v4049 = vpop.f32.mrb[0].mxu0
    %v4050 = vadd.f32 %v3793, %v4049
    %4051 = vmatprep.mubr.f32.mxu0 %v2671
    %4052 = vmatmul.mubr.f32.gmra.mrb[0].mxu0 %v2670
    %v4053 = vpop.f32.mrb[0].mxu0
    %v4054 = vadd.f32 %v3797, %v4053
    %v4055 = vpop.f32.mrb[0].mxu0
    %v4056 = vadd.f32 %v3799, %v4055
    %4057 = vmatprep.mubr.f32.mxu0 %v2679
    %4058 = vmatmul.mubr.f32.gmra.mrb[0].mxu0 %v2678
    %v4059 = vpop.f32.mrb[0].mxu0
    %v4060 = vadd.f32 %v3803, %v4059
    %v4061 = vpop.f32.mrb[0].mxu0
    %v4062 = vadd.f32 %v3805, %v4061
    %4063 = vmatprep.mubr.f32.mxu0 %v2687
    %4064 = vmatmul.mubr.f32.gmra.mrb[0].mxu0 %v2686
    %v4065 = vpop.f32.mrb[0].mxu0
    %v4066 = vadd.f32 %v3809, %v4065
    %v4067 = vpop.f32.mrb[0].mxu0
    %v4068 = vadd.f32 %v3811, %v4067
    %4069 = vmatprep.mubr.f32.mxu0 %v2695
    %4070 = vmatmul.mubr.f32.gmra.mrb[0].mxu0 %v2694
    %v4071 = vpop.f32.mrb[0].mxu0
    %v4072 = vadd.f32 %v3815, %v4071
    %v4073 = vpop.f32.mrb[0].mxu0
    %v4074 = vadd.f32 %v3817, %v4073
    %4075 = vmatprep.mubr.f32.mxu0 %v2703
    %4076 = vmatmul.mubr.f32.gmra.mrb[0].mxu0 %v2702
    %v4077 = vpop.f32.mrb[0].mxu0
    %v4078 = vadd.f32 %v3821, %v4077
    %v4079 = vpop.f32.mrb[0].mxu0
    %v4080 = vadd.f32 %v3823, %v4079
    %4081 = vmatprep.mubr.f32.mxu0 %v2711
    %4082 = vmatmul.mubr.f32.gmra.mrb[0].mxu0 %v2710
    %v4083 = vpop.f32.mrb[0].mxu0
    %v4084 = vadd.f32 %v3827, %v4083
    %v4085 = vpop.f32.mrb[0].mxu0
    %v4086 = vadd.f32 %v3829, %v4085
    %4087 = vmatprep.mubr.f32.mxu0 %v2719
    %4088 = vmatmul.mubr.f32.gmra.mrb[0].mxu0 %v2718
    %v4089 = vpop.f32.mrb[0].mxu0
    %v4090 = vadd.f32 %v3833, %v4089
    %v4091 = vpop.f32.mrb[0].mxu0
    %v4092 = vadd.f32 %v3835, %v4091
    %4093 = vmatprep.mubr.f32.mxu0 %v2727
    %4094 = vmatmul.mubr.f32.gmra.mrb[0].mxu0 %v2726
    %v4095 = vpop.f32.mrb[0].mxu0
    %v4096 = vadd.f32 %v3839, %v4095
    %v4097 = vpop.f32.mrb[0].mxu0
    %v4098 = vadd.f32 %v3841, %v4097
    %4099 = vmatprep.mubr.f32.mxu0 %v2735
    %4100 = vmatmul.mubr.f32.gmra.mrb[0].mxu0 %v2734
    %v4101 = vpop.f32.mrb[0].mxu0
    %v4102 = vadd.f32 %v3845, %v4101
    %v4103 = vpop.f32.mrb[0].mxu0
    %v4104 = vadd.f32 %v3847, %v4103
    %4105 = vmatprep.mubr.f32.mxu0 %v2743
    %4106 = vmatmul.mubr.f32.gmra.mrb[0].mxu0 %v2742
    %v4107 = vpop.f32.mrb[0].mxu0
    %v4108 = vadd.f32 %v3851, %v4107
    %v4109 = vpop.f32.mrb[0].mxu0
    %v4110 = vadd.f32 %v3853, %v4109
    %4111 = vmatprep.mubr.f32.mxu0 %v2751
    %4112 = vmatmul.mubr.f32.gmra.mrb[0].mxu0 %v2750
    %v4113 = vpop.f32.mrb[0].mxu0
    %v4114 = vadd.f32 %v3857, %v4113
    %v4115 = vpop.f32.mrb[0].mxu0
    %v4116 = vadd.f32 %v3859, %v4115
    %4117 = vmatprep.mubr.f32.mxu0 %v2759
    %4118 = vmatmul.mubr.f32.gmra.mrb[0].mxu0 %v2758
    %v4119 = vpop.f32.mrb[0].mxu0
    %v4120 = vadd.f32 %v3863, %v4119
    %v4121 = vpop.f32.mrb[0].mxu0
    %v4122 = vadd.f32 %v3865, %v4121
    %4123 = vmatprep.mubr.f32.mxu0 %v2767
    %4124 = vmatmul.mubr.f32.gmra.mrb[0].mxu0 %v2766
    %v4125 = vpop.f32.mrb[0].mxu0
    %v4126 = vadd.f32 %v3869, %v4125
    %v4127 = vpop.f32.mrb[0].mxu0
    %v4128 = vadd.f32 %v3871, %v4127
    %4129 = vmatprep.mubr.f32.mxu0 %v2775
    %4130 = vmatmul.mubr.f32.gmra.mrb[0].mxu0 %v2774
    %v4131 = vpop.f32.mrb[0].mxu0
    %v4132 = vadd.f32 %v3875, %v4131
    %v4133 = vpop.f32.mrb[0].mxu0
    %v4134 = vadd.f32 %v3877, %v4133
    %4135 = vmatprep.mubr.f32.mxu0 %v2783
    %4136 = vmatmul.mubr.f32.gmra.mrb[0].mxu0 %v2782
    %v4137 = vpop.f32.mrb[0].mxu0
    %v4138 = vadd.f32 %v3881, %v4137
    %v4139 = vpop.f32.mrb[0].mxu0
    %v4140 = vadd.f32 %v3883, %v4139
    %4141 = vmatprep.mubr.f32.mxu0 %v2791
    %4142 = vmatmul.mubr.f32.gmra.mrb[0].mxu0 %v2790
    %v4143 = vpop.f32.mrb[0].mxu0
    %v4144 = vadd.f32 %v3887, %v4143
    %v4145 = vpop.f32.mrb[0].mxu0
    %v4146 = vadd.f32 %v3889, %v4145
    %4147 = vmatprep.mubr.f32.mxu0 %v2799
    %4148 = vmatmul.mubr.f32.gmra.mrb[0].mxu0 %v2798
    %v4149 = vpop.f32.mrb[0].mxu0
    %v4150 = vadd.f32 %v3893, %v4149
    %v4151 = vpop.f32.mrb[0].mxu0
    %v4152 = vadd.f32 %v3895, %v4151
    %4153 = vmatprep.mubr.f32.mxu0 %v2807
    %4154 = vmatmul.mubr.f32.gmra.mrb[0].mxu0 %v2806
    %v4155 = vpop.f32.mrb[0].mxu0
    %v4156 = vadd.f32 %v3899, %v4155
    %v4157 = vpop.f32.mrb[0].mxu0
    %v4158 = vadd.f32 %v3901, %v4157
    %4159 = vmatprep.mubr.f32.mxu0 %v2815
    %4160 = vmatmul.mubr.f32.gmra.mrb[0].mxu0 %v2814
    %v4161 = vpop.f32.mrb[0].mxu0
    %v4162 = vadd.f32 %v3905, %v4161
    %v4163 = vpop.f32.mrb[0].mxu0
    %v4164 = vadd.f32 %v3907, %v4163
    %4165 = vmatprep.mubr.f32.mxu0 %v2823
    %4166 = vmatmul.mubr.f32.gmra.mrb[0].mxu0 %v2822
    %v4167 = vpop.f32.mrb[0].mxu0
    %v4168 = vadd.f32 %v3911, %v4167
    %v4169 = vpop.f32.mrb[0].mxu0
    %v4170 = vadd.f32 %v3913, %v4169
    %4171 = vdwg.mxu0
    %v4172 = vadd.f32 %v2824, %v3982
    %v4173 = vadd.f32 %v2825, %v3984
    %v4174 = vadd.f32 %v2826, %v3988
    %v4175 = vadd.f32 %v2827, %v3990
    %v4176 = vadd.f32 %v2828, %v3994
    %v4177 = vadd.f32 %v2829, %v3996
    %v4178 = vadd.f32 %v2830, %v4000
    %v4179 = vadd.f32 %v2831, %v4002
    %v4180 = vadd.f32 %v2832, %v4006
    %v4181 = vadd.f32 %v2833, %v4008
    %v4182 = vadd.f32 %v2834, %v4012
    %v4183 = vadd.f32 %v2835, %v4014
    %v4184 = vadd.f32 %v2836, %v4018
    %v4185 = vadd.f32 %v2837, %v4020
    %v4186 = vadd.f32 %v2838, %v4024
    %v4187 = vadd.f32 %v2839, %v4026
    %v4188 = vadd.f32 %v2840, %v4030
    %v4189 = vadd.f32 %v2841, %v4032
    %v4190 = vadd.f32 %v2842, %v4036
    %v4191 = vadd.f32 %v2843, %v4038
    %v4192 = vadd.f32 %v2844, %v4042
    %v4193 = vadd.f32 %v2845, %v4044
    %v4194 = vadd.f32 %v2846, %v4048
    %v4195 = vadd.f32 %v2847, %v4050
    %v4196 = vadd.f32 %v2848, %v4054
    %v4197 = vadd.f32 %v2849, %v4056
    %v4198 = vadd.f32 %v2850, %v4060
    %v4199 = vadd.f32 %v2851, %v4062
    %v4200 = vadd.f32 %v2852, %v4066
    %v4201 = vadd.f32 %v2853, %v4068
    %v4202 = vadd.f32 %v2854, %v4072
    %v4203 = vadd.f32 %v2855, %v4074
    %v4204 = vadd.f32 %v2856, %v4078
    %v4205 = vadd.f32 %v2857, %v4080
    %v4206 = vadd.f32 %v2858, %v4084
    %v4207 = vadd.f32 %v2859, %v4086
    %v4208 = vadd.f32 %v2860, %v4090
    %v4209 = vadd.f32 %v2861, %v4092
    %v4210 = vadd.f32 %v2862, %v4096
    %v4211 = vadd.f32 %v2863, %v4098
    %v4212 = vadd.f32 %v2864, %v4102
    %v4213 = vadd.f32 %v2865, %v4104
    %v4214 = vadd.f32 %v2866, %v4108
    %v4215 = vadd.f32 %v2867, %v4110
    %v4216 = vadd.f32 %v2868, %v4114
    %v4217 = vadd.f32 %v2869, %v4116
    %v4218 = vadd.f32 %v2870, %v4120
    %v4219 = vadd.f32 %v2871, %v4122
    %v4220 = vadd.f32 %v2872, %v4126
    %v4221 = vadd.f32 %v2873, %v4128
    %v4222 = vadd.f32 %v2874, %v4132
    %v4223 = vadd.f32 %v2875, %v4134
    %v4224 = vadd.f32 %v2876, %v4138
    %v4225 = vadd.f32 %v2877, %v4140
    %v4226 = vadd.f32 %v2878, %v4144
    %v4227 = vadd.f32 %v2879, %v4146
    %v4228 = vadd.f32 %v2880, %v4150
    %v4229 = vadd.f32 %v2881, %v4152
    %v4230 = vadd.f32 %v2882, %v4156
    %v4231 = vadd.f32 %v2883, %v4158
    %v4232 = vadd.f32 %v2884, %v4162
    %v4233 = vadd.f32 %v2885, %v4164
    %v4234 = vadd.f32 %v2886, %v4168
    %v4235 = vadd.f32 %v2887, %v4170
    %4236 = vst [vmem:[#allocation2] sm:$0xff] %v4172
    %4237 = vst [vmem:[#allocation2 + $0x8] sm:$0xff] %v4173
    %4238 = vst [vmem:[#allocation2 + $0x10] sm:$0xff] %v4174
    %4239 = vst [vmem:[#allocation2 + $0x18] sm:$0xff] %v4175
    %4240 = vst [vmem:[#allocation2 + $0x20] sm:$0xff] %v4176
    %4241 = vst [vmem:[#allocation2 + $0x28] sm:$0xff] %v4177
    %4242 = vst [vmem:[#allocation2 + $0x30] sm:$0xff] %v4178
    %4243 = vst [vmem:[#allocation2 + $0x38] sm:$0xff] %v4179
    %4244 = vst [vmem:[#allocation2 + $0x40] sm:$0xff] %v4180
    %4245 = vst [vmem:[#allocation2 + $0x48] sm:$0xff] %v4181
    %4246 = vst [vmem:[#allocation2 + $0x50] sm:$0xff] %v4182
    %4247 = vst [vmem:[#allocation2 + $0x58] sm:$0xff] %v4183
    %4248 = vst [vmem:[#allocation2 + $0x60] sm:$0xff] %v4184
    %4249 = vst [vmem:[#allocation2 + $0x68] sm:$0xff] %v4185
    %4250 = vst [vmem:[#allocation2 + $0x70] sm:$0xff] %v4186
    %4251 = vst [vmem:[#allocation2 + $0x78] sm:$0xff] %v4187
    %4252 = vst [vmem:[#allocation2 + $0x80] sm:$0xff] %v4188
    %4253 = vst [vmem:[#allocation2 + $0x88] sm:$0xff] %v4189
    %4254 = vst [vmem:[#allocation2 + $0x90] sm:$0xff] %v4190
    %4255 = vst [vmem:[#allocation2 + $0x98] sm:$0xff] %v4191
    %4256 = vst [vmem:[#allocation2 + $0xa0] sm:$0xff] %v4192
    %4257 = vst [vmem:[#allocation2 + $0xa8] sm:$0xff] %v4193
    %4258 = vst [vmem:[#allocation2 + $0xb0] sm:$0xff] %v4194
    %4259 = vst [vmem:[#allocation2 + $0xb8] sm:$0xff] %v4195
    %4260 = vst [vmem:[#allocation2 + $0xc0] sm:$0xff] %v4196
    %4261 = vst [vmem:[#allocation2 + $0xc8] sm:$0xff] %v4197
    %4262 = vst [vmem:[#allocation2 + $0xd0] sm:$0xff] %v4198
    %4263 = vst [vmem:[#allocation2 + $0xd8] sm:$0xff] %v4199
    %4264 = vst [vmem:[#allocation2 + $0xe0] sm:$0xff] %v4200
    %4265 = vst [vmem:[#allocation2 + $0xe8] sm:$0xff] %v4201
    %4266 = vst [vmem:[#allocation2 + $0xf0] sm:$0xff] %v4202
    %4267 = vst [vmem:[#allocation2 + $0xf8] sm:$0xff] %v4203
    %4268 = vst [vmem:[#allocation2 + $0x100] sm:$0xff] %v4204
    %4269 = vst [vmem:[#allocation2 + $0x108] sm:$0xff] %v4205
    %4270 = vst [vmem:[#allocation2 + $0x110] sm:$0xff] %v4206
    %4271 = vst [vmem:[#allocation2 + $0x118] sm:$0xff] %v4207
    %4272 = vst [vmem:[#allocation2 + $0x120] sm:$0xff] %v4208
    %4273 = vst [vmem:[#allocation2 + $0x128] sm:$0xff] %v4209
    %4274 = vst [vmem:[#allocation2 + $0x130] sm:$0xff] %v4210
    %4275 = vst [vmem:[#allocation2 + $0x138] sm:$0xff] %v4211
    %4276 = vst [vmem:[#allocation2 + $0x140] sm:$0xff] %v4212
    %4277 = vst [vmem:[#allocation2 + $0x148] sm:$0xff] %v4213
    %4278 = vst [vmem:[#allocation2 + $0x150] sm:$0xff] %v4214
    %4279 = vst [vmem:[#allocation2 + $0x158] sm:$0xff] %v4215
    %4280 = vst [vmem:[#allocation2 + $0x160] sm:$0xff] %v4216
    %4281 = vst [vmem:[#allocation2 + $0x168] sm:$0xff] %v4217
    %4282 = vst [vmem:[#allocation2 + $0x170] sm:$0xff] %v4218
    %4283 = vst [vmem:[#allocation2 + $0x178] sm:$0xff] %v4219
    %4284 = vst [vmem:[#allocation2 + $0x180] sm:$0xff] %v4220
    %4285 = vst [vmem:[#allocation2 + $0x188] sm:$0xff] %v4221
    %4286 = vst [vmem:[#allocation2 + $0x190] sm:$0xff] %v4222
    %4287 = vst [vmem:[#allocation2 + $0x198] sm:$0xff] %v4223
    %4288 = vst [vmem:[#allocation2 + $0x1a0] sm:$0xff] %v4224
    %4289 = vst [vmem:[#allocation2 + $0x1a8] sm:$0xff] %v4225
    %4290 = vst [vmem:[#allocation2 + $0x1b0] sm:$0xff] %v4226
    %4291 = vst [vmem:[#allocation2 + $0x1b8] sm:$0xff] %v4227
    %4292 = vst [vmem:[#allocation2 + $0x1c0] sm:$0xff] %v4228
    %4293 = vst [vmem:[#allocation2 + $0x1c8] sm:$0xff] %v4229
    %4294 = vst [vmem:[#allocation2 + $0x1d0] sm:$0xff] %v4230
    %4295 = vst [vmem:[#allocation2 + $0x1d8] sm:$0xff] %v4231
    %4296 = vst [vmem:[#allocation2 + $0x1e0] sm:$0xff] %v4232
    %4297 = vst [vmem:[#allocation2 + $0x1e8] sm:$0xff] %v4233
    %4298 = vst [vmem:[#allocation2 + $0x1f0] sm:$0xff] %v4234
    %4299 = vst [vmem:[#allocation2 + $0x1f8] sm:$0xff] %v4235
    // Predicated region
    $region42: #{tpu_custom_call.1} parent=1 // pred_check
      %p4300 = pneg %p74
    $region43: #{tpu_custom_call.1} parent=1 // pred_check_branch
      %4302 = sbr.rel (%p4300) target = $region45
    $region44: #{tpu_custom_call.1} parent=1 // pred_region
      %v4303 = vld [vmem:[#allocation2] sm:$0xff]
      %v4304 = vld [vmem:[#allocation2 + $0x8] sm:$0xff]
      %v4305 = vld [vmem:[#allocation2 + $0x10] sm:$0xff]
      %v4306 = vld [vmem:[#allocation2 + $0x18] sm:$0xff]
      %v4307 = vld [vmem:[#allocation2 + $0x20] sm:$0xff]
      %v4308 = vld [vmem:[#allocation2 + $0x28] sm:$0xff]
      %v4309 = vld [vmem:[#allocation2 + $0x30] sm:$0xff]
      %v4310 = vld [vmem:[#allocation2 + $0x38] sm:$0xff]
      %v4311 = vld [vmem:[#allocation2 + $0x40] sm:$0xff]
      %v4312 = vld [vmem:[#allocation2 + $0x48] sm:$0xff]
      %v4313 = vld [vmem:[#allocation2 + $0x50] sm:$0xff]
      %v4314 = vld [vmem:[#allocation2 + $0x58] sm:$0xff]
      %v4315 = vld [vmem:[#allocation2 + $0x60] sm:$0xff]
      %v4316 = vld [vmem:[#allocation2 + $0x68] sm:$0xff]
      %v4317 = vld [vmem:[#allocation2 + $0x70] sm:$0xff]
      %v4318 = vld [vmem:[#allocation2 + $0x78] sm:$0xff]
      %v4319 = vld [vmem:[#allocation2 + $0x80] sm:$0xff]
      %v4320 = vld [vmem:[#allocation2 + $0x88] sm:$0xff]
      %v4321 = vld [vmem:[#allocation2 + $0x90] sm:$0xff]
      %v4322 = vld [vmem:[#allocation2 + $0x98] sm:$0xff]
      %v4323 = vld [vmem:[#allocation2 + $0xa0] sm:$0xff]
      %v4324 = vld [vmem:[#allocation2 + $0xa8] sm:$0xff]
      %v4325 = vld [vmem:[#allocation2 + $0xb0] sm:$0xff]
      %v4326 = vld [vmem:[#allocation2 + $0xb8] sm:$0xff]
      %v4327 = vld [vmem:[#allocation2 + $0xc0] sm:$0xff]
      %v4328 = vld [vmem:[#allocation2 + $0xc8] sm:$0xff]
      %v4329 = vld [vmem:[#allocation2 + $0xd0] sm:$0xff]
      %v4330 = vld [vmem:[#allocation2 + $0xd8] sm:$0xff]
      %v4331 = vld [vmem:[#allocation2 + $0xe0] sm:$0xff]
      %v4332 = vld [vmem:[#allocation2 + $0xe8] sm:$0xff]
      %v4333 = vld [vmem:[#allocation2 + $0xf0] sm:$0xff]
      %v4334 = vld [vmem:[#allocation2 + $0xf8] sm:$0xff]
      %v4335 = vld [vmem:[#allocation2 + $0x100] sm:$0xff]
      %v4336 = vld [vmem:[#allocation2 + $0x108] sm:$0xff]
      %v4337 = vld [vmem:[#allocation2 + $0x110] sm:$0xff]
      %v4338 = vld [vmem:[#allocation2 + $0x118] sm:$0xff]
      %v4339 = vld [vmem:[#allocation2 + $0x120] sm:$0xff]
      %v4340 = vld [vmem:[#allocation2 + $0x128] sm:$0xff]
      %v4341 = vld [vmem:[#allocation2 + $0x130] sm:$0xff]
      %v4342 = vld [vmem:[#allocation2 + $0x138] sm:$0xff]
      %v4343 = vld [vmem:[#allocation2 + $0x140] sm:$0xff]
      %v4344 = vld [vmem:[#allocation2 + $0x148] sm:$0xff]
      %v4345 = vld [vmem:[#allocation2 + $0x150] sm:$0xff]
      %v4346 = vld [vmem:[#allocation2 + $0x158] sm:$0xff]
      %v4347 = vld [vmem:[#allocation2 + $0x160] sm:$0xff]
      %v4348 = vld [vmem:[#allocation2 + $0x168] sm:$0xff]
      %v4349 = vld [vmem:[#allocation2 + $0x170] sm:$0xff]
      %v4350 = vld [vmem:[#allocation2 + $0x178] sm:$0xff]
      %v4351 = vld [vmem:[#allocation2 + $0x180] sm:$0xff]
      %v4352 = vld [vmem:[#allocation2 + $0x188] sm:$0xff]
      %v4353 = vld [vmem:[#allocation2 + $0x190] sm:$0xff]
      %v4354 = vld [vmem:[#allocation2 + $0x198] sm:$0xff]
      %v4355 = vld [vmem:[#allocation2 + $0x1a0] sm:$0xff]
      %v4356 = vld [vmem:[#allocation2 + $0x1a8] sm:$0xff]
      %v4357 = vld [vmem:[#allocation2 + $0x1b0] sm:$0xff]
      %v4358 = vld [vmem:[#allocation2 + $0x1b8] sm:$0xff]
      %v4359 = vld [vmem:[#allocation2 + $0x1c0] sm:$0xff]
      %v4360 = vld [vmem:[#allocation2 + $0x1c8] sm:$0xff]
      %v4361 = vld [vmem:[#allocation2 + $0x1d0] sm:$0xff]
      %v4362 = vld [vmem:[#allocation2 + $0x1d8] sm:$0xff]
      %v4363 = vld [vmem:[#allocation2 + $0x1e0] sm:$0xff]
      %v4364 = vld [vmem:[#allocation2 + $0x1e8] sm:$0xff]
      %v4365 = vld [vmem:[#allocation2 + $0x1f0] sm:$0xff]
      %v4366 = vld [vmem:[#allocation2 + $0x1f8] sm:$0xff]
      %4367 = vst [vmem:[#allocation11] sm:$0xff] %v4303
      %4368 = vst [vmem:[#allocation11 + $0x8] sm:$0xff] %v4304
      %4369 = vst [vmem:[#allocation11 + $0x10] sm:$0xff] %v4305
      %4370 = vst [vmem:[#allocation11 + $0x18] sm:$0xff] %v4306
      %4371 = vst [vmem:[#allocation11 + $0x20] sm:$0xff] %v4307
      %4372 = vst [vmem:[#allocation11 + $0x28] sm:$0xff] %v4308
      %4373 = vst [vmem:[#allocation11 + $0x30] sm:$0xff] %v4309
      %4374 = vst [vmem:[#allocation11 + $0x38] sm:$0xff] %v4310
      %4375 = vst [vmem:[#allocation11 + $0x40] sm:$0xff] %v4311
      %4376 = vst [vmem:[#allocation11 + $0x48] sm:$0xff] %v4312
      %4377 = vst [vmem:[#allocation11 + $0x50] sm:$0xff] %v4313
      %4378 = vst [vmem:[#allocation11 + $0x58] sm:$0xff] %v4314
      %4379 = vst [vmem:[#allocation11 + $0x60] sm:$0xff] %v4315
      %4380 = vst [vmem:[#allocation11 + $0x68] sm:$0xff] %v4316
      %4381 = vst [vmem:[#allocation11 + $0x70] sm:$0xff] %v4317
      %4382 = vst [vmem:[#allocation11 + $0x78] sm:$0xff] %v4318
      %4383 = vst [vmem:[#allocation11 + $0x80] sm:$0xff] %v4319
      %4384 = vst [vmem:[#allocation11 + $0x88] sm:$0xff] %v4320
      %4385 = vst [vmem:[#allocation11 + $0x90] sm:$0xff] %v4321
      %4386 = vst [vmem:[#allocation11 + $0x98] sm:$0xff] %v4322
      %4387 = vst [vmem:[#allocation11 + $0xa0] sm:$0xff] %v4323
      %4388 = vst [vmem:[#allocation11 + $0xa8] sm:$0xff] %v4324
      %4389 = vst [vmem:[#allocation11 + $0xb0] sm:$0xff] %v4325
      %4390 = vst [vmem:[#allocation11 + $0xb8] sm:$0xff] %v4326
      %4391 = vst [vmem:[#allocation11 + $0xc0] sm:$0xff] %v4327
      %4392 = vst [vmem:[#allocation11 + $0xc8] sm:$0xff] %v4328
      %4393 = vst [vmem:[#allocation11 + $0xd0] sm:$0xff] %v4329
      %4394 = vst [vmem:[#allocation11 + $0xd8] sm:$0xff] %v4330
      %4395 = vst [vmem:[#allocation11 + $0xe0] sm:$0xff] %v4331
      %4396 = vst [vmem:[#allocation11 + $0xe8] sm:$0xff] %v4332
      %4397 = vst [vmem:[#allocation11 + $0xf0] sm:$0xff] %v4333
      %4398 = vst [vmem:[#allocation11 + $0xf8] sm:$0xff] %v4334
      %4399 = vst [vmem:[#allocation11 + $0x100] sm:$0xff] %v4335
      %4400 = vst [vmem:[#allocation11 + $0x108] sm:$0xff] %v4336
      %4401 = vst [vmem:[#allocation11 + $0x110] sm:$0xff] %v4337
      %4402 = vst [vmem:[#allocation11 + $0x118] sm:$0xff] %v4338
      %4403 = vst [vmem:[#allocation11 + $0x120] sm:$0xff] %v4339
      %4404 = vst [vmem:[#allocation11 + $0x128] sm:$0xff] %v4340
      %4405 = vst [vmem:[#allocation11 + $0x130] sm:$0xff] %v4341
      %4406 = vst [vmem:[#allocation11 + $0x138] sm:$0xff] %v4342
      %4407 = vst [vmem:[#allocation11 + $0x140] sm:$0xff] %v4343
      %4408 = vst [vmem:[#allocation11 + $0x148] sm:$0xff] %v4344
      %4409 = vst [vmem:[#allocation11 + $0x150] sm:$0xff] %v4345
      %4410 = vst [vmem:[#allocation11 + $0x158] sm:$0xff] %v4346
      %4411 = vst [vmem:[#allocation11 + $0x160] sm:$0xff] %v4347
      %4412 = vst [vmem:[#allocation11 + $0x168] sm:$0xff] %v4348
      %4413 = vst [vmem:[#allocation11 + $0x170] sm:$0xff] %v4349
      %4414 = vst [vmem:[#allocation11 + $0x178] sm:$0xff] %v4350
      %4415 = vst [vmem:[#allocation11 + $0x180] sm:$0xff] %v4351
      %4416 = vst [vmem:[#allocation11 + $0x188] sm:$0xff] %v4352
      %4417 = vst [vmem:[#allocation11 + $0x190] sm:$0xff] %v4353
      %4418 = vst [vmem:[#allocation11 + $0x198] sm:$0xff] %v4354
      %4419 = vst [vmem:[#allocation11 + $0x1a0] sm:$0xff] %v4355
      %4420 = vst [vmem:[#allocation11 + $0x1a8] sm:$0xff] %v4356
      %4421 = vst [vmem:[#allocation11 + $0x1b0] sm:$0xff] %v4357
      %4422 = vst [vmem:[#allocation11 + $0x1b8] sm:$0xff] %v4358
      %4423 = vst [vmem:[#allocation11 + $0x1c0] sm:$0xff] %v4359
      %4424 = vst [vmem:[#allocation11 + $0x1c8] sm:$0xff] %v4360
      %4425 = vst [vmem:[#allocation11 + $0x1d0] sm:$0xff] %v4361
      %4426 = vst [vmem:[#allocation11 + $0x1d8] sm:$0xff] %v4362
      %4427 = vst [vmem:[#allocation11 + $0x1e0] sm:$0xff] %v4363
      %4428 = vst [vmem:[#allocation11 + $0x1e8] sm:$0xff] %v4364
      %4429 = vst [vmem:[#allocation11 + $0x1f0] sm:$0xff] %v4365
      %4430 = vst [vmem:[#allocation11 + $0x1f8] sm:$0xff] %v4366
    $region45: #{tpu_custom_call.1} parent=1 // pred_fallthru
      _
    // Predicated region
    $region46: #{tpu_custom_call.1} parent=1 // pred_check
      _
    $region47: #{tpu_custom_call.1} parent=1 // pred_check_branch
      %4432 = sbr.rel (0) target = $region49
    $region48: #{tpu_custom_call.1} parent=1 // pred_region
      %s4434 = ssub.s32 8192, 6400
      %4435 = vsyncadd [#allocation5], %s4434
      %s4436 = sshll.u32 [#allocation11], 4
      %s4437 = int_to_ptr.vmem [resolvable:$true] %s4436
      %4442 = dma.vmem_to_hbm [thread:$0]  %s4437, 6400, %s5, [#allocation5], 256, 256, 16
    $region49: #{tpu_custom_call.1} parent=1 // pred_fallthru
      _
    // Predicated region
    $region50: #{tpu_custom_call.1} parent=1 // pred_check
      _
    $region51: #{tpu_custom_call.1} parent=1 // pred_check_branch
      %4444 = sbr.rel (0) target = $region53
    $region52: #{tpu_custom_call.1} parent=1 // pred_region
      %4445 = dma.done [#allocation5], 8192
    $region53: #{tpu_custom_call.1} parent=1 // pred_fallthru
      _
    %4446 = vsyncpa [#allocation4], 1
    %4447 = vsyncpa [#allocation7], 1
    %4448 = vsyncpa [#allocation10], 1
    %4449 = vsyncpa [#allocation5], 1

</llo_original>
